<compile_context>
chip_gen: v7x
topology: tpu7x:2x2x1
jax: 0.10.0
libtpu: 0.0.40
codegen_flags: <defaults>
</compile_context>

<pallas_src>
import numpy as np

import jax
import jax.numpy as jnp
from jax import lax
from jax.experimental import pallas as pl
from jax.experimental.pallas import tpu as pltpu

_B_BLK = 8       # batch rows per grid program (sublane aligned)
_UNROLL = 8      # bounded unroll factor for serial loops


# -----------------------------------------------------------------------------
# Fused kernel: BiLSTM recurrence + Linear + mask + CRF Viterbi (+ backtrack)
# -----------------------------------------------------------------------------
def fused_ner_kernel(gx_ref,      # (T, Bb, 8H) bf16  pre-projected gates (swizzled)
                     mask_ref,    # (T, Bb, 1)  f32
                     whh_ref,     # (2H, 8H)    bf16  block-diag recurrent weight
                     wout_f_ref,  # (H, K)      bf16
                     wout_b_ref,  # (H, K)      bf16
                     bout_ref,    # (1, K)      f32
                     start_ref,   # (1, K)      f32
                     end_ref,     # (1, K)      f32
                     trans_ref,   # (K, K)      f32
                     tags_ref,    # (Bb, T)     i32   OUTPUT
                     hidf_ref,    # (T*Bb, H)   f32   scratch fwd hidden
                     hidb_ref,    # (T*Bb, H)   f32   scratch bwd hidden
                     emis_ref,    # (T*Bb, K)   f32   scratch emissions
                     bp_ref):     # (T*Bb, K)   i32   scratch backpointers
    T, Bb, _ = gx_ref.shape
    H = whh_ref.shape[0] // 2
    K = trans_ref.shape[0]

    whh = whh_ref[...]                                        # (2H, 8H) bf16

    # ---- (1) merged fwd/bwd LSTM recurrence (one MXU issue / step) ----
    # gate lanes: [i_f|i_b|f_f|f_b|o_f|o_b|g_f|g_b]; carries are [fwd|bwd].
    def step(t, carry):
        h, c = carry                                          # (Bb, 2H) f32
        g = gx_ref[t].astype(jnp.float32) + jnp.dot(
            h.astype(jnp.bfloat16), whh, preferred_element_type=jnp.float32)
        sig = jax.nn.sigmoid(g[:, :6 * H])                    # i|f|o, both dirs
        gg = jnp.tanh(g[:, 6 * H:])                           # g, both dirs
        c = sig[:, 2 * H:4 * H] * c + sig[:, :2 * H] * gg
        h = sig[:, 4 * H:6 * H] * jnp.tanh(c)
        rf = pl.multiple_of(t * Bb, 8)                        # fwd time t
        rb = pl.multiple_of((T - 1 - t) * Bb, 8)              # bwd time T-1-t
        hidf_ref[pl.ds(rf, Bb), :] = h[:, :H]
        hidb_ref[pl.ds(rb, Bb), :] = h[:, H:]
        return h, c

    zero = jnp.zeros((Bb, 2 * H), jnp.float32)
    lax.fori_loop(0, T, step, (zero, zero), unroll=min(T, _UNROLL))

    # ---- (2) output Linear (one shot over all T*Bb rows) ----
    logits = (
        jnp.dot(hidf_ref[...].astype(jnp.bfloat16), wout_f_ref[...],
                preferred_element_type=jnp.float32)
        + jnp.dot(hidb_ref[...].astype(jnp.bfloat16), wout_b_ref[...],
                  preferred_element_type=jnp.float32)
        + bout_ref[...]
    )                                                         # (T*Bb, K)
    emis_ref[...] = logits

    # ---- (3) CRF Viterbi forward DP (emissions added AFTER the max) ----
    trans_b = trans_ref[...][None, :, :]                      # (1, K, K)
    iota_bkk = lax.broadcasted_iota(jnp.int32, (Bb, K, K), 1)
    iota_bk = lax.broadcasted_iota(jnp.int32, (Bb, K), 1)

    # module multiplies emissions by the mask before decoding (torchcrf
    # assumes mask[:, 0] == 1; padded batch rows are dropped by the wrapper).
    score0 = start_ref[...] + emis_ref[pl.ds(0, Bb), :] * mask_ref[0]

    def vit_body(t, score):
        rt = pl.multiple_of(t * Bb, 8)
        emis_t = emis_ref[pl.ds(rt, Bb), :]                   # (Bb, K)
        m = mask_ref[t] > 0.5                                 # (Bb, 1)
        lattice = score[:, :, None] + trans_b                 # (Bb, K, K)
        maxv = jnp.max(lattice, axis=1)                       # (Bb, K)
        is_max = lattice == maxv[:, None, :]
        bp = jnp.min(jnp.where(is_max, iota_bkk, K), axis=1).astype(jnp.int32)
        bp_ref[pl.ds(rt, Bb), :] = jnp.where(m, bp, iota_bk)
        return jnp.where(m, maxv + emis_t, score)

    score = lax.fori_loop(1, T, vit_body, score0,
                          unroll=min(max(T - 1, 1), _UNROLL))
    final = score + end_ref[...]                              # (Bb, K)

    # ---- (4) backtracking; tags accumulated in registers, one dense store ----
    iota_bt = lax.broadcasted_iota(jnp.int32, (Bb, T), 1)
    maxf = jnp.max(final, axis=1, keepdims=True)
    best = jnp.min(jnp.where(final == maxf, iota_bk, K),
                   axis=1, keepdims=True).astype(jnp.int32)   # (Bb, 1)
    tags0 = jnp.where(iota_bt == T - 1, best, 0)

    def back_body(i, carry):
        tag_cur, tags = carry
        t = T - 1 - i
        rt = pl.multiple_of(t * Bb, 8)
        bp_t = bp_ref[pl.ds(rt, Bb), :]
        tag_prev = jnp.sum(jnp.where(iota_bk == tag_cur, bp_t, 0),
                           axis=1, keepdims=True).astype(jnp.int32)
        tags = jnp.where(iota_bt == t - 1, tag_prev, tags)
        return tag_prev, tags

    _, tags = lax.fori_loop(0, T - 1, back_body, (best, tags0),
                            unroll=min(max(T - 1, 1), _UNROLL))
    tags_ref[...] = tags


# -----------------------------------------------------------------------------
# Wrapper
# -----------------------------------------------------------------------------
def _padded_bytes(shape, dtype):
    s = list(shape)
    if s:
        s[-1] = -(-s[-1] // 128) * 128
    if len(s) >= 2:
        s[-2] = -(-s[-2] // 8) * 8
    return int(np.prod(s)) * np.dtype(dtype).itemsize


@jax.jit
def ner_bilstm_crf_forward(x_ids, mask, params):
    """x_ids: (B, T) int32; mask: (B, T) {0,1}. Returns (B, T) int32 tags."""
    B, T = x_ids.shape
    gate_table = params["gate_table"]                # (V, 8H) f32, bias folded
    H8 = gate_table.shape[1]
    H = params["whh_cat"].shape[0] // 2
    K = params["crf_trans"].shape[0]

    B_pad = -(-B // _B_BLK) * _B_BLK

    ids_p = jnp.zeros((B_pad, T), jnp.int32).at[:B].set(x_ids.astype(jnp.int32))
    mask_p = jnp.zeros((B_pad, T), jnp.float32).at[:B].set(
        mask.astype(jnp.float32))

    # Embedding gather directly into pre-projected gate rows, time-major.
    # Dropout after the LSTM is a no-op at inference.
    gx = jnp.take(gate_table, ids_p.T, axis=0)                # (T, B_pad, 8H)
    # Time-swizzle the backward-direction columns so the merged fwd/bwd
    # recurrence reads a single gate row per step.
    col_is_fwd = ((jnp.arange(H8) // H) % 2) == 0
    gx = jnp.where(col_is_fwd[None, None, :], gx, gx[::-1]).astype(jnp.bfloat16)
    mask_tm = mask_p.T[:, :, None]                            # (T, B_pad, 1)

    grid = (B_pad // _B_BLK,)

    # VMEM budget from the actual footprint (double-buffered blocks + scratch).
    in_blocks = [
        ((T, _B_BLK, H8), jnp.bfloat16), ((T, _B_BLK, 1), jnp.float32),
        (params["whh_cat"].shape, jnp.bfloat16),
        (params["wout_f"].shape, jnp.bfloat16),
        (params["wout_b"].shape, jnp.bfloat16),
        (params["bout"].shape, jnp.float32),
        (params["crf_start"].shape, jnp.float32),
        (params["crf_end"].shape, jnp.float32),
        (params["crf_trans"].shape, jnp.float32),
    ]
    scratch = [
        ((T * _B_BLK, H), jnp.float32), ((T * _B_BLK, H), jnp.float32),
        ((T * _B_BLK, K), jnp.float32), ((T * _B_BLK, K), jnp.int32),
    ]
    est = 2 * sum(_padded_bytes(s, d) for s, d in in_blocks)
    est += 2 * _padded_bytes((_B_BLK, T), jnp.int32)
    est += sum(_padded_bytes(s, d) for s, d in scratch)
    vmem_limit = int(min(96 * 2**20, max(4 * 2**20, 2 * est)))

    def _w_spec(shape):
        return pl.BlockSpec(shape, lambda j: (0, 0))

    tags_pad = pl.pallas_call(
        fused_ner_kernel,
        out_shape=jax.ShapeDtypeStruct((B_pad, T), jnp.int32),
        grid=grid,
        in_specs=[
            pl.BlockSpec((T, _B_BLK, H8), lambda j: (0, j, 0)),
            pl.BlockSpec((T, _B_BLK, 1), lambda j: (0, j, 0)),
            _w_spec(params["whh_cat"].shape),
            _w_spec(params["wout_f"].shape),
            _w_spec(params["wout_b"].shape),
            _w_spec(params["bout"].shape),
            _w_spec(params["crf_start"].shape),
            _w_spec(params["crf_end"].shape),
            _w_spec(params["crf_trans"].shape),
        ],
        out_specs=pl.BlockSpec((_B_BLK, T), lambda j: (j, 0)),
        scratch_shapes=[pltpu.VMEM(s, d) for s, d in scratch],
        compiler_params=pltpu.CompilerParams(
            dimension_semantics=("parallel",),
            vmem_limit_bytes=vmem_limit),
    )(gx, mask_tm, params["whh_cat"], params["wout_f"], params["wout_b"],
      params["bout"], params["crf_start"], params["crf_end"],
      params["crf_trans"])

    return tags_pad[:B]


# -----------------------------------------------------------------------------
# Deterministic parameters (PyTorch layout -> fused / pre-folded kernel layout)
# -----------------------------------------------------------------------------
def make_params(key, vocab_size, embedding_dim, hidden_dim, tag_len):
    H, E = hidden_dim // 2, embedding_dim
    ks = iter(jax.random.split(key, 16))
    n = lambda s: (0.1 * jax.random.normal(next(ks), s)).astype(jnp.float32)

    embed = n((vocab_size, E))
    # PyTorch nn.LSTM params: weight_ih (4H,E), weight_hh (4H,H), biases (4H,)
    # with gate order i, f, g, o, for forward ("f") and reverse ("b").
    w_ih = {d: n((4 * H, E)) for d in ("f", "b")}
    w_hh = {d: n((4 * H, H)) for d in ("f", "b")}
    b_ih = {d: n((4 * H,)) for d in ("f", "b")}
    b_hh = {d: n((4 * H,)) for d in ("f", "b")}

    torch_gate = {"i": 0, "f": 1, "g": 2, "o": 3}
    col_order = [("i", "f"), ("i", "b"), ("f", "f"), ("f", "b"),
                 ("o", "f"), ("o", "b"), ("g", "f"), ("g", "b")]

    wih_cols, whh_cols, b_cols = [], [], []
    for gate, d in col_order:
        sl = slice(torch_gate[gate] * H, (torch_gate[gate] + 1) * H)
        wih_cols.append(w_ih[d][sl].T)                          # (E, H)
        blk = jnp.zeros((2 * H, H), jnp.float32)
        row0 = 0 if d == "f" else H
        whh_cols.append(blk.at[row0:row0 + H].set(w_hh[d][sl].T))
        b_cols.append((b_ih[d][sl] + b_hh[d][sl])[None, :])
    wih_cat = jnp.concatenate(wih_cols, axis=1)                 # (E, 8H)
    whh_cat = jnp.concatenate(whh_cols, axis=1)                 # (2H, 8H)
    b_cat = jnp.concatenate(b_cols, axis=1)                     # (1, 8H)

    # Pre-fold embedding @ W_ih + b into a per-token gate table.
    gate_table = embed @ wih_cat + b_cat                        # (V, 8H) f32

    # Linear out: PyTorch weight (K, 2H) applied to [h_fwd | h_bwd].
    w_out = n((tag_len, 2 * H))
    b_out = n((tag_len,))

    return {
        "gate_table": gate_table,
        "whh_cat": whh_cat.astype(jnp.bfloat16),
        "wout_f": w_out[:, :H].T.astype(jnp.bfloat16),
        "wout_b": w_out[:, H:].T.astype(jnp.bfloat16),
        "bout": b_out[None, :],
        "crf_start": n((1, tag_len)),
        "crf_end": n((1, tag_len)),
        "crf_trans": n((tag_len, tag_len)),
    }


if __name__ == "__main__":
    embedding_dim, hidden_dim, dropout_p = 16, 32, 0.5   # dropout: eval no-op
    word2id = {f"w{i}": i for i in range(50)}            # vocab_size = 51
    tag2id = {"O": 0, "B-PER": 1, "I-PER": 2, "B-LOC": 3, "I-LOC": 4}
    vocab_size = len(word2id) + 1
    tag_len = len(tag2id)

    B, T = 2, 8
    key = jax.random.PRNGKey(0)
    k_param, k_x = jax.random.split(key)
    params = make_params(k_param, vocab_size, embedding_dim, hidden_dim, tag_len)

    x_ids = jax.random.randint(k_x, (B, T), 0, vocab_size, dtype=jnp.int32)
    mask = jnp.array([[1] * T, [1] * (T - 2) + [0] * 2], dtype=jnp.float32)

    tags = ner_bilstm_crf_forward(x_ids, mask, params)
    jax.block_until_ready(tags)
    assert tags.shape == (B, T) and tags.dtype == jnp.int32
    assert bool(jnp.all((tags >= 0) & (tags < tag_len)))
    print("KERNEL_OK")
</pallas_src>

<mosaic_0001>
module attributes {stable_mosaic.version = 11 : i64} {
  func.func @fused_ner_kernel(%arg0: i32, %arg1: memref<8x8x128xbf16, #tpu.memory_space<vmem>>, %arg2: memref<8x8x1xf32, #tpu.memory_space<vmem>>, %arg3: memref<32x128xbf16, #tpu.memory_space<vmem>>, %arg4: memref<16x5xbf16, #tpu.memory_space<vmem>>, %arg5: memref<16x5xbf16, #tpu.memory_space<vmem>>, %arg6: memref<1x5xf32, #tpu.memory_space<vmem>>, %arg7: memref<1x5xf32, #tpu.memory_space<vmem>>, %arg8: memref<1x5xf32, #tpu.memory_space<vmem>>, %arg9: memref<5x5xf32, #tpu.memory_space<vmem>>, %arg10: memref<8x8xi32, #tpu.memory_space<vmem>>, %arg11: memref<64x16xf32, #tpu.memory_space<vmem>>, %arg12: memref<64x16xf32, #tpu.memory_space<vmem>>, %arg13: memref<64x5xf32, #tpu.memory_space<vmem>>, %arg14: memref<64x5xi32, #tpu.memory_space<vmem>>) attributes {dimension_semantics = [#tpu.dimension_semantics<parallel>], iteration_bounds = array<i64: 1>, scalar_prefetch = 0 : i64, scratch_operands = 4 : i64, tpu.core_type = #tpu.core_type<tc>, window_params = [{transform_indices = @transform_0, window_bounds = array<i64: 8, 8, 128>}, {transform_indices = @transform_1, window_bounds = array<i64: 8, 8, 1>}, {pipeline_mode = #tpu.pipeline_mode<synchronous>, transform_indices = @transform_2, window_bounds = array<i64: 32, 128>}, {pipeline_mode = #tpu.pipeline_mode<synchronous>, transform_indices = @transform_3, window_bounds = array<i64: 16, 5>}, {pipeline_mode = #tpu.pipeline_mode<synchronous>, transform_indices = @transform_4, window_bounds = array<i64: 16, 5>}, {pipeline_mode = #tpu.pipeline_mode<synchronous>, transform_indices = @transform_5, window_bounds = array<i64: 1, 5>}, {pipeline_mode = #tpu.pipeline_mode<synchronous>, transform_indices = @transform_6, window_bounds = array<i64: 1, 5>}, {pipeline_mode = #tpu.pipeline_mode<synchronous>, transform_indices = @transform_7, window_bounds = array<i64: 1, 5>}, {pipeline_mode = #tpu.pipeline_mode<synchronous>, transform_indices = @transform_8, window_bounds = array<i64: 5, 5>}, {transform_indices = @transform_9, window_bounds = array<i64: 8, 8>}]} {
    %c0 = arith.constant 0 : index
    %c0_0 = arith.constant 0 : index
    %0 = vector.load %arg3[%c0, %c0_0] : memref<32x128xbf16, #tpu.memory_space<vmem>>, vector<32x128xbf16>
    %cst = arith.constant 0.000000e+00 : f32
    %1 = vector.broadcast %cst : f32 to vector<8x32xf32>
    %c0_i32 = arith.constant 0 : i32
    %2 = arith.index_cast %c0_i32 : i32 to index
    %c0_1 = arith.constant 0 : index
    %c0_2 = arith.constant 0 : index
    %3 = vector.load %arg1[%2, %c0_1, %c0_2] : memref<8x8x128xbf16, #tpu.memory_space<vmem>>, vector<1x8x128xbf16>
    %4 = vector.shape_cast %3 : vector<1x8x128xbf16> to vector<8x128xbf16>
    %5 = arith.extf %4 : vector<8x128xbf16> to vector<8x128xf32>
    %6 = arith.truncf %1 : vector<8x32xf32> to vector<8x32xbf16>
    %cst_3 = arith.constant dense<0.000000e+00> : vector<8x128xf32>
    %7 = tpu.matmul %6, %0, %cst_3 {dimension_numbers = #tpu.dot_dimension_numbers<[1], [0], [0], [1], [0, 0, 1, 1], [], []>} : vector<8x32xbf16>, vector<32x128xbf16>, vector<8x128xf32> -> vector<8x128xf32>
    %8 = arith.addf %5, %7 : vector<8x128xf32>
    %9 = vector.extract_strided_slice %8 {offsets = [0, 0], sizes = [8, 96], strides = [1, 1]} : vector<8x128xf32> to vector<8x96xf32>
    %10 = arith.negf %9 : vector<8x96xf32>
    %11 = math.exp %10 : vector<8x96xf32>
    %cst_4 = arith.constant 1.000000e+00 : f32
    %12 = vector.broadcast %cst_4 : f32 to vector<8x96xf32>
    %13 = arith.addf %12, %11 : vector<8x96xf32>
    %14 = arith.divf %12, %13 : vector<8x96xf32>
    %15 = vector.extract_strided_slice %8 {offsets = [0, 96], sizes = [8, 32], strides = [1, 1]} : vector<8x128xf32> to vector<8x32xf32>
    %16 = math.tanh %15 : vector<8x32xf32>
    %17 = vector.extract_strided_slice %14 {offsets = [0, 32], sizes = [8, 32], strides = [1, 1]} : vector<8x96xf32> to vector<8x32xf32>
    %18 = arith.mulf %17, %1 : vector<8x32xf32>
    %19 = vector.extract_strided_slice %14 {offsets = [0, 0], sizes = [8, 32], strides = [1, 1]} : vector<8x96xf32> to vector<8x32xf32>
    %20 = arith.mulf %19, %16 : vector<8x32xf32>
    %21 = arith.addf %18, %20 : vector<8x32xf32>
    %22 = vector.extract_strided_slice %14 {offsets = [0, 64], sizes = [8, 32], strides = [1, 1]} : vector<8x96xf32> to vector<8x32xf32>
    %23 = math.tanh %21 : vector<8x32xf32>
    %24 = arith.mulf %22, %23 : vector<8x32xf32>
    %c8_i32 = arith.constant 8 : i32
    %25 = arith.muli %c0_i32, %c8_i32 : i32
    %26 = tpu.assume_multiple %25, 8 : i32
    %c7_i32 = arith.constant 7 : i32
    %27 = arith.subi %c7_i32, %c0_i32 : i32
    %c8_i32_5 = arith.constant 8 : i32
    %28 = arith.muli %27, %c8_i32_5 : i32
    %29 = tpu.assume_multiple %28, 8 : i32
    %30 = vector.extract_strided_slice %24 {offsets = [0, 0], sizes = [8, 16], strides = [1, 1]} : vector<8x32xf32> to vector<8x16xf32>
    %31 = arith.index_cast %26 : i32 to index
    %c0_6 = arith.constant 0 : index
    %32 = vector.load %arg11[%31, %c0_6] : memref<64x16xf32, #tpu.memory_space<vmem>>, vector<8x16xf32>
    tpu.vector_store %arg11[%31, %c0_6], %30 {strides = array<i32>} : memref<64x16xf32, #tpu.memory_space<vmem>>, vector<8x16xf32>,
    %33 = vector.extract_strided_slice %24 {offsets = [0, 16], sizes = [8, 16], strides = [1, 1]} : vector<8x32xf32> to vector<8x16xf32>
    %34 = arith.index_cast %29 : i32 to index
    %c0_7 = arith.constant 0 : index
    %35 = vector.load %arg12[%34, %c0_7] : memref<64x16xf32, #tpu.memory_space<vmem>>, vector<8x16xf32>
    tpu.vector_store %arg12[%34, %c0_7], %33 {strides = array<i32>} : memref<64x16xf32, #tpu.memory_space<vmem>>, vector<8x16xf32>,
    %c1_i32 = arith.constant 1 : i32
    %36 = arith.index_cast %c1_i32 : i32 to index
    %c0_8 = arith.constant 0 : index
    %c0_9 = arith.constant 0 : index
    %37 = vector.load %arg1[%36, %c0_8, %c0_9] : memref<8x8x128xbf16, #tpu.memory_space<vmem>>, vector<1x8x128xbf16>
    %38 = vector.shape_cast %37 : vector<1x8x128xbf16> to vector<8x128xbf16>
    %39 = arith.extf %38 : vector<8x128xbf16> to vector<8x128xf32>
    %40 = arith.truncf %24 : vector<8x32xf32> to vector<8x32xbf16>
    %cst_10 = arith.constant dense<0.000000e+00> : vector<8x128xf32>
    %41 = tpu.matmul %40, %0, %cst_10 {dimension_numbers = #tpu.dot_dimension_numbers<[1], [0], [0], [1], [0, 0, 1, 1], [], []>} : vector<8x32xbf16>, vector<32x128xbf16>, vector<8x128xf32> -> vector<8x128xf32>
    %42 = arith.addf %39, %41 : vector<8x128xf32>
    %43 = vector.extract_strided_slice %42 {offsets = [0, 0], sizes = [8, 96], strides = [1, 1]} : vector<8x128xf32> to vector<8x96xf32>
    %44 = arith.negf %43 : vector<8x96xf32>
    %45 = math.exp %44 : vector<8x96xf32>
    %cst_11 = arith.constant 1.000000e+00 : f32
    %46 = vector.broadcast %cst_11 : f32 to vector<8x96xf32>
    %47 = arith.addf %46, %45 : vector<8x96xf32>
    %48 = arith.divf %46, %47 : vector<8x96xf32>
    %49 = vector.extract_strided_slice %42 {offsets = [0, 96], sizes = [8, 32], strides = [1, 1]} : vector<8x128xf32> to vector<8x32xf32>
    %50 = math.tanh %49 : vector<8x32xf32>
    %51 = vector.extract_strided_slice %48 {offsets = [0, 32], sizes = [8, 32], strides = [1, 1]} : vector<8x96xf32> to vector<8x32xf32>
    %52 = arith.mulf %51, %21 : vector<8x32xf32>
    %53 = vector.extract_strided_slice %48 {offsets = [0, 0], sizes = [8, 32], strides = [1, 1]} : vector<8x96xf32> to vector<8x32xf32>
    %54 = arith.mulf %53, %50 : vector<8x32xf32>
    %55 = arith.addf %52, %54 : vector<8x32xf32>
    %56 = vector.extract_strided_slice %48 {offsets = [0, 64], sizes = [8, 32], strides = [1, 1]} : vector<8x96xf32> to vector<8x32xf32>
    %57 = math.tanh %55 : vector<8x32xf32>
    %58 = arith.mulf %56, %57 : vector<8x32xf32>
    %c8_i32_12 = arith.constant 8 : i32
    %59 = arith.muli %c1_i32, %c8_i32_12 : i32
    %60 = tpu.assume_multiple %59, 8 : i32
    %c7_i32_13 = arith.constant 7 : i32
    %61 = arith.subi %c7_i32_13, %c1_i32 : i32
    %c8_i32_14 = arith.constant 8 : i32
    %62 = arith.muli %61, %c8_i32_14 : i32
    %63 = tpu.assume_multiple %62, 8 : i32
    %64 = vector.extract_strided_slice %58 {offsets = [0, 0], sizes = [8, 16], strides = [1, 1]} : vector<8x32xf32> to vector<8x16xf32>
    %65 = arith.index_cast %60 : i32 to index
    %c0_15 = arith.constant 0 : index
    %66 = vector.load %arg11[%65, %c0_15] : memref<64x16xf32, #tpu.memory_space<vmem>>, vector<8x16xf32>
    tpu.vector_store %arg11[%65, %c0_15], %64 {strides = array<i32>} : memref<64x16xf32, #tpu.memory_space<vmem>>, vector<8x16xf32>,
    %67 = vector.extract_strided_slice %58 {offsets = [0, 16], sizes = [8, 16], strides = [1, 1]} : vector<8x32xf32> to vector<8x16xf32>
    %68 = arith.index_cast %63 : i32 to index
    %c0_16 = arith.constant 0 : index
    %69 = vector.load %arg12[%68, %c0_16] : memref<64x16xf32, #tpu.memory_space<vmem>>, vector<8x16xf32>
    tpu.vector_store %arg12[%68, %c0_16], %67 {strides = array<i32>} : memref<64x16xf32, #tpu.memory_space<vmem>>, vector<8x16xf32>,
    %c2_i32 = arith.constant 2 : i32
    %70 = arith.index_cast %c2_i32 : i32 to index
    %c0_17 = arith.constant 0 : index
    %c0_18 = arith.constant 0 : index
    %71 = vector.load %arg1[%70, %c0_17, %c0_18] : memref<8x8x128xbf16, #tpu.memory_space<vmem>>, vector<1x8x128xbf16>
    %72 = vector.shape_cast %71 : vector<1x8x128xbf16> to vector<8x128xbf16>
    %73 = arith.extf %72 : vector<8x128xbf16> to vector<8x128xf32>
    %74 = arith.truncf %58 : vector<8x32xf32> to vector<8x32xbf16>
    %cst_19 = arith.constant dense<0.000000e+00> : vector<8x128xf32>
    %75 = tpu.matmul %74, %0, %cst_19 {dimension_numbers = #tpu.dot_dimension_numbers<[1], [0], [0], [1], [0, 0, 1, 1], [], []>} : vector<8x32xbf16>, vector<32x128xbf16>, vector<8x128xf32> -> vector<8x128xf32>
    %76 = arith.addf %73, %75 : vector<8x128xf32>
    %77 = vector.extract_strided_slice %76 {offsets = [0, 0], sizes = [8, 96], strides = [1, 1]} : vector<8x128xf32> to vector<8x96xf32>
    %78 = arith.negf %77 : vector<8x96xf32>
    %79 = math.exp %78 : vector<8x96xf32>
    %cst_20 = arith.constant 1.000000e+00 : f32
    %80 = vector.broadcast %cst_20 : f32 to vector<8x96xf32>
    %81 = arith.addf %80, %79 : vector<8x96xf32>
    %82 = arith.divf %80, %81 : vector<8x96xf32>
    %83 = vector.extract_strided_slice %76 {offsets = [0, 96], sizes = [8, 32], strides = [1, 1]} : vector<8x128xf32> to vector<8x32xf32>
    %84 = math.tanh %83 : vector<8x32xf32>
    %85 = vector.extract_strided_slice %82 {offsets = [0, 32], sizes = [8, 32], strides = [1, 1]} : vector<8x96xf32> to vector<8x32xf32>
    %86 = arith.mulf %85, %55 : vector<8x32xf32>
    %87 = vector.extract_strided_slice %82 {offsets = [0, 0], sizes = [8, 32], strides = [1, 1]} : vector<8x96xf32> to vector<8x32xf32>
    %88 = arith.mulf %87, %84 : vector<8x32xf32>
    %89 = arith.addf %86, %88 : vector<8x32xf32>
    %90 = vector.extract_strided_slice %82 {offsets = [0, 64], sizes = [8, 32], strides = [1, 1]} : vector<8x96xf32> to vector<8x32xf32>
    %91 = math.tanh %89 : vector<8x32xf32>
    %92 = arith.mulf %90, %91 : vector<8x32xf32>
    %c8_i32_21 = arith.constant 8 : i32
    %93 = arith.muli %c2_i32, %c8_i32_21 : i32
    %94 = tpu.assume_multiple %93, 8 : i32
    %c7_i32_22 = arith.constant 7 : i32
    %95 = arith.subi %c7_i32_22, %c2_i32 : i32
    %c8_i32_23 = arith.constant 8 : i32
    %96 = arith.muli %95, %c8_i32_23 : i32
    %97 = tpu.assume_multiple %96, 8 : i32
    %98 = vector.extract_strided_slice %92 {offsets = [0, 0], sizes = [8, 16], strides = [1, 1]} : vector<8x32xf32> to vector<8x16xf32>
    %99 = arith.index_cast %94 : i32 to index
    %c0_24 = arith.constant 0 : index
    %100 = vector.load %arg11[%99, %c0_24] : memref<64x16xf32, #tpu.memory_space<vmem>>, vector<8x16xf32>
    tpu.vector_store %arg11[%99, %c0_24], %98 {strides = array<i32>} : memref<64x16xf32, #tpu.memory_space<vmem>>, vector<8x16xf32>,
    %101 = vector.extract_strided_slice %92 {offsets = [0, 16], sizes = [8, 16], strides = [1, 1]} : vector<8x32xf32> to vector<8x16xf32>
    %102 = arith.index_cast %97 : i32 to index
    %c0_25 = arith.constant 0 : index
    %103 = vector.load %arg12[%102, %c0_25] : memref<64x16xf32, #tpu.memory_space<vmem>>, vector<8x16xf32>
    tpu.vector_store %arg12[%102, %c0_25], %101 {strides = array<i32>} : memref<64x16xf32, #tpu.memory_space<vmem>>, vector<8x16xf32>,
    %c3_i32 = arith.constant 3 : i32
    %104 = arith.index_cast %c3_i32 : i32 to index
    %c0_26 = arith.constant 0 : index
    %c0_27 = arith.constant 0 : index
    %105 = vector.load %arg1[%104, %c0_26, %c0_27] : memref<8x8x128xbf16, #tpu.memory_space<vmem>>, vector<1x8x128xbf16>
    %106 = vector.shape_cast %105 : vector<1x8x128xbf16> to vector<8x128xbf16>
    %107 = arith.extf %106 : vector<8x128xbf16> to vector<8x128xf32>
    %108 = arith.truncf %92 : vector<8x32xf32> to vector<8x32xbf16>
    %cst_28 = arith.constant dense<0.000000e+00> : vector<8x128xf32>
    %109 = tpu.matmul %108, %0, %cst_28 {dimension_numbers = #tpu.dot_dimension_numbers<[1], [0], [0], [1], [0, 0, 1, 1], [], []>} : vector<8x32xbf16>, vector<32x128xbf16>, vector<8x128xf32> -> vector<8x128xf32>
    %110 = arith.addf %107, %109 : vector<8x128xf32>
    %111 = vector.extract_strided_slice %110 {offsets = [0, 0], sizes = [8, 96], strides = [1, 1]} : vector<8x128xf32> to vector<8x96xf32>
    %112 = arith.negf %111 : vector<8x96xf32>
    %113 = math.exp %112 : vector<8x96xf32>
    %cst_29 = arith.constant 1.000000e+00 : f32
    %114 = vector.broadcast %cst_29 : f32 to vector<8x96xf32>
    %115 = arith.addf %114, %113 : vector<8x96xf32>
    %116 = arith.divf %114, %115 : vector<8x96xf32>
    %117 = vector.extract_strided_slice %110 {offsets = [0, 96], sizes = [8, 32], strides = [1, 1]} : vector<8x128xf32> to vector<8x32xf32>
    %118 = math.tanh %117 : vector<8x32xf32>
    %119 = vector.extract_strided_slice %116 {offsets = [0, 32], sizes = [8, 32], strides = [1, 1]} : vector<8x96xf32> to vector<8x32xf32>
    %120 = arith.mulf %119, %89 : vector<8x32xf32>
    %121 = vector.extract_strided_slice %116 {offsets = [0, 0], sizes = [8, 32], strides = [1, 1]} : vector<8x96xf32> to vector<8x32xf32>
    %122 = arith.mulf %121, %118 : vector<8x32xf32>
    %123 = arith.addf %120, %122 : vector<8x32xf32>
    %124 = vector.extract_strided_slice %116 {offsets = [0, 64], sizes = [8, 32], strides = [1, 1]} : vector<8x96xf32> to vector<8x32xf32>
    %125 = math.tanh %123 : vector<8x32xf32>
    %126 = arith.mulf %124, %125 : vector<8x32xf32>
    %c8_i32_30 = arith.constant 8 : i32
    %127 = arith.muli %c3_i32, %c8_i32_30 : i32
    %128 = tpu.assume_multiple %127, 8 : i32
    %c7_i32_31 = arith.constant 7 : i32
    %129 = arith.subi %c7_i32_31, %c3_i32 : i32
    %c8_i32_32 = arith.constant 8 : i32
    %130 = arith.muli %129, %c8_i32_32 : i32
    %131 = tpu.assume_multiple %130, 8 : i32
    %132 = vector.extract_strided_slice %126 {offsets = [0, 0], sizes = [8, 16], strides = [1, 1]} : vector<8x32xf32> to vector<8x16xf32>
    %133 = arith.index_cast %128 : i32 to index
    %c0_33 = arith.constant 0 : index
    %134 = vector.load %arg11[%133, %c0_33] : memref<64x16xf32, #tpu.memory_space<vmem>>, vector<8x16xf32>
    tpu.vector_store %arg11[%133, %c0_33], %132 {strides = array<i32>} : memref<64x16xf32, #tpu.memory_space<vmem>>, vector<8x16xf32>,
    %135 = vector.extract_strided_slice %126 {offsets = [0, 16], sizes = [8, 16], strides = [1, 1]} : vector<8x32xf32> to vector<8x16xf32>
    %136 = arith.index_cast %131 : i32 to index
    %c0_34 = arith.constant 0 : index
    %137 = vector.load %arg12[%136, %c0_34] : memref<64x16xf32, #tpu.memory_space<vmem>>, vector<8x16xf32>
    tpu.vector_store %arg12[%136, %c0_34], %135 {strides = array<i32>} : memref<64x16xf32, #tpu.memory_space<vmem>>, vector<8x16xf32>,
    %c4_i32 = arith.constant 4 : i32
    %138 = arith.index_cast %c4_i32 : i32 to index
    %c0_35 = arith.constant 0 : index
    %c0_36 = arith.constant 0 : index
    %139 = vector.load %arg1[%138, %c0_35, %c0_36] : memref<8x8x128xbf16, #tpu.memory_space<vmem>>, vector<1x8x128xbf16>
    %140 = vector.shape_cast %139 : vector<1x8x128xbf16> to vector<8x128xbf16>
    %141 = arith.extf %140 : vector<8x128xbf16> to vector<8x128xf32>
    %142 = arith.truncf %126 : vector<8x32xf32> to vector<8x32xbf16>
    %cst_37 = arith.constant dense<0.000000e+00> : vector<8x128xf32>
    %143 = tpu.matmul %142, %0, %cst_37 {dimension_numbers = #tpu.dot_dimension_numbers<[1], [0], [0], [1], [0, 0, 1, 1], [], []>} : vector<8x32xbf16>, vector<32x128xbf16>, vector<8x128xf32> -> vector<8x128xf32>
    %144 = arith.addf %141, %143 : vector<8x128xf32>
    %145 = vector.extract_strided_slice %144 {offsets = [0, 0], sizes = [8, 96], strides = [1, 1]} : vector<8x128xf32> to vector<8x96xf32>
    %146 = arith.negf %145 : vector<8x96xf32>
    %147 = math.exp %146 : vector<8x96xf32>
    %cst_38 = arith.constant 1.000000e+00 : f32
    %148 = vector.broadcast %cst_38 : f32 to vector<8x96xf32>
    %149 = arith.addf %148, %147 : vector<8x96xf32>
    %150 = arith.divf %148, %149 : vector<8x96xf32>
    %151 = vector.extract_strided_slice %144 {offsets = [0, 96], sizes = [8, 32], strides = [1, 1]} : vector<8x128xf32> to vector<8x32xf32>
    %152 = math.tanh %151 : vector<8x32xf32>
    %153 = vector.extract_strided_slice %150 {offsets = [0, 32], sizes = [8, 32], strides = [1, 1]} : vector<8x96xf32> to vector<8x32xf32>
    %154 = arith.mulf %153, %123 : vector<8x32xf32>
    %155 = vector.extract_strided_slice %150 {offsets = [0, 0], sizes = [8, 32], strides = [1, 1]} : vector<8x96xf32> to vector<8x32xf32>
    %156 = arith.mulf %155, %152 : vector<8x32xf32>
    %157 = arith.addf %154, %156 : vector<8x32xf32>
    %158 = vector.extract_strided_slice %150 {offsets = [0, 64], sizes = [8, 32], strides = [1, 1]} : vector<8x96xf32> to vector<8x32xf32>
    %159 = math.tanh %157 : vector<8x32xf32>
    %160 = arith.mulf %158, %159 : vector<8x32xf32>
    %c8_i32_39 = arith.constant 8 : i32
    %161 = arith.muli %c4_i32, %c8_i32_39 : i32
    %162 = tpu.assume_multiple %161, 8 : i32
    %c7_i32_40 = arith.constant 7 : i32
    %163 = arith.subi %c7_i32_40, %c4_i32 : i32
    %c8_i32_41 = arith.constant 8 : i32
    %164 = arith.muli %163, %c8_i32_41 : i32
    %165 = tpu.assume_multiple %164, 8 : i32
    %166 = vector.extract_strided_slice %160 {offsets = [0, 0], sizes = [8, 16], strides = [1, 1]} : vector<8x32xf32> to vector<8x16xf32>
    %167 = arith.index_cast %162 : i32 to index
    %c0_42 = arith.constant 0 : index
    %168 = vector.load %arg11[%167, %c0_42] : memref<64x16xf32, #tpu.memory_space<vmem>>, vector<8x16xf32>
    tpu.vector_store %arg11[%167, %c0_42], %166 {strides = array<i32>} : memref<64x16xf32, #tpu.memory_space<vmem>>, vector<8x16xf32>,
    %169 = vector.extract_strided_slice %160 {offsets = [0, 16], sizes = [8, 16], strides = [1, 1]} : vector<8x32xf32> to vector<8x16xf32>
    %170 = arith.index_cast %165 : i32 to index
    %c0_43 = arith.constant 0 : index
    %171 = vector.load %arg12[%170, %c0_43] : memref<64x16xf32, #tpu.memory_space<vmem>>, vector<8x16xf32>
    tpu.vector_store %arg12[%170, %c0_43], %169 {strides = array<i32>} : memref<64x16xf32, #tpu.memory_space<vmem>>, vector<8x16xf32>,
    %c5_i32 = arith.constant 5 : i32
    %172 = arith.index_cast %c5_i32 : i32 to index
    %c0_44 = arith.constant 0 : index
    %c0_45 = arith.constant 0 : index
    %173 = vector.load %arg1[%172, %c0_44, %c0_45] : memref<8x8x128xbf16, #tpu.memory_space<vmem>>, vector<1x8x128xbf16>
    %174 = vector.shape_cast %173 : vector<1x8x128xbf16> to vector<8x128xbf16>
    %175 = arith.extf %174 : vector<8x128xbf16> to vector<8x128xf32>
    %176 = arith.truncf %160 : vector<8x32xf32> to vector<8x32xbf16>
    %cst_46 = arith.constant dense<0.000000e+00> : vector<8x128xf32>
    %177 = tpu.matmul %176, %0, %cst_46 {dimension_numbers = #tpu.dot_dimension_numbers<[1], [0], [0], [1], [0, 0, 1, 1], [], []>} : vector<8x32xbf16>, vector<32x128xbf16>, vector<8x128xf32> -> vector<8x128xf32>
    %178 = arith.addf %175, %177 : vector<8x128xf32>
    %179 = vector.extract_strided_slice %178 {offsets = [0, 0], sizes = [8, 96], strides = [1, 1]} : vector<8x128xf32> to vector<8x96xf32>
    %180 = arith.negf %179 : vector<8x96xf32>
    %181 = math.exp %180 : vector<8x96xf32>
    %cst_47 = arith.constant 1.000000e+00 : f32
    %182 = vector.broadcast %cst_47 : f32 to vector<8x96xf32>
    %183 = arith.addf %182, %181 : vector<8x96xf32>
    %184 = arith.divf %182, %183 : vector<8x96xf32>
    %185 = vector.extract_strided_slice %178 {offsets = [0, 96], sizes = [8, 32], strides = [1, 1]} : vector<8x128xf32> to vector<8x32xf32>
    %186 = math.tanh %185 : vector<8x32xf32>
    %187 = vector.extract_strided_slice %184 {offsets = [0, 32], sizes = [8, 32], strides = [1, 1]} : vector<8x96xf32> to vector<8x32xf32>
    %188 = arith.mulf %187, %157 : vector<8x32xf32>
    %189 = vector.extract_strided_slice %184 {offsets = [0, 0], sizes = [8, 32], strides = [1, 1]} : vector<8x96xf32> to vector<8x32xf32>
    %190 = arith.mulf %189, %186 : vector<8x32xf32>
    %191 = arith.addf %188, %190 : vector<8x32xf32>
    %192 = vector.extract_strided_slice %184 {offsets = [0, 64], sizes = [8, 32], strides = [1, 1]} : vector<8x96xf32> to vector<8x32xf32>
    %193 = math.tanh %191 : vector<8x32xf32>
    %194 = arith.mulf %192, %193 : vector<8x32xf32>
    %c8_i32_48 = arith.constant 8 : i32
    %195 = arith.muli %c5_i32, %c8_i32_48 : i32
    %196 = tpu.assume_multiple %195, 8 : i32
    %c7_i32_49 = arith.constant 7 : i32
    %197 = arith.subi %c7_i32_49, %c5_i32 : i32
    %c8_i32_50 = arith.constant 8 : i32
    %198 = arith.muli %197, %c8_i32_50 : i32
    %199 = tpu.assume_multiple %198, 8 : i32
    %200 = vector.extract_strided_slice %194 {offsets = [0, 0], sizes = [8, 16], strides = [1, 1]} : vector<8x32xf32> to vector<8x16xf32>
    %201 = arith.index_cast %196 : i32 to index
    %c0_51 = arith.constant 0 : index
    %202 = vector.load %arg11[%201, %c0_51] : memref<64x16xf32, #tpu.memory_space<vmem>>, vector<8x16xf32>
    tpu.vector_store %arg11[%201, %c0_51], %200 {strides = array<i32>} : memref<64x16xf32, #tpu.memory_space<vmem>>, vector<8x16xf32>,
    %203 = vector.extract_strided_slice %194 {offsets = [0, 16], sizes = [8, 16], strides = [1, 1]} : vector<8x32xf32> to vector<8x16xf32>
    %204 = arith.index_cast %199 : i32 to index
    %c0_52 = arith.constant 0 : index
    %205 = vector.load %arg12[%204, %c0_52] : memref<64x16xf32, #tpu.memory_space<vmem>>, vector<8x16xf32>
    tpu.vector_store %arg12[%204, %c0_52], %203 {strides = array<i32>} : memref<64x16xf32, #tpu.memory_space<vmem>>, vector<8x16xf32>,
    %c6_i32 = arith.constant 6 : i32
    %206 = arith.index_cast %c6_i32 : i32 to index
    %c0_53 = arith.constant 0 : index
    %c0_54 = arith.constant 0 : index
    %207 = vector.load %arg1[%206, %c0_53, %c0_54] : memref<8x8x128xbf16, #tpu.memory_space<vmem>>, vector<1x8x128xbf16>
    %208 = vector.shape_cast %207 : vector<1x8x128xbf16> to vector<8x128xbf16>
    %209 = arith.extf %208 : vector<8x128xbf16> to vector<8x128xf32>
    %210 = arith.truncf %194 : vector<8x32xf32> to vector<8x32xbf16>
    %cst_55 = arith.constant dense<0.000000e+00> : vector<8x128xf32>
    %211 = tpu.matmul %210, %0, %cst_55 {dimension_numbers = #tpu.dot_dimension_numbers<[1], [0], [0], [1], [0, 0, 1, 1], [], []>} : vector<8x32xbf16>, vector<32x128xbf16>, vector<8x128xf32> -> vector<8x128xf32>
    %212 = arith.addf %209, %211 : vector<8x128xf32>
    %213 = vector.extract_strided_slice %212 {offsets = [0, 0], sizes = [8, 96], strides = [1, 1]} : vector<8x128xf32> to vector<8x96xf32>
    %214 = arith.negf %213 : vector<8x96xf32>
    %215 = math.exp %214 : vector<8x96xf32>
    %cst_56 = arith.constant 1.000000e+00 : f32
    %216 = vector.broadcast %cst_56 : f32 to vector<8x96xf32>
    %217 = arith.addf %216, %215 : vector<8x96xf32>
    %218 = arith.divf %216, %217 : vector<8x96xf32>
    %219 = vector.extract_strided_slice %212 {offsets = [0, 96], sizes = [8, 32], strides = [1, 1]} : vector<8x128xf32> to vector<8x32xf32>
    %220 = math.tanh %219 : vector<8x32xf32>
    %221 = vector.extract_strided_slice %218 {offsets = [0, 32], sizes = [8, 32], strides = [1, 1]} : vector<8x96xf32> to vector<8x32xf32>
    %222 = arith.mulf %221, %191 : vector<8x32xf32>
    %223 = vector.extract_strided_slice %218 {offsets = [0, 0], sizes = [8, 32], strides = [1, 1]} : vector<8x96xf32> to vector<8x32xf32>
    %224 = arith.mulf %223, %220 : vector<8x32xf32>
    %225 = arith.addf %222, %224 : vector<8x32xf32>
    %226 = vector.extract_strided_slice %218 {offsets = [0, 64], sizes = [8, 32], strides = [1, 1]} : vector<8x96xf32> to vector<8x32xf32>
    %227 = math.tanh %225 : vector<8x32xf32>
    %228 = arith.mulf %226, %227 : vector<8x32xf32>
    %c8_i32_57 = arith.constant 8 : i32
    %229 = arith.muli %c6_i32, %c8_i32_57 : i32
    %230 = tpu.assume_multiple %229, 8 : i32
    %c7_i32_58 = arith.constant 7 : i32
    %231 = arith.subi %c7_i32_58, %c6_i32 : i32
    %c8_i32_59 = arith.constant 8 : i32
    %232 = arith.muli %231, %c8_i32_59 : i32
    %233 = tpu.assume_multiple %232, 8 : i32
    %234 = vector.extract_strided_slice %228 {offsets = [0, 0], sizes = [8, 16], strides = [1, 1]} : vector<8x32xf32> to vector<8x16xf32>
    %235 = arith.index_cast %230 : i32 to index
    %c0_60 = arith.constant 0 : index
    %236 = vector.load %arg11[%235, %c0_60] : memref<64x16xf32, #tpu.memory_space<vmem>>, vector<8x16xf32>
    tpu.vector_store %arg11[%235, %c0_60], %234 {strides = array<i32>} : memref<64x16xf32, #tpu.memory_space<vmem>>, vector<8x16xf32>,
    %237 = vector.extract_strided_slice %228 {offsets = [0, 16], sizes = [8, 16], strides = [1, 1]} : vector<8x32xf32> to vector<8x16xf32>
    %238 = arith.index_cast %233 : i32 to index
    %c0_61 = arith.constant 0 : index
    %239 = vector.load %arg12[%238, %c0_61] : memref<64x16xf32, #tpu.memory_space<vmem>>, vector<8x16xf32>
    tpu.vector_store %arg12[%238, %c0_61], %237 {strides = array<i32>} : memref<64x16xf32, #tpu.memory_space<vmem>>, vector<8x16xf32>,
    %c7_i32_62 = arith.constant 7 : i32
    %240 = arith.index_cast %c7_i32_62 : i32 to index
    %c0_63 = arith.constant 0 : index
    %c0_64 = arith.constant 0 : index
    %241 = vector.load %arg1[%240, %c0_63, %c0_64] : memref<8x8x128xbf16, #tpu.memory_space<vmem>>, vector<1x8x128xbf16>
    %242 = vector.shape_cast %241 : vector<1x8x128xbf16> to vector<8x128xbf16>
    %243 = arith.extf %242 : vector<8x128xbf16> to vector<8x128xf32>
    %244 = arith.truncf %228 : vector<8x32xf32> to vector<8x32xbf16>
    %cst_65 = arith.constant dense<0.000000e+00> : vector<8x128xf32>
    %245 = tpu.matmul %244, %0, %cst_65 {dimension_numbers = #tpu.dot_dimension_numbers<[1], [0], [0], [1], [0, 0, 1, 1], [], []>} : vector<8x32xbf16>, vector<32x128xbf16>, vector<8x128xf32> -> vector<8x128xf32>
    %246 = arith.addf %243, %245 : vector<8x128xf32>
    %247 = vector.extract_strided_slice %246 {offsets = [0, 0], sizes = [8, 96], strides = [1, 1]} : vector<8x128xf32> to vector<8x96xf32>
    %248 = arith.negf %247 : vector<8x96xf32>
    %249 = math.exp %248 : vector<8x96xf32>
    %cst_66 = arith.constant 1.000000e+00 : f32
    %250 = vector.broadcast %cst_66 : f32 to vector<8x96xf32>
    %251 = arith.addf %250, %249 : vector<8x96xf32>
    %252 = arith.divf %250, %251 : vector<8x96xf32>
    %253 = vector.extract_strided_slice %246 {offsets = [0, 96], sizes = [8, 32], strides = [1, 1]} : vector<8x128xf32> to vector<8x32xf32>
    %254 = math.tanh %253 : vector<8x32xf32>
    %255 = vector.extract_strided_slice %252 {offsets = [0, 32], sizes = [8, 32], strides = [1, 1]} : vector<8x96xf32> to vector<8x32xf32>
    %256 = arith.mulf %255, %225 : vector<8x32xf32>
    %257 = vector.extract_strided_slice %252 {offsets = [0, 0], sizes = [8, 32], strides = [1, 1]} : vector<8x96xf32> to vector<8x32xf32>
    %258 = arith.mulf %257, %254 : vector<8x32xf32>
    %259 = arith.addf %256, %258 : vector<8x32xf32>
    %260 = vector.extract_strided_slice %252 {offsets = [0, 64], sizes = [8, 32], strides = [1, 1]} : vector<8x96xf32> to vector<8x32xf32>
    %261 = math.tanh %259 : vector<8x32xf32>
    %262 = arith.mulf %260, %261 : vector<8x32xf32>
    %c8_i32_67 = arith.constant 8 : i32
    %263 = arith.muli %c7_i32_62, %c8_i32_67 : i32
    %264 = tpu.assume_multiple %263, 8 : i32
    %c7_i32_68 = arith.constant 7 : i32
    %265 = arith.subi %c7_i32_68, %c7_i32_62 : i32
    %c8_i32_69 = arith.constant 8 : i32
    %266 = arith.muli %265, %c8_i32_69 : i32
    %267 = tpu.assume_multiple %266, 8 : i32
    %268 = vector.extract_strided_slice %262 {offsets = [0, 0], sizes = [8, 16], strides = [1, 1]} : vector<8x32xf32> to vector<8x16xf32>
    %269 = arith.index_cast %264 : i32 to index
    %c0_70 = arith.constant 0 : index
    %270 = vector.load %arg11[%269, %c0_70] : memref<64x16xf32, #tpu.memory_space<vmem>>, vector<8x16xf32>
    tpu.vector_store %arg11[%269, %c0_70], %268 {strides = array<i32>} : memref<64x16xf32, #tpu.memory_space<vmem>>, vector<8x16xf32>,
    %271 = vector.extract_strided_slice %262 {offsets = [0, 16], sizes = [8, 16], strides = [1, 1]} : vector<8x32xf32> to vector<8x16xf32>
    %272 = arith.index_cast %267 : i32 to index
    %c0_71 = arith.constant 0 : index
    %273 = vector.load %arg12[%272, %c0_71] : memref<64x16xf32, #tpu.memory_space<vmem>>, vector<8x16xf32>
    tpu.vector_store %arg12[%272, %c0_71], %271 {strides = array<i32>} : memref<64x16xf32, #tpu.memory_space<vmem>>, vector<8x16xf32>,
    %c8_i32_72 = arith.constant 8 : i32
    %c0_73 = arith.constant 0 : index
    %c0_74 = arith.constant 0 : index
    %274 = vector.load %arg11[%c0_73, %c0_74] : memref<64x16xf32, #tpu.memory_space<vmem>>, vector<64x16xf32>
    %275 = arith.truncf %274 : vector<64x16xf32> to vector<64x16xbf16>
    %c0_75 = arith.constant 0 : index
    %c0_76 = arith.constant 0 : index
    %276 = vector.load %arg4[%c0_75, %c0_76] : memref<16x5xbf16, #tpu.memory_space<vmem>>, vector<16x5xbf16>
    %cst_77 = arith.constant dense<0.000000e+00> : vector<64x5xf32>
    %277 = tpu.matmul %275, %276, %cst_77 {dimension_numbers = #tpu.dot_dimension_numbers<[1], [0], [0], [1], [0, 0, 1, 1], [], []>} : vector<64x16xbf16>, vector<16x5xbf16>, vector<64x5xf32> -> vector<64x5xf32>
    %c0_78 = arith.constant 0 : index
    %c0_79 = arith.constant 0 : index
    %278 = vector.load %arg12[%c0_78, %c0_79] : memref<64x16xf32, #tpu.memory_space<vmem>>, vector<64x16xf32>
    %279 = arith.truncf %278 : vector<64x16xf32> to vector<64x16xbf16>
    %c0_80 = arith.constant 0 : index
    %c0_81 = arith.constant 0 : index
    %280 = vector.load %arg5[%c0_80, %c0_81] : memref<16x5xbf16, #tpu.memory_space<vmem>>, vector<16x5xbf16>
    %cst_82 = arith.constant dense<0.000000e+00> : vector<64x5xf32>
    %281 = tpu.matmul %279, %280, %cst_82 {dimension_numbers = #tpu.dot_dimension_numbers<[1], [0], [0], [1], [0, 0, 1, 1], [], []>} : vector<64x16xbf16>, vector<16x5xbf16>, vector<64x5xf32> -> vector<64x5xf32>
    %282 = arith.addf %277, %281 : vector<64x5xf32>
    %c0_83 = arith.constant 0 : index
    %c0_84 = arith.constant 0 : index
    %283 = vector.load %arg6[%c0_83, %c0_84] : memref<1x5xf32, #tpu.memory_space<vmem>>, vector<1x5xf32>
    %284 = vector.broadcast %283 : vector<1x5xf32> to vector<64x5xf32>
    %285 = arith.addf %282, %284 : vector<64x5xf32>
    %c0_85 = arith.constant 0 : index
    %c0_86 = arith.constant 0 : index
    %286 = vector.load %arg13[%c0_85, %c0_86] : memref<64x5xf32, #tpu.memory_space<vmem>>, vector<64x5xf32>
    tpu.vector_store %arg13[%c0_85, %c0_86], %285 {strides = array<i32>} : memref<64x5xf32, #tpu.memory_space<vmem>>, vector<64x5xf32>,
    %c0_87 = arith.constant 0 : index
    %c0_88 = arith.constant 0 : index
    %287 = vector.load %arg9[%c0_87, %c0_88] : memref<5x5xf32, #tpu.memory_space<vmem>>, vector<5x5xf32>
    %288 = vector.shape_cast %287 : vector<5x5xf32> to vector<1x5x5xf32>
    %289 = tpu.iota {dimensions = array<i32: 1>} : vector<8x5x5xi32>
    %290 = tpu.iota {dimensions = array<i32: 1>} : vector<8x5xi32>
    %c0_89 = arith.constant 0 : index
    %c0_90 = arith.constant 0 : index
    %291 = vector.load %arg7[%c0_89, %c0_90] : memref<1x5xf32, #tpu.memory_space<vmem>>, vector<1x5xf32>
    %c0_91 = arith.constant 0 : index
    %c0_92 = arith.constant 0 : index
    %292 = vector.load %arg13[%c0_91, %c0_92] : memref<64x5xf32, #tpu.memory_space<vmem>>, vector<8x5xf32>
    %c0_93 = arith.constant 0 : index
    %c0_94 = arith.constant 0 : index
    %c0_95 = arith.constant 0 : index
    %293 = vector.load %arg2[%c0_93, %c0_94, %c0_95] : memref<8x8x1xf32, #tpu.memory_space<vmem>>, vector<1x8x1xf32>
    %294 = vector.shape_cast %293 : vector<1x8x1xf32> to vector<8x1xf32>
    %295 = vector.broadcast %294 : vector<8x1xf32> to vector<8x5xf32>
    %296 = arith.mulf %292, %295 : vector<8x5xf32>
    %297 = vector.broadcast %291 : vector<1x5xf32> to vector<8x5xf32>
    %298 = arith.addf %297, %296 : vector<8x5xf32>
    %c1_i32_96 = arith.constant 1 : i32
    %c8_i32_97 = arith.constant 8 : i32
    %299 = arith.muli %c1_i32_96, %c8_i32_97 : i32
    %300 = tpu.assume_multiple %299, 8 : i32
    %301 = arith.index_cast %300 : i32 to index
    %c0_98 = arith.constant 0 : index
    %302 = vector.load %arg13[%301, %c0_98] : memref<64x5xf32, #tpu.memory_space<vmem>>, vector<8x5xf32>
    %303 = arith.index_cast %c1_i32_96 : i32 to index
    %c0_99 = arith.constant 0 : index
    %c0_100 = arith.constant 0 : index
    %304 = vector.load %arg2[%303, %c0_99, %c0_100] : memref<8x8x1xf32, #tpu.memory_space<vmem>>, vector<1x8x1xf32>
    %305 = vector.shape_cast %304 : vector<1x8x1xf32> to vector<8x1xf32>
    %cst_101 = arith.constant 5.000000e-01 : f32
    %306 = vector.broadcast %cst_101 : f32 to vector<8x1xf32>
    %307 = arith.cmpf ogt, %305, %306 : vector<8x1xf32>
    %308 = vector.shape_cast %298 : vector<8x5xf32> to vector<8x5x1xf32>
    %309 = vector.broadcast %308 : vector<8x5x1xf32> to vector<8x5x5xf32>
    %310 = vector.broadcast %288 : vector<1x5x5xf32> to vector<8x5x5xf32>
    %311 = arith.addf %309, %310 : vector<8x5x5xf32>
    %cst_102 = arith.constant dense<0xFF800000> : vector<8x5xf32>
    %312 = vector.multi_reduction <maximumf>, %311, %cst_102 [1] : vector<8x5x5xf32> to vector<8x5xf32>
    %313 = vector.shape_cast %312 : vector<8x5xf32> to vector<8x1x5xf32>
    %314 = vector.broadcast %313 : vector<8x1x5xf32> to vector<8x5x5xf32>
    %315 = arith.cmpf oeq, %311, %314 : vector<8x5x5xf32>
    %c5_i32_103 = arith.constant 5 : i32
    %316 = vector.broadcast %c5_i32_103 : i32 to vector<8x5x5xi32>
    %317 = arith.select %315, %289, %316 : vector<8x5x5xi1>, vector<8x5x5xi32>
    %cst_104 = arith.constant dense<2147483647> : vector<8x5xi32>
    %318 = vector.multi_reduction <minsi>, %317, %cst_104 [1] : vector<8x5x5xi32> to vector<8x5xi32>
    %319 = vector.shape_cast %307 : vector<8x1xi1> to vector<8x1xi1>
    %320 = vector.broadcast %319 : vector<8x1xi1> to vector<8x5xi1>
    %321 = arith.select %320, %318, %290 : vector<8x5xi1>, vector<8x5xi32>
    %322 = arith.index_cast %300 : i32 to index
    %c0_105 = arith.constant 0 : index
    %323 = vector.load %arg14[%322, %c0_105] : memref<64x5xi32, #tpu.memory_space<vmem>>, vector<8x5xi32>
    tpu.vector_store %arg14[%322, %c0_105], %321 {strides = array<i32>} : memref<64x5xi32, #tpu.memory_space<vmem>>, vector<8x5xi32>,
    %324 = arith.addf %312, %302 : vector<8x5xf32>
    %325 = vector.shape_cast %307 : vector<8x1xi1> to vector<8x1xi1>
    %326 = vector.broadcast %325 : vector<8x1xi1> to vector<8x5xi1>
    %327 = arith.select %326, %324, %298 : vector<8x5xi1>, vector<8x5xf32>
    %c2_i32_106 = arith.constant 2 : i32
    %c8_i32_107 = arith.constant 8 : i32
    %328 = arith.muli %c2_i32_106, %c8_i32_107 : i32
    %329 = tpu.assume_multiple %328, 8 : i32
    %330 = arith.index_cast %329 : i32 to index
    %c0_108 = arith.constant 0 : index
    %331 = vector.load %arg13[%330, %c0_108] : memref<64x5xf32, #tpu.memory_space<vmem>>, vector<8x5xf32>
    %332 = arith.index_cast %c2_i32_106 : i32 to index
    %c0_109 = arith.constant 0 : index
    %c0_110 = arith.constant 0 : index
    %333 = vector.load %arg2[%332, %c0_109, %c0_110] : memref<8x8x1xf32, #tpu.memory_space<vmem>>, vector<1x8x1xf32>
    %334 = vector.shape_cast %333 : vector<1x8x1xf32> to vector<8x1xf32>
    %cst_111 = arith.constant 5.000000e-01 : f32
    %335 = vector.broadcast %cst_111 : f32 to vector<8x1xf32>
    %336 = arith.cmpf ogt, %334, %335 : vector<8x1xf32>
    %337 = vector.shape_cast %327 : vector<8x5xf32> to vector<8x5x1xf32>
    %338 = vector.broadcast %337 : vector<8x5x1xf32> to vector<8x5x5xf32>
    %339 = vector.broadcast %288 : vector<1x5x5xf32> to vector<8x5x5xf32>
    %340 = arith.addf %338, %339 : vector<8x5x5xf32>
    %cst_112 = arith.constant dense<0xFF800000> : vector<8x5xf32>
    %341 = vector.multi_reduction <maximumf>, %340, %cst_112 [1] : vector<8x5x5xf32> to vector<8x5xf32>
    %342 = vector.shape_cast %341 : vector<8x5xf32> to vector<8x1x5xf32>
    %343 = vector.broadcast %342 : vector<8x1x5xf32> to vector<8x5x5xf32>
    %344 = arith.cmpf oeq, %340, %343 : vector<8x5x5xf32>
    %c5_i32_113 = arith.constant 5 : i32
    %345 = vector.broadcast %c5_i32_113 : i32 to vector<8x5x5xi32>
    %346 = arith.select %344, %289, %345 : vector<8x5x5xi1>, vector<8x5x5xi32>
    %cst_114 = arith.constant dense<2147483647> : vector<8x5xi32>
    %347 = vector.multi_reduction <minsi>, %346, %cst_114 [1] : vector<8x5x5xi32> to vector<8x5xi32>
    %348 = vector.shape_cast %336 : vector<8x1xi1> to vector<8x1xi1>
    %349 = vector.broadcast %348 : vector<8x1xi1> to vector<8x5xi1>
    %350 = arith.select %349, %347, %290 : vector<8x5xi1>, vector<8x5xi32>
    %351 = arith.index_cast %329 : i32 to index
    %c0_115 = arith.constant 0 : index
    %352 = vector.load %arg14[%351, %c0_115] : memref<64x5xi32, #tpu.memory_space<vmem>>, vector<8x5xi32>
    tpu.vector_store %arg14[%351, %c0_115], %350 {strides = array<i32>} : memref<64x5xi32, #tpu.memory_space<vmem>>, vector<8x5xi32>,
    %353 = arith.addf %341, %331 : vector<8x5xf32>
    %354 = vector.shape_cast %336 : vector<8x1xi1> to vector<8x1xi1>
    %355 = vector.broadcast %354 : vector<8x1xi1> to vector<8x5xi1>
    %356 = arith.select %355, %353, %327 : vector<8x5xi1>, vector<8x5xf32>
    %c3_i32_116 = arith.constant 3 : i32
    %c8_i32_117 = arith.constant 8 : i32
    %357 = arith.muli %c3_i32_116, %c8_i32_117 : i32
    %358 = tpu.assume_multiple %357, 8 : i32
    %359 = arith.index_cast %358 : i32 to index
    %c0_118 = arith.constant 0 : index
    %360 = vector.load %arg13[%359, %c0_118] : memref<64x5xf32, #tpu.memory_space<vmem>>, vector<8x5xf32>
    %361 = arith.index_cast %c3_i32_116 : i32 to index
    %c0_119 = arith.constant 0 : index
    %c0_120 = arith.constant 0 : index
    %362 = vector.load %arg2[%361, %c0_119, %c0_120] : memref<8x8x1xf32, #tpu.memory_space<vmem>>, vector<1x8x1xf32>
    %363 = vector.shape_cast %362 : vector<1x8x1xf32> to vector<8x1xf32>
    %cst_121 = arith.constant 5.000000e-01 : f32
    %364 = vector.broadcast %cst_121 : f32 to vector<8x1xf32>
    %365 = arith.cmpf ogt, %363, %364 : vector<8x1xf32>
    %366 = vector.shape_cast %356 : vector<8x5xf32> to vector<8x5x1xf32>
    %367 = vector.broadcast %366 : vector<8x5x1xf32> to vector<8x5x5xf32>
    %368 = vector.broadcast %288 : vector<1x5x5xf32> to vector<8x5x5xf32>
    %369 = arith.addf %367, %368 : vector<8x5x5xf32>
    %cst_122 = arith.constant dense<0xFF800000> : vector<8x5xf32>
    %370 = vector.multi_reduction <maximumf>, %369, %cst_122 [1] : vector<8x5x5xf32> to vector<8x5xf32>
    %371 = vector.shape_cast %370 : vector<8x5xf32> to vector<8x1x5xf32>
    %372 = vector.broadcast %371 : vector<8x1x5xf32> to vector<8x5x5xf32>
    %373 = arith.cmpf oeq, %369, %372 : vector<8x5x5xf32>
    %c5_i32_123 = arith.constant 5 : i32
    %374 = vector.broadcast %c5_i32_123 : i32 to vector<8x5x5xi32>
    %375 = arith.select %373, %289, %374 : vector<8x5x5xi1>, vector<8x5x5xi32>
    %cst_124 = arith.constant dense<2147483647> : vector<8x5xi32>
    %376 = vector.multi_reduction <minsi>, %375, %cst_124 [1] : vector<8x5x5xi32> to vector<8x5xi32>
    %377 = vector.shape_cast %365 : vector<8x1xi1> to vector<8x1xi1>
    %378 = vector.broadcast %377 : vector<8x1xi1> to vector<8x5xi1>
    %379 = arith.select %378, %376, %290 : vector<8x5xi1>, vector<8x5xi32>
    %380 = arith.index_cast %358 : i32 to index
    %c0_125 = arith.constant 0 : index
    %381 = vector.load %arg14[%380, %c0_125] : memref<64x5xi32, #tpu.memory_space<vmem>>, vector<8x5xi32>
    tpu.vector_store %arg14[%380, %c0_125], %379 {strides = array<i32>} : memref<64x5xi32, #tpu.memory_space<vmem>>, vector<8x5xi32>,
    %382 = arith.addf %370, %360 : vector<8x5xf32>
    %383 = vector.shape_cast %365 : vector<8x1xi1> to vector<8x1xi1>
    %384 = vector.broadcast %383 : vector<8x1xi1> to vector<8x5xi1>
    %385 = arith.select %384, %382, %356 : vector<8x5xi1>, vector<8x5xf32>
    %c4_i32_126 = arith.constant 4 : i32
    %c8_i32_127 = arith.constant 8 : i32
    %386 = arith.muli %c4_i32_126, %c8_i32_127 : i32
    %387 = tpu.assume_multiple %386, 8 : i32
    %388 = arith.index_cast %387 : i32 to index
    %c0_128 = arith.constant 0 : index
    %389 = vector.load %arg13[%388, %c0_128] : memref<64x5xf32, #tpu.memory_space<vmem>>, vector<8x5xf32>
    %390 = arith.index_cast %c4_i32_126 : i32 to index
    %c0_129 = arith.constant 0 : index
    %c0_130 = arith.constant 0 : index
    %391 = vector.load %arg2[%390, %c0_129, %c0_130] : memref<8x8x1xf32, #tpu.memory_space<vmem>>, vector<1x8x1xf32>
    %392 = vector.shape_cast %391 : vector<1x8x1xf32> to vector<8x1xf32>
    %cst_131 = arith.constant 5.000000e-01 : f32
    %393 = vector.broadcast %cst_131 : f32 to vector<8x1xf32>
    %394 = arith.cmpf ogt, %392, %393 : vector<8x1xf32>
    %395 = vector.shape_cast %385 : vector<8x5xf32> to vector<8x5x1xf32>
    %396 = vector.broadcast %395 : vector<8x5x1xf32> to vector<8x5x5xf32>
    %397 = vector.broadcast %288 : vector<1x5x5xf32> to vector<8x5x5xf32>
    %398 = arith.addf %396, %397 : vector<8x5x5xf32>
    %cst_132 = arith.constant dense<0xFF800000> : vector<8x5xf32>
    %399 = vector.multi_reduction <maximumf>, %398, %cst_132 [1] : vector<8x5x5xf32> to vector<8x5xf32>
    %400 = vector.shape_cast %399 : vector<8x5xf32> to vector<8x1x5xf32>
    %401 = vector.broadcast %400 : vector<8x1x5xf32> to vector<8x5x5xf32>
    %402 = arith.cmpf oeq, %398, %401 : vector<8x5x5xf32>
    %c5_i32_133 = arith.constant 5 : i32
    %403 = vector.broadcast %c5_i32_133 : i32 to vector<8x5x5xi32>
    %404 = arith.select %402, %289, %403 : vector<8x5x5xi1>, vector<8x5x5xi32>
    %cst_134 = arith.constant dense<2147483647> : vector<8x5xi32>
    %405 = vector.multi_reduction <minsi>, %404, %cst_134 [1] : vector<8x5x5xi32> to vector<8x5xi32>
    %406 = vector.shape_cast %394 : vector<8x1xi1> to vector<8x1xi1>
    %407 = vector.broadcast %406 : vector<8x1xi1> to vector<8x5xi1>
    %408 = arith.select %407, %405, %290 : vector<8x5xi1>, vector<8x5xi32>
    %409 = arith.index_cast %387 : i32 to index
    %c0_135 = arith.constant 0 : index
    %410 = vector.load %arg14[%409, %c0_135] : memref<64x5xi32, #tpu.memory_space<vmem>>, vector<8x5xi32>
    tpu.vector_store %arg14[%409, %c0_135], %408 {strides = array<i32>} : memref<64x5xi32, #tpu.memory_space<vmem>>, vector<8x5xi32>,
    %411 = arith.addf %399, %389 : vector<8x5xf32>
    %412 = vector.shape_cast %394 : vector<8x1xi1> to vector<8x1xi1>
    %413 = vector.broadcast %412 : vector<8x1xi1> to vector<8x5xi1>
    %414 = arith.select %413, %411, %385 : vector<8x5xi1>, vector<8x5xf32>
    %c5_i32_136 = arith.constant 5 : i32
    %c8_i32_137 = arith.constant 8 : i32
    %415 = arith.muli %c5_i32_136, %c8_i32_137 : i32
    %416 = tpu.assume_multiple %415, 8 : i32
    %417 = arith.index_cast %416 : i32 to index
    %c0_138 = arith.constant 0 : index
    %418 = vector.load %arg13[%417, %c0_138] : memref<64x5xf32, #tpu.memory_space<vmem>>, vector<8x5xf32>
    %419 = arith.index_cast %c5_i32_136 : i32 to index
    %c0_139 = arith.constant 0 : index
    %c0_140 = arith.constant 0 : index
    %420 = vector.load %arg2[%419, %c0_139, %c0_140] : memref<8x8x1xf32, #tpu.memory_space<vmem>>, vector<1x8x1xf32>
    %421 = vector.shape_cast %420 : vector<1x8x1xf32> to vector<8x1xf32>
    %cst_141 = arith.constant 5.000000e-01 : f32
    %422 = vector.broadcast %cst_141 : f32 to vector<8x1xf32>
    %423 = arith.cmpf ogt, %421, %422 : vector<8x1xf32>
    %424 = vector.shape_cast %414 : vector<8x5xf32> to vector<8x5x1xf32>
    %425 = vector.broadcast %424 : vector<8x5x1xf32> to vector<8x5x5xf32>
    %426 = vector.broadcast %288 : vector<1x5x5xf32> to vector<8x5x5xf32>
    %427 = arith.addf %425, %426 : vector<8x5x5xf32>
    %cst_142 = arith.constant dense<0xFF800000> : vector<8x5xf32>
    %428 = vector.multi_reduction <maximumf>, %427, %cst_142 [1] : vector<8x5x5xf32> to vector<8x5xf32>
    %429 = vector.shape_cast %428 : vector<8x5xf32> to vector<8x1x5xf32>
    %430 = vector.broadcast %429 : vector<8x1x5xf32> to vector<8x5x5xf32>
    %431 = arith.cmpf oeq, %427, %430 : vector<8x5x5xf32>
    %c5_i32_143 = arith.constant 5 : i32
    %432 = vector.broadcast %c5_i32_143 : i32 to vector<8x5x5xi32>
    %433 = arith.select %431, %289, %432 : vector<8x5x5xi1>, vector<8x5x5xi32>
    %cst_144 = arith.constant dense<2147483647> : vector<8x5xi32>
    %434 = vector.multi_reduction <minsi>, %433, %cst_144 [1] : vector<8x5x5xi32> to vector<8x5xi32>
    %435 = vector.shape_cast %423 : vector<8x1xi1> to vector<8x1xi1>
    %436 = vector.broadcast %435 : vector<8x1xi1> to vector<8x5xi1>
    %437 = arith.select %436, %434, %290 : vector<8x5xi1>, vector<8x5xi32>
    %438 = arith.index_cast %416 : i32 to index
    %c0_145 = arith.constant 0 : index
    %439 = vector.load %arg14[%438, %c0_145] : memref<64x5xi32, #tpu.memory_space<vmem>>, vector<8x5xi32>
    tpu.vector_store %arg14[%438, %c0_145], %437 {strides = array<i32>} : memref<64x5xi32, #tpu.memory_space<vmem>>, vector<8x5xi32>,
    %440 = arith.addf %428, %418 : vector<8x5xf32>
    %441 = vector.shape_cast %423 : vector<8x1xi1> to vector<8x1xi1>
    %442 = vector.broadcast %441 : vector<8x1xi1> to vector<8x5xi1>
    %443 = arith.select %442, %440, %414 : vector<8x5xi1>, vector<8x5xf32>
    %c6_i32_146 = arith.constant 6 : i32
    %c8_i32_147 = arith.constant 8 : i32
    %444 = arith.muli %c6_i32_146, %c8_i32_147 : i32
    %445 = tpu.assume_multiple %444, 8 : i32
    %446 = arith.index_cast %445 : i32 to index
    %c0_148 = arith.constant 0 : index
    %447 = vector.load %arg13[%446, %c0_148] : memref<64x5xf32, #tpu.memory_space<vmem>>, vector<8x5xf32>
    %448 = arith.index_cast %c6_i32_146 : i32 to index
    %c0_149 = arith.constant 0 : index
    %c0_150 = arith.constant 0 : index
    %449 = vector.load %arg2[%448, %c0_149, %c0_150] : memref<8x8x1xf32, #tpu.memory_space<vmem>>, vector<1x8x1xf32>
    %450 = vector.shape_cast %449 : vector<1x8x1xf32> to vector<8x1xf32>
    %cst_151 = arith.constant 5.000000e-01 : f32
    %451 = vector.broadcast %cst_151 : f32 to vector<8x1xf32>
    %452 = arith.cmpf ogt, %450, %451 : vector<8x1xf32>
    %453 = vector.shape_cast %443 : vector<8x5xf32> to vector<8x5x1xf32>
    %454 = vector.broadcast %453 : vector<8x5x1xf32> to vector<8x5x5xf32>
    %455 = vector.broadcast %288 : vector<1x5x5xf32> to vector<8x5x5xf32>
    %456 = arith.addf %454, %455 : vector<8x5x5xf32>
    %cst_152 = arith.constant dense<0xFF800000> : vector<8x5xf32>
    %457 = vector.multi_reduction <maximumf>, %456, %cst_152 [1] : vector<8x5x5xf32> to vector<8x5xf32>
    %458 = vector.shape_cast %457 : vector<8x5xf32> to vector<8x1x5xf32>
    %459 = vector.broadcast %458 : vector<8x1x5xf32> to vector<8x5x5xf32>
    %460 = arith.cmpf oeq, %456, %459 : vector<8x5x5xf32>
    %c5_i32_153 = arith.constant 5 : i32
    %461 = vector.broadcast %c5_i32_153 : i32 to vector<8x5x5xi32>
    %462 = arith.select %460, %289, %461 : vector<8x5x5xi1>, vector<8x5x5xi32>
    %cst_154 = arith.constant dense<2147483647> : vector<8x5xi32>
    %463 = vector.multi_reduction <minsi>, %462, %cst_154 [1] : vector<8x5x5xi32> to vector<8x5xi32>
    %464 = vector.shape_cast %452 : vector<8x1xi1> to vector<8x1xi1>
    %465 = vector.broadcast %464 : vector<8x1xi1> to vector<8x5xi1>
    %466 = arith.select %465, %463, %290 : vector<8x5xi1>, vector<8x5xi32>
    %467 = arith.index_cast %445 : i32 to index
    %c0_155 = arith.constant 0 : index
    %468 = vector.load %arg14[%467, %c0_155] : memref<64x5xi32, #tpu.memory_space<vmem>>, vector<8x5xi32>
    tpu.vector_store %arg14[%467, %c0_155], %466 {strides = array<i32>} : memref<64x5xi32, #tpu.memory_space<vmem>>, vector<8x5xi32>,
    %469 = arith.addf %457, %447 : vector<8x5xf32>
    %470 = vector.shape_cast %452 : vector<8x1xi1> to vector<8x1xi1>
    %471 = vector.broadcast %470 : vector<8x1xi1> to vector<8x5xi1>
    %472 = arith.select %471, %469, %443 : vector<8x5xi1>, vector<8x5xf32>
    %c7_i32_156 = arith.constant 7 : i32
    %c8_i32_157 = arith.constant 8 : i32
    %473 = arith.muli %c7_i32_156, %c8_i32_157 : i32
    %474 = tpu.assume_multiple %473, 8 : i32
    %475 = arith.index_cast %474 : i32 to index
    %c0_158 = arith.constant 0 : index
    %476 = vector.load %arg13[%475, %c0_158] : memref<64x5xf32, #tpu.memory_space<vmem>>, vector<8x5xf32>
    %477 = arith.index_cast %c7_i32_156 : i32 to index
    %c0_159 = arith.constant 0 : index
    %c0_160 = arith.constant 0 : index
    %478 = vector.load %arg2[%477, %c0_159, %c0_160] : memref<8x8x1xf32, #tpu.memory_space<vmem>>, vector<1x8x1xf32>
    %479 = vector.shape_cast %478 : vector<1x8x1xf32> to vector<8x1xf32>
    %cst_161 = arith.constant 5.000000e-01 : f32
    %480 = vector.broadcast %cst_161 : f32 to vector<8x1xf32>
    %481 = arith.cmpf ogt, %479, %480 : vector<8x1xf32>
    %482 = vector.shape_cast %472 : vector<8x5xf32> to vector<8x5x1xf32>
    %483 = vector.broadcast %482 : vector<8x5x1xf32> to vector<8x5x5xf32>
    %484 = vector.broadcast %288 : vector<1x5x5xf32> to vector<8x5x5xf32>
    %485 = arith.addf %483, %484 : vector<8x5x5xf32>
    %cst_162 = arith.constant dense<0xFF800000> : vector<8x5xf32>
    %486 = vector.multi_reduction <maximumf>, %485, %cst_162 [1] : vector<8x5x5xf32> to vector<8x5xf32>
    %487 = vector.shape_cast %486 : vector<8x5xf32> to vector<8x1x5xf32>
    %488 = vector.broadcast %487 : vector<8x1x5xf32> to vector<8x5x5xf32>
    %489 = arith.cmpf oeq, %485, %488 : vector<8x5x5xf32>
    %c5_i32_163 = arith.constant 5 : i32
    %490 = vector.broadcast %c5_i32_163 : i32 to vector<8x5x5xi32>
    %491 = arith.select %489, %289, %490 : vector<8x5x5xi1>, vector<8x5x5xi32>
    %cst_164 = arith.constant dense<2147483647> : vector<8x5xi32>
    %492 = vector.multi_reduction <minsi>, %491, %cst_164 [1] : vector<8x5x5xi32> to vector<8x5xi32>
    %493 = vector.shape_cast %481 : vector<8x1xi1> to vector<8x1xi1>
    %494 = vector.broadcast %493 : vector<8x1xi1> to vector<8x5xi1>
    %495 = arith.select %494, %492, %290 : vector<8x5xi1>, vector<8x5xi32>
    %496 = arith.index_cast %474 : i32 to index
    %c0_165 = arith.constant 0 : index
    %497 = vector.load %arg14[%496, %c0_165] : memref<64x5xi32, #tpu.memory_space<vmem>>, vector<8x5xi32>
    tpu.vector_store %arg14[%496, %c0_165], %495 {strides = array<i32>} : memref<64x5xi32, #tpu.memory_space<vmem>>, vector<8x5xi32>,
    %498 = arith.addf %486, %476 : vector<8x5xf32>
    %499 = vector.shape_cast %481 : vector<8x1xi1> to vector<8x1xi1>
    %500 = vector.broadcast %499 : vector<8x1xi1> to vector<8x5xi1>
    %501 = arith.select %500, %498, %472 : vector<8x5xi1>, vector<8x5xf32>
    %c7_i32_166 = arith.constant 7 : i32
    %c0_167 = arith.constant 0 : index
    %c0_168 = arith.constant 0 : index
    %502 = vector.load %arg8[%c0_167, %c0_168] : memref<1x5xf32, #tpu.memory_space<vmem>>, vector<1x5xf32>
    %503 = vector.broadcast %502 : vector<1x5xf32> to vector<8x5xf32>
    %504 = arith.addf %501, %503 : vector<8x5xf32>
    %505 = tpu.iota {dimensions = array<i32: 1>} : vector<8x8xi32>
    %cst_169 = arith.constant dense<0xFF800000> : vector<8xf32>
    %506 = vector.multi_reduction <maximumf>, %504, %cst_169 [1] : vector<8x5xf32> to vector<8xf32>
    %507 = vector.shape_cast %506 : vector<8xf32> to vector<8x1xf32>
    %508 = vector.broadcast %507 : vector<8x1xf32> to vector<8x5xf32>
    %509 = arith.cmpf oeq, %504, %508 : vector<8x5xf32>
    %c5_i32_170 = arith.constant 5 : i32
    %510 = vector.broadcast %c5_i32_170 : i32 to vector<8x5xi32>
    %511 = arith.select %509, %290, %510 : vector<8x5xi1>, vector<8x5xi32>
    %cst_171 = arith.constant dense<2147483647> : vector<8xi32>
    %512 = vector.multi_reduction <minsi>, %511, %cst_171 [1] : vector<8x5xi32> to vector<8xi32>
    %513 = vector.shape_cast %512 : vector<8xi32> to vector<8x1xi32>
    %c7_i32_172 = arith.constant 7 : i32
    %514 = vector.broadcast %c7_i32_172 : i32 to vector<8x8xi32>
    %515 = arith.cmpi eq, %505, %514 : vector<8x8xi32>
    %c0_i32_173 = arith.constant 0 : i32
    %516 = vector.shape_cast %513 : vector<8x1xi32> to vector<8x1xi32>
    %517 = vector.broadcast %516 : vector<8x1xi32> to vector<8x8xi32>
    %518 = vector.broadcast %c0_i32_173 : i32 to vector<8x8xi32>
    %519 = arith.select %515, %517, %518 : vector<8x8xi1>, vector<8x8xi32>
    %c0_i32_174 = arith.constant 0 : i32
    %c7_i32_175 = arith.constant 7 : i32
    %520 = arith.subi %c7_i32_175, %c0_i32_174 : i32
    %c8_i32_176 = arith.constant 8 : i32
    %521 = arith.muli %520, %c8_i32_176 : i32
    %522 = tpu.assume_multiple %521, 8 : i32
    %523 = arith.index_cast %522 : i32 to index
    %c0_177 = arith.constant 0 : index
    %524 = vector.load %arg14[%523, %c0_177] : memref<64x5xi32, #tpu.memory_space<vmem>>, vector<8x5xi32>
    %525 = vector.broadcast %513 : vector<8x1xi32> to vector<8x5xi32>
    %526 = arith.cmpi eq, %290, %525 : vector<8x5xi32>
    %c0_i32_178 = arith.constant 0 : i32
    %527 = vector.broadcast %c0_i32_178 : i32 to vector<8x5xi32>
    %528 = arith.select %526, %524, %527 : vector<8x5xi1>, vector<8x5xi32>
    %cst_179 = arith.constant dense<0> : vector<8xi32>
    %529 = vector.multi_reduction <add>, %528, %cst_179 [1] : vector<8x5xi32> to vector<8xi32>
    %530 = vector.shape_cast %529 : vector<8xi32> to vector<8x1xi32>
    %c1_i32_180 = arith.constant 1 : i32
    %531 = arith.subi %520, %c1_i32_180 : i32
    %532 = vector.broadcast %531 : i32 to vector<8x8xi32>
    %533 = arith.cmpi eq, %505, %532 : vector<8x8xi32>
    %534 = vector.shape_cast %530 : vector<8x1xi32> to vector<8x1xi32>
    %535 = vector.broadcast %534 : vector<8x1xi32> to vector<8x8xi32>
    %536 = arith.select %533, %535, %519 : vector<8x8xi1>, vector<8x8xi32>
    %c1_i32_181 = arith.constant 1 : i32
    %c7_i32_182 = arith.constant 7 : i32
    %537 = arith.subi %c7_i32_182, %c1_i32_181 : i32
    %c8_i32_183 = arith.constant 8 : i32
    %538 = arith.muli %537, %c8_i32_183 : i32
    %539 = tpu.assume_multiple %538, 8 : i32
    %540 = arith.index_cast %539 : i32 to index
    %c0_184 = arith.constant 0 : index
    %541 = vector.load %arg14[%540, %c0_184] : memref<64x5xi32, #tpu.memory_space<vmem>>, vector<8x5xi32>
    %542 = vector.broadcast %530 : vector<8x1xi32> to vector<8x5xi32>
    %543 = arith.cmpi eq, %290, %542 : vector<8x5xi32>
    %c0_i32_185 = arith.constant 0 : i32
    %544 = vector.broadcast %c0_i32_185 : i32 to vector<8x5xi32>
    %545 = arith.select %543, %541, %544 : vector<8x5xi1>, vector<8x5xi32>
    %cst_186 = arith.constant dense<0> : vector<8xi32>
    %546 = vector.multi_reduction <add>, %545, %cst_186 [1] : vector<8x5xi32> to vector<8xi32>
    %547 = vector.shape_cast %546 : vector<8xi32> to vector<8x1xi32>
    %c1_i32_187 = arith.constant 1 : i32
    %548 = arith.subi %537, %c1_i32_187 : i32
    %549 = vector.broadcast %548 : i32 to vector<8x8xi32>
    %550 = arith.cmpi eq, %505, %549 : vector<8x8xi32>
    %551 = vector.shape_cast %547 : vector<8x1xi32> to vector<8x1xi32>
    %552 = vector.broadcast %551 : vector<8x1xi32> to vector<8x8xi32>
    %553 = arith.select %550, %552, %536 : vector<8x8xi1>, vector<8x8xi32>
    %c2_i32_188 = arith.constant 2 : i32
    %c7_i32_189 = arith.constant 7 : i32
    %554 = arith.subi %c7_i32_189, %c2_i32_188 : i32
    %c8_i32_190 = arith.constant 8 : i32
    %555 = arith.muli %554, %c8_i32_190 : i32
    %556 = tpu.assume_multiple %555, 8 : i32
    %557 = arith.index_cast %556 : i32 to index
    %c0_191 = arith.constant 0 : index
    %558 = vector.load %arg14[%557, %c0_191] : memref<64x5xi32, #tpu.memory_space<vmem>>, vector<8x5xi32>
    %559 = vector.broadcast %547 : vector<8x1xi32> to vector<8x5xi32>
    %560 = arith.cmpi eq, %290, %559 : vector<8x5xi32>
    %c0_i32_192 = arith.constant 0 : i32
    %561 = vector.broadcast %c0_i32_192 : i32 to vector<8x5xi32>
    %562 = arith.select %560, %558, %561 : vector<8x5xi1>, vector<8x5xi32>
    %cst_193 = arith.constant dense<0> : vector<8xi32>
    %563 = vector.multi_reduction <add>, %562, %cst_193 [1] : vector<8x5xi32> to vector<8xi32>
    %564 = vector.shape_cast %563 : vector<8xi32> to vector<8x1xi32>
    %c1_i32_194 = arith.constant 1 : i32
    %565 = arith.subi %554, %c1_i32_194 : i32
    %566 = vector.broadcast %565 : i32 to vector<8x8xi32>
    %567 = arith.cmpi eq, %505, %566 : vector<8x8xi32>
    %568 = vector.shape_cast %564 : vector<8x1xi32> to vector<8x1xi32>
    %569 = vector.broadcast %568 : vector<8x1xi32> to vector<8x8xi32>
    %570 = arith.select %567, %569, %553 : vector<8x8xi1>, vector<8x8xi32>
    %c3_i32_195 = arith.constant 3 : i32
    %c7_i32_196 = arith.constant 7 : i32
    %571 = arith.subi %c7_i32_196, %c3_i32_195 : i32
    %c8_i32_197 = arith.constant 8 : i32
    %572 = arith.muli %571, %c8_i32_197 : i32
    %573 = tpu.assume_multiple %572, 8 : i32
    %574 = arith.index_cast %573 : i32 to index
    %c0_198 = arith.constant 0 : index
    %575 = vector.load %arg14[%574, %c0_198] : memref<64x5xi32, #tpu.memory_space<vmem>>, vector<8x5xi32>
    %576 = vector.broadcast %564 : vector<8x1xi32> to vector<8x5xi32>
    %577 = arith.cmpi eq, %290, %576 : vector<8x5xi32>
    %c0_i32_199 = arith.constant 0 : i32
    %578 = vector.broadcast %c0_i32_199 : i32 to vector<8x5xi32>
    %579 = arith.select %577, %575, %578 : vector<8x5xi1>, vector<8x5xi32>
    %cst_200 = arith.constant dense<0> : vector<8xi32>
    %580 = vector.multi_reduction <add>, %579, %cst_200 [1] : vector<8x5xi32> to vector<8xi32>
    %581 = vector.shape_cast %580 : vector<8xi32> to vector<8x1xi32>
    %c1_i32_201 = arith.constant 1 : i32
    %582 = arith.subi %571, %c1_i32_201 : i32
    %583 = vector.broadcast %582 : i32 to vector<8x8xi32>
    %584 = arith.cmpi eq, %505, %583 : vector<8x8xi32>
    %585 = vector.shape_cast %581 : vector<8x1xi32> to vector<8x1xi32>
    %586 = vector.broadcast %585 : vector<8x1xi32> to vector<8x8xi32>
    %587 = arith.select %584, %586, %570 : vector<8x8xi1>, vector<8x8xi32>
    %c4_i32_202 = arith.constant 4 : i32
    %c7_i32_203 = arith.constant 7 : i32
    %588 = arith.subi %c7_i32_203, %c4_i32_202 : i32
    %c8_i32_204 = arith.constant 8 : i32
    %589 = arith.muli %588, %c8_i32_204 : i32
    %590 = tpu.assume_multiple %589, 8 : i32
    %591 = arith.index_cast %590 : i32 to index
    %c0_205 = arith.constant 0 : index
    %592 = vector.load %arg14[%591, %c0_205] : memref<64x5xi32, #tpu.memory_space<vmem>>, vector<8x5xi32>
    %593 = vector.broadcast %581 : vector<8x1xi32> to vector<8x5xi32>
    %594 = arith.cmpi eq, %290, %593 : vector<8x5xi32>
    %c0_i32_206 = arith.constant 0 : i32
    %595 = vector.broadcast %c0_i32_206 : i32 to vector<8x5xi32>
    %596 = arith.select %594, %592, %595 : vector<8x5xi1>, vector<8x5xi32>
    %cst_207 = arith.constant dense<0> : vector<8xi32>
    %597 = vector.multi_reduction <add>, %596, %cst_207 [1] : vector<8x5xi32> to vector<8xi32>
    %598 = vector.shape_cast %597 : vector<8xi32> to vector<8x1xi32>
    %c1_i32_208 = arith.constant 1 : i32
    %599 = arith.subi %588, %c1_i32_208 : i32
    %600 = vector.broadcast %599 : i32 to vector<8x8xi32>
    %601 = arith.cmpi eq, %505, %600 : vector<8x8xi32>
    %602 = vector.shape_cast %598 : vector<8x1xi32> to vector<8x1xi32>
    %603 = vector.broadcast %602 : vector<8x1xi32> to vector<8x8xi32>
    %604 = arith.select %601, %603, %587 : vector<8x8xi1>, vector<8x8xi32>
    %c5_i32_209 = arith.constant 5 : i32
    %c7_i32_210 = arith.constant 7 : i32
    %605 = arith.subi %c7_i32_210, %c5_i32_209 : i32
    %c8_i32_211 = arith.constant 8 : i32
    %606 = arith.muli %605, %c8_i32_211 : i32
    %607 = tpu.assume_multiple %606, 8 : i32
    %608 = arith.index_cast %607 : i32 to index
    %c0_212 = arith.constant 0 : index
    %609 = vector.load %arg14[%608, %c0_212] : memref<64x5xi32, #tpu.memory_space<vmem>>, vector<8x5xi32>
    %610 = vector.broadcast %598 : vector<8x1xi32> to vector<8x5xi32>
    %611 = arith.cmpi eq, %290, %610 : vector<8x5xi32>
    %c0_i32_213 = arith.constant 0 : i32
    %612 = vector.broadcast %c0_i32_213 : i32 to vector<8x5xi32>
    %613 = arith.select %611, %609, %612 : vector<8x5xi1>, vector<8x5xi32>
    %cst_214 = arith.constant dense<0> : vector<8xi32>
    %614 = vector.multi_reduction <add>, %613, %cst_214 [1] : vector<8x5xi32> to vector<8xi32>
    %615 = vector.shape_cast %614 : vector<8xi32> to vector<8x1xi32>
    %c1_i32_215 = arith.constant 1 : i32
    %616 = arith.subi %605, %c1_i32_215 : i32
    %617 = vector.broadcast %616 : i32 to vector<8x8xi32>
    %618 = arith.cmpi eq, %505, %617 : vector<8x8xi32>
    %619 = vector.shape_cast %615 : vector<8x1xi32> to vector<8x1xi32>
    %620 = vector.broadcast %619 : vector<8x1xi32> to vector<8x8xi32>
    %621 = arith.select %618, %620, %604 : vector<8x8xi1>, vector<8x8xi32>
    %c6_i32_216 = arith.constant 6 : i32
    %c7_i32_217 = arith.constant 7 : i32
    %622 = arith.subi %c7_i32_217, %c6_i32_216 : i32
    %c8_i32_218 = arith.constant 8 : i32
    %623 = arith.muli %622, %c8_i32_218 : i32
    %624 = tpu.assume_multiple %623, 8 : i32
    %625 = arith.index_cast %624 : i32 to index
    %c0_219 = arith.constant 0 : index
    %626 = vector.load %arg14[%625, %c0_219] : memref<64x5xi32, #tpu.memory_space<vmem>>, vector<8x5xi32>
    %627 = vector.broadcast %615 : vector<8x1xi32> to vector<8x5xi32>
    %628 = arith.cmpi eq, %290, %627 : vector<8x5xi32>
    %c0_i32_220 = arith.constant 0 : i32
    %629 = vector.broadcast %c0_i32_220 : i32 to vector<8x5xi32>
    %630 = arith.select %628, %626, %629 : vector<8x5xi1>, vector<8x5xi32>
    %cst_221 = arith.constant dense<0> : vector<8xi32>
    %631 = vector.multi_reduction <add>, %630, %cst_221 [1] : vector<8x5xi32> to vector<8xi32>
    %632 = vector.shape_cast %631 : vector<8xi32> to vector<8x1xi32>
    %c1_i32_222 = arith.constant 1 : i32
    %633 = arith.subi %622, %c1_i32_222 : i32
    %634 = vector.broadcast %633 : i32 to vector<8x8xi32>
    %635 = arith.cmpi eq, %505, %634 : vector<8x8xi32>
    %636 = vector.shape_cast %632 : vector<8x1xi32> to vector<8x1xi32>
    %637 = vector.broadcast %636 : vector<8x1xi32> to vector<8x8xi32>
    %638 = arith.select %635, %637, %621 : vector<8x8xi1>, vector<8x8xi32>
    %c7_i32_223 = arith.constant 7 : i32
    %c0_224 = arith.constant 0 : index
    %c0_225 = arith.constant 0 : index
    %639 = vector.load %arg10[%c0_224, %c0_225] : memref<8x8xi32, #tpu.memory_space<vmem>>, vector<8x8xi32>
    tpu.vector_store %arg10[%c0_224, %c0_225], %638 {strides = array<i32>} : memref<8x8xi32, #tpu.memory_space<vmem>>, vector<8x8xi32>,
    return
  }
  func.func @transform_0(%arg0: i32) -> (i32, i32, i32) {
    %c0_i32 = arith.constant 0 : i32
    %c0_i32_0 = arith.constant 0 : i32
    %c0_i32_1 = arith.constant 0 : i32
    return %c0_i32, %arg0, %c0_i32_0 : i32, i32, i32
  }
  func.func @transform_1(%arg0: i32) -> (i32, i32, i32) {
    %c0_i32 = arith.constant 0 : i32
    %c0_i32_0 = arith.constant 0 : i32
    %c0_i32_1 = arith.constant 0 : i32
    return %c0_i32, %arg0, %c0_i32_0 : i32, i32, i32
  }
  func.func @transform_2(%arg0: i32) -> (i32, i32) {
    %c0_i32 = arith.constant 0 : i32
    %c0_i32_0 = arith.constant 0 : i32
    %c0_i32_1 = arith.constant 0 : i32
    return %c0_i32, %c0_i32_0 : i32, i32
  }
  func.func @transform_3(%arg0: i32) -> (i32, i32) {
    %c0_i32 = arith.constant 0 : i32
    %c0_i32_0 = arith.constant 0 : i32
    %c0_i32_1 = arith.constant 0 : i32
    return %c0_i32, %c0_i32_0 : i32, i32
  }
  func.func @transform_4(%arg0: i32) -> (i32, i32) {
    %c0_i32 = arith.constant 0 : i32
    %c0_i32_0 = arith.constant 0 : i32
    %c0_i32_1 = arith.constant 0 : i32
    return %c0_i32, %c0_i32_0 : i32, i32
  }
  func.func @transform_5(%arg0: i32) -> (i32, i32) {
    %c0_i32 = arith.constant 0 : i32
    %c0_i32_0 = arith.constant 0 : i32
    %c0_i32_1 = arith.constant 0 : i32
    return %c0_i32, %c0_i32_0 : i32, i32
  }
  func.func @transform_6(%arg0: i32) -> (i32, i32) {
    %c0_i32 = arith.constant 0 : i32
    %c0_i32_0 = arith.constant 0 : i32
    %c0_i32_1 = arith.constant 0 : i32
    return %c0_i32, %c0_i32_0 : i32, i32
  }
  func.func @transform_7(%arg0: i32) -> (i32, i32) {
    %c0_i32 = arith.constant 0 : i32
    %c0_i32_0 = arith.constant 0 : i32
    %c0_i32_1 = arith.constant 0 : i32
    return %c0_i32, %c0_i32_0 : i32, i32
  }
  func.func @transform_8(%arg0: i32) -> (i32, i32) {
    %c0_i32 = arith.constant 0 : i32
    %c0_i32_0 = arith.constant 0 : i32
    %c0_i32_1 = arith.constant 0 : i32
    return %c0_i32, %c0_i32_0 : i32, i32
  }
  func.func @transform_9(%arg0: i32) -> (i32, i32) {
    %c0_i32 = arith.constant 0 : i32
    %c0_i32_0 = arith.constant 0 : i32
    return %arg0, %c0_i32 : i32, i32
  }
}

</mosaic_0001>

<llo_original>
// kernel: ner_bilstm_crf_forward.1
$region0: #{ner_bilstm_crf_forward.1}
  #allocation0 [shape = 'u32[]', space=smem, size = 0x4, offset = 0x4, fixed_abs, tag = 'smem constant byte address 0x4 - core index']
  #allocation1 [shape = 'u32[144,128]{1,0:T(1,128)}', space=vmem, size = 0x12000, scoped, tag = 'internal scratch']
  #allocation2 [shape = 'f32[64,16]{1,0:T(8,128)}', space=vmem, size = 0x8000, scoped, tag = 'scratch operand']
  #allocation3 [shape = 'f32[64,16]{1,0:T(8,128)}', space=vmem, size = 0x8000, scoped, tag = 'scratch operand']
  #allocation4 [shape = 'f32[64,5]{1,0:T(8,128)}', space=vmem, size = 0x8000, scoped, tag = 'scratch operand']
  #allocation5 [shape = 's32[64,5]{1,0:T(8,128)}', space=vmem, size = 0x8000, scoped, tag = 'scratch operand']
  %s0 = inlined_call_operand.vmem [shape: bf16[8,8,128], index: 0, kind: input, shape index: {}]
  %s1 = inlined_call_operand.vmem [shape: f32[8,8,1], index: 1, kind: input, shape index: {}]
  %s2 = inlined_call_operand.vmem [shape: bf16[32,128], index: 2, kind: input, shape index: {}]
  %s3 = inlined_call_operand.vmem [shape: bf16[16,5], index: 3, kind: input, shape index: {}]
  %s4 = inlined_call_operand.vmem [shape: bf16[16,5], index: 4, kind: input, shape index: {}]
  %s5 = inlined_call_operand.vmem [shape: f32[1,5], index: 5, kind: input, shape index: {}]
  %s6 = inlined_call_operand.vmem [shape: f32[1,5], index: 6, kind: input, shape index: {}]
  %s7 = inlined_call_operand.vmem [shape: f32[1,5], index: 7, kind: input, shape index: {}]
  %s8 = inlined_call_operand.vmem [shape: f32[5,5], index: 8, kind: input, shape index: {}]
  %s9 = inlined_call_operand.vmem [shape: s32[8,8], index: 9, kind: output, shape index: {}]
  %s10 = sld [smem:[#allocation0]]
  $region46: #{ner_bilstm_crf_forward.1} parent=0
    _
  %s12 = ssub.s32 1, %s10
  %s13 = scalar_select 0, %s12, %s10
  // Predicated region
  $region2: #{ner_bilstm_crf_forward.1} parent=0 // pred_check
    _
  $region3: #{ner_bilstm_crf_forward.1} parent=0 // pred_check_branch
    %15 = sbr.rel (0) target = $region5
  $region4: #{ner_bilstm_crf_forward.1} parent=0 // pred_region
    _
  $region5: #{ner_bilstm_crf_forward.1} parent=0 // pred_fallthru
    _
  // Predicated region
  $region6: #{ner_bilstm_crf_forward.1} parent=0 // pred_check
    _
  $region7: #{ner_bilstm_crf_forward.1} parent=0 // pred_check_branch
    %17 = sbr.rel (0) target = $region9
  $region8: #{ner_bilstm_crf_forward.1} parent=0 // pred_region
    _
  $region9: #{ner_bilstm_crf_forward.1} parent=0 // pred_fallthru
    _
  // Predicated region
  $region10: #{ner_bilstm_crf_forward.1} parent=0 // pred_check
    _
  $region11: #{ner_bilstm_crf_forward.1} parent=0 // pred_check_branch
    %19 = sbr.rel (0) target = $region13
  $region12: #{ner_bilstm_crf_forward.1} parent=0 // pred_region
    _
  $region13: #{ner_bilstm_crf_forward.1} parent=0 // pred_fallthru
    _
  // Predicated region
  $region14: #{ner_bilstm_crf_forward.1} parent=0 // pred_check
    _
  $region15: #{ner_bilstm_crf_forward.1} parent=0 // pred_check_branch
    %21 = sbr.rel (0) target = $region17
  $region16: #{ner_bilstm_crf_forward.1} parent=0 // pred_region
    _
  $region17: #{ner_bilstm_crf_forward.1} parent=0 // pred_fallthru
    _
  // Predicated region
  $region18: #{ner_bilstm_crf_forward.1} parent=0 // pred_check
    _
  $region19: #{ner_bilstm_crf_forward.1} parent=0 // pred_check_branch
    %23 = sbr.rel (0) target = $region21
  $region20: #{ner_bilstm_crf_forward.1} parent=0 // pred_region
    _
  $region21: #{ner_bilstm_crf_forward.1} parent=0 // pred_fallthru
    _
  // Predicated region
  $region22: #{ner_bilstm_crf_forward.1} parent=0 // pred_check
    _
  $region23: #{ner_bilstm_crf_forward.1} parent=0 // pred_check_branch
    %25 = sbr.rel (0) target = $region25
  $region24: #{ner_bilstm_crf_forward.1} parent=0 // pred_region
    _
  $region25: #{ner_bilstm_crf_forward.1} parent=0 // pred_fallthru
    _
  // Predicated region
  $region26: #{ner_bilstm_crf_forward.1} parent=0 // pred_check
    _
  $region27: #{ner_bilstm_crf_forward.1} parent=0 // pred_check_branch
    %27 = sbr.rel (0) target = $region29
  $region28: #{ner_bilstm_crf_forward.1} parent=0 // pred_region
    _
  $region29: #{ner_bilstm_crf_forward.1} parent=0 // pred_fallthru
    _
  // Predicated region
  $region30: #{ner_bilstm_crf_forward.1} parent=0 // pred_check
    _
  $region31: #{ner_bilstm_crf_forward.1} parent=0 // pred_check_branch
    %29 = sbr.rel (0) target = $region33
  $region32: #{ner_bilstm_crf_forward.1} parent=0 // pred_region
    _
  $region33: #{ner_bilstm_crf_forward.1} parent=0 // pred_fallthru
    _
  // Predicated region
  $region34: #{ner_bilstm_crf_forward.1} parent=0 // pred_check
    _
  $region35: #{ner_bilstm_crf_forward.1} parent=0 // pred_check_branch
    %31 = sbr.rel (0) target = $region37
  $region36: #{ner_bilstm_crf_forward.1} parent=0 // pred_region
    _
  $region37: #{ner_bilstm_crf_forward.1} parent=0 // pred_fallthru
    _
  %v33 = vld [vmem:[%s2] sm:$0xf]
  %v34 = vld [vmem:[%s2 + $0x4] sm:$0xf]
  %v35 = vld [vmem:[%s2 + $0x8] sm:$0xf]
  %v36 = vld [vmem:[%s2 + $0xc] sm:$0xf]
  %v37 = vld [vmem:[%s0] sm:$0xf]
  %v38 = vunpack.c.l.bf16 %v37
  %v43 = vunpack.c.l.b16 %v33
  %v44 = vunpack.c.l.b16 %v34
  %v45 = vunpack.c.l.b16 %v35
  %v46 = vunpack.c.l.b16 %v36
  %v47 = vpack.c.b16 %v44, %v43
  %v48 = vpack.c.b16 %v46, %v45
  %vm51 = vcmask 261120
  %v53 = vsel %vm51, 0, 0
  %55 = vmatprep.subr.bf16.mxu0 0
  %56 = vmatpush1.bf16.msra.mxu0 %v47
  %57 = vmatprep.subr.bf16.mxu0 0
  %58 = vmatpush1.bf16.msra.mxu0 %v48
  %59 = vmatprep.subr.bf16.mxu0 0
  %60 = vmatpush1.bf16.msra.mxu0 0
  %61 = vmatprep.subr.bf16.mxu0 0
  %62 = vmatpush1.bf16.msra.mxu0 0
  %63 = vmatprep.subr.bf16.mxu0 0
  %64 = vmatpush1.bf16.msra.mxu0 0
  %65 = vmatprep.subr.bf16.mxu0 0
  %66 = vmatpush1.bf16.msra.mxu0 0
  %67 = vmatprep.subr.bf16.mxu0 0
  %68 = vmatpush1.bf16.msra.mxu0 0
  %69 = vmatprep.subr.bf16.mxu0 0
  %70 = vmatpush1.bf16.msra.mxu0 0
  %71 = vmatprep.subr.bf16.mxu0 0
  %72 = vmatpush1.bf16.msra.mxu0 0
  %73 = vmatprep.subr.bf16.mxu0 0
  %74 = vmatpush1.bf16.msra.mxu0 0
  %75 = vmatprep.subr.bf16.mxu0 0
  %76 = vmatpush1.bf16.msra.mxu0 0
  %77 = vmatprep.subr.bf16.mxu0 0
  %78 = vmatpush1.bf16.msra.mxu0 0
  %79 = vmatprep.subr.bf16.mxu0 0
  %80 = vmatpush1.bf16.msra.mxu0 0
  %81 = vmatprep.subr.bf16.mxu0 0
  %82 = vmatpush1.bf16.msra.mxu0 0
  %83 = vmatprep.subr.bf16.mxu0 0
  %84 = vmatpush1.bf16.msra.mxu0 0
  %85 = vmatprep.subr.bf16.mxu0 0
  %86 = vmatpush1.bf16.msra.mxu0 0
  %87 = vmatprep.mubr.bf16.mxu0 0
  %88 = vmatmul.mubr.bf16.gmra.mrb[0].mxu0 %v53
  %v89 = vpop.f32.mrb[0].mxu0
  %v90 = vadd.f32 0.0, %v89
  %v91 = vpop.f32.mrb[0].mxu0
  %v92 = vpop.f32.mrb[0].mxu0
  %v93 = vpop.f32.mrb[0].mxu0
  %94 = vdwg.mxu0
  %v95 = vadd.f32 %v38, %v90
  %v96 = vxor.u32 %v95, 2147483648
  %v97 = vmul.f32 %v96, 1.442695
  %v98 = vpow.pop %v97
  %v99 = vadd.f32 %v98, 1.0
  %v100 = vrcp.pop %v99
  %v101 = vmul.f32 1.0, %v100
  %v102 = vtanh.pop %v95
  %v103 = vmul.f32 %v101, 0.0
  %105 = vrot.lane.b32.xlu0 %v102, 32
  %v106 = vpop.permute.xlu0 %105
  %v108 = vmul.f32 %v101, %v106
  %110 = vrot.lane.b32.xlu0 %v108, 32
  %v111 = vpop.permute.xlu0 %110
  %v113 = vadd.f32 %v103, %v111
  %v114 = vtanh.pop %v113
  %116 = vrot.lane.b32.xlu0 %v114, 32
  %v117 = vpop.permute.xlu0 %116
  %v119 = vmul.f32 %v101, %v117
  %121 = vrot.lane.b32.xlu0 %v119, 64
  %v122 = vpop.permute.xlu0 %121
  %vm124 = vcmask 130048
  %125 = vst.msk [vmem:[#allocation2] sm:$0xff] %vm124, %v122
  %126 = vrot.lane.b32.xlu0 %v119, 48
  %v127 = vpop.permute.xlu0 %126
  %s129 = scalar_lea.vmem [#allocation3], 56
  %130 = vst.msk [vmem:[%s129] sm:$0xff] %vm124, %v127
  %s131 = scalar_lea.vmem %s0, 4
  %v132 = vld [vmem:[%s131] sm:$0xf]
  %v133 = vunpack.c.l.bf16 %v132
  %v134 = vpack.c.bf16 %v119, %v119
  %136 = vrot.lane.b32.xlu0 %v134, 64
  %v137 = vpop.permute.xlu0 %136
  %v139 = vsel %vm51, %v137, 0
  %141 = vmatprep.subr.bf16.mxu0 0
  %142 = vmatpush1.bf16.msra.mxu0 %v47
  %143 = vmatprep.subr.bf16.mxu0 0
  %144 = vmatpush1.bf16.msra.mxu0 %v48
  %145 = vmatprep.subr.bf16.mxu0 0
  %146 = vmatpush1.bf16.msra.mxu0 0
  %147 = vmatprep.subr.bf16.mxu0 0
  %148 = vmatpush1.bf16.msra.mxu0 0
  %149 = vmatprep.subr.bf16.mxu0 0
  %150 = vmatpush1.bf16.msra.mxu0 0
  %151 = vmatprep.subr.bf16.mxu0 0
  %152 = vmatpush1.bf16.msra.mxu0 0
  %153 = vmatprep.subr.bf16.mxu0 0
  %154 = vmatpush1.bf16.msra.mxu0 0
  %155 = vmatprep.subr.bf16.mxu0 0
  %156 = vmatpush1.bf16.msra.mxu0 0
  %157 = vmatprep.subr.bf16.mxu0 0
  %158 = vmatpush1.bf16.msra.mxu0 0
  %159 = vmatprep.subr.bf16.mxu0 0
  %160 = vmatpush1.bf16.msra.mxu0 0
  %161 = vmatprep.subr.bf16.mxu0 0
  %162 = vmatpush1.bf16.msra.mxu0 0
  %163 = vmatprep.subr.bf16.mxu0 0
  %164 = vmatpush1.bf16.msra.mxu0 0
  %165 = vmatprep.subr.bf16.mxu0 0
  %166 = vmatpush1.bf16.msra.mxu0 0
  %167 = vmatprep.subr.bf16.mxu0 0
  %168 = vmatpush1.bf16.msra.mxu0 0
  %169 = vmatprep.subr.bf16.mxu0 0
  %170 = vmatpush1.bf16.msra.mxu0 0
  %171 = vmatprep.subr.bf16.mxu0 0
  %172 = vmatpush1.bf16.msra.mxu0 0
  %173 = vmatprep.mubr.bf16.mxu0 0
  %174 = vmatmul.mubr.bf16.gmra.mrb[0].mxu0 %v139
  %v175 = vpop.f32.mrb[0].mxu0
  %v176 = vadd.f32 0.0, %v175
  %v177 = vpop.f32.mrb[0].mxu0
  %v178 = vpop.f32.mrb[0].mxu0
  %v179 = vpop.f32.mrb[0].mxu0
  %180 = vdwg.mxu0
  %v181 = vadd.f32 %v133, %v176
  %v182 = vxor.u32 %v181, 2147483648
  %v183 = vmul.f32 %v182, 1.442695
  %v184 = vpow.pop %v183
  %v185 = vadd.f32 %v184, 1.0
  %v186 = vrcp.pop %v185
  %v187 = vmul.f32 1.0, %v186
  %v188 = vtanh.pop %v181
  %v189 = vmul.f32 %v187, %v113
  %191 = vrot.lane.b32.xlu0 %v188, 32
  %v192 = vpop.permute.xlu0 %191
  %v194 = vmul.f32 %v187, %v192
  %196 = vrot.lane.b32.xlu0 %v194, 32
  %v197 = vpop.permute.xlu0 %196
  %v199 = vadd.f32 %v189, %v197
  %v200 = vtanh.pop %v199
  %202 = vrot.lane.b32.xlu0 %v200, 32
  %v203 = vpop.permute.xlu0 %202
  %v205 = vmul.f32 %v187, %v203
  %207 = vrot.lane.b32.xlu0 %v205, 64
  %v208 = vpop.permute.xlu0 %207
  %s210 = scalar_lea.vmem [#allocation2], 8
  %211 = vst.msk [vmem:[%s210] sm:$0xff] %vm124, %v208
  %212 = vrot.lane.b32.xlu0 %v205, 48
  %v213 = vpop.permute.xlu0 %212
  %s215 = scalar_lea.vmem [#allocation3], 48
  %216 = vst.msk [vmem:[%s215] sm:$0xff] %vm124, %v213
  %s217 = scalar_lea.vmem %s0, 8
  %v218 = vld [vmem:[%s217] sm:$0xf]
  %v219 = vunpack.c.l.bf16 %v218
  %v220 = vpack.c.bf16 %v205, %v205
  %222 = vrot.lane.b32.xlu0 %v220, 64
  %v223 = vpop.permute.xlu0 %222
  %v225 = vsel %vm51, %v223, 0
  %227 = vmatprep.subr.bf16.mxu0 0
  %228 = vmatpush1.bf16.msra.mxu0 %v47
  %229 = vmatprep.subr.bf16.mxu0 0
  %230 = vmatpush1.bf16.msra.mxu0 %v48
  %231 = vmatprep.subr.bf16.mxu0 0
  %232 = vmatpush1.bf16.msra.mxu0 0
  %233 = vmatprep.subr.bf16.mxu0 0
  %234 = vmatpush1.bf16.msra.mxu0 0
  %235 = vmatprep.subr.bf16.mxu0 0
  %236 = vmatpush1.bf16.msra.mxu0 0
  %237 = vmatprep.subr.bf16.mxu0 0
  %238 = vmatpush1.bf16.msra.mxu0 0
  %239 = vmatprep.subr.bf16.mxu0 0
  %240 = vmatpush1.bf16.msra.mxu0 0
  %241 = vmatprep.subr.bf16.mxu0 0
  %242 = vmatpush1.bf16.msra.mxu0 0
  %243 = vmatprep.subr.bf16.mxu0 0
  %244 = vmatpush1.bf16.msra.mxu0 0
  %245 = vmatprep.subr.bf16.mxu0 0
  %246 = vmatpush1.bf16.msra.mxu0 0
  %247 = vmatprep.subr.bf16.mxu0 0
  %248 = vmatpush1.bf16.msra.mxu0 0
  %249 = vmatprep.subr.bf16.mxu0 0
  %250 = vmatpush1.bf16.msra.mxu0 0
  %251 = vmatprep.subr.bf16.mxu0 0
  %252 = vmatpush1.bf16.msra.mxu0 0
  %253 = vmatprep.subr.bf16.mxu0 0
  %254 = vmatpush1.bf16.msra.mxu0 0
  %255 = vmatprep.subr.bf16.mxu0 0
  %256 = vmatpush1.bf16.msra.mxu0 0
  %257 = vmatprep.subr.bf16.mxu0 0
  %258 = vmatpush1.bf16.msra.mxu0 0
  %259 = vmatprep.mubr.bf16.mxu0 0
  %260 = vmatmul.mubr.bf16.gmra.mrb[0].mxu0 %v225
  %v261 = vpop.f32.mrb[0].mxu0
  %v262 = vadd.f32 0.0, %v261
  %v263 = vpop.f32.mrb[0].mxu0
  %v264 = vpop.f32.mrb[0].mxu0
  %v265 = vpop.f32.mrb[0].mxu0
  %266 = vdwg.mxu0
  %v267 = vadd.f32 %v219, %v262
  %v268 = vxor.u32 %v267, 2147483648
  %v269 = vmul.f32 %v268, 1.442695
  %v270 = vpow.pop %v269
  %v271 = vadd.f32 %v270, 1.0
  %v272 = vrcp.pop %v271
  %v273 = vmul.f32 1.0, %v272
  %v274 = vtanh.pop %v267
  %v275 = vmul.f32 %v273, %v199
  %277 = vrot.lane.b32.xlu0 %v274, 32
  %v278 = vpop.permute.xlu0 %277
  %v280 = vmul.f32 %v273, %v278
  %282 = vrot.lane.b32.xlu0 %v280, 32
  %v283 = vpop.permute.xlu0 %282
  %v285 = vadd.f32 %v275, %v283
  %v286 = vtanh.pop %v285
  %288 = vrot.lane.b32.xlu0 %v286, 32
  %v289 = vpop.permute.xlu0 %288
  %v291 = vmul.f32 %v273, %v289
  %293 = vrot.lane.b32.xlu0 %v291, 64
  %v294 = vpop.permute.xlu0 %293
  %s296 = scalar_lea.vmem [#allocation2], 16
  %297 = vst.msk [vmem:[%s296] sm:$0xff] %vm124, %v294
  %298 = vrot.lane.b32.xlu0 %v291, 48
  %v299 = vpop.permute.xlu0 %298
  %s301 = scalar_lea.vmem [#allocation3], 40
  %302 = vst.msk [vmem:[%s301] sm:$0xff] %vm124, %v299
  %s303 = scalar_lea.vmem %s0, 12
  %v304 = vld [vmem:[%s303] sm:$0xf]
  %v305 = vunpack.c.l.bf16 %v304
  %v306 = vpack.c.bf16 %v291, %v291
  %308 = vrot.lane.b32.xlu0 %v306, 64
  %v309 = vpop.permute.xlu0 %308
  %v311 = vsel %vm51, %v309, 0
  %313 = vmatprep.subr.bf16.mxu0 0
  %314 = vmatpush1.bf16.msra.mxu0 %v47
  %315 = vmatprep.subr.bf16.mxu0 0
  %316 = vmatpush1.bf16.msra.mxu0 %v48
  %317 = vmatprep.subr.bf16.mxu0 0
  %318 = vmatpush1.bf16.msra.mxu0 0
  %319 = vmatprep.subr.bf16.mxu0 0
  %320 = vmatpush1.bf16.msra.mxu0 0
  %321 = vmatprep.subr.bf16.mxu0 0
  %322 = vmatpush1.bf16.msra.mxu0 0
  %323 = vmatprep.subr.bf16.mxu0 0
  %324 = vmatpush1.bf16.msra.mxu0 0
  %325 = vmatprep.subr.bf16.mxu0 0
  %326 = vmatpush1.bf16.msra.mxu0 0
  %327 = vmatprep.subr.bf16.mxu0 0
  %328 = vmatpush1.bf16.msra.mxu0 0
  %329 = vmatprep.subr.bf16.mxu0 0
  %330 = vmatpush1.bf16.msra.mxu0 0
  %331 = vmatprep.subr.bf16.mxu0 0
  %332 = vmatpush1.bf16.msra.mxu0 0
  %333 = vmatprep.subr.bf16.mxu0 0
  %334 = vmatpush1.bf16.msra.mxu0 0
  %335 = vmatprep.subr.bf16.mxu0 0
  %336 = vmatpush1.bf16.msra.mxu0 0
  %337 = vmatprep.subr.bf16.mxu0 0
  %338 = vmatpush1.bf16.msra.mxu0 0
  %339 = vmatprep.subr.bf16.mxu0 0
  %340 = vmatpush1.bf16.msra.mxu0 0
  %341 = vmatprep.subr.bf16.mxu0 0
  %342 = vmatpush1.bf16.msra.mxu0 0
  %343 = vmatprep.subr.bf16.mxu0 0
  %344 = vmatpush1.bf16.msra.mxu0 0
  %345 = vmatprep.mubr.bf16.mxu0 0
  %346 = vmatmul.mubr.bf16.gmra.mrb[0].mxu0 %v311
  %v347 = vpop.f32.mrb[0].mxu0
  %v348 = vadd.f32 0.0, %v347
  %v349 = vpop.f32.mrb[0].mxu0
  %v350 = vpop.f32.mrb[0].mxu0
  %v351 = vpop.f32.mrb[0].mxu0
  %352 = vdwg.mxu0
  %v353 = vadd.f32 %v305, %v348
  %v354 = vxor.u32 %v353, 2147483648
  %v355 = vmul.f32 %v354, 1.442695
  %v356 = vpow.pop %v355
  %v357 = vadd.f32 %v356, 1.0
  %v358 = vrcp.pop %v357
  %v359 = vmul.f32 1.0, %v358
  %v360 = vtanh.pop %v353
  %v361 = vmul.f32 %v359, %v285
  %363 = vrot.lane.b32.xlu0 %v360, 32
  %v364 = vpop.permute.xlu0 %363
  %v366 = vmul.f32 %v359, %v364
  %368 = vrot.lane.b32.xlu0 %v366, 32
  %v369 = vpop.permute.xlu0 %368
  %v371 = vadd.f32 %v361, %v369
  %v372 = vtanh.pop %v371
  %374 = vrot.lane.b32.xlu0 %v372, 32
  %v375 = vpop.permute.xlu0 %374
  %v377 = vmul.f32 %v359, %v375
  %379 = vrot.lane.b32.xlu0 %v377, 64
  %v380 = vpop.permute.xlu0 %379
  %s382 = scalar_lea.vmem [#allocation2], 24
  %383 = vst.msk [vmem:[%s382] sm:$0xff] %vm124, %v380
  %384 = vrot.lane.b32.xlu0 %v377, 48
  %v385 = vpop.permute.xlu0 %384
  %s387 = scalar_lea.vmem [#allocation3], 32
  %388 = vst.msk [vmem:[%s387] sm:$0xff] %vm124, %v385
  %s389 = scalar_lea.vmem %s0, 16
  %v390 = vld [vmem:[%s389] sm:$0xf]
  %v391 = vunpack.c.l.bf16 %v390
  %v392 = vpack.c.bf16 %v377, %v377
  %394 = vrot.lane.b32.xlu0 %v392, 64
  %v395 = vpop.permute.xlu0 %394
  %v397 = vsel %vm51, %v395, 0
  %399 = vmatprep.subr.bf16.mxu0 0
  %400 = vmatpush1.bf16.msra.mxu0 %v47
  %401 = vmatprep.subr.bf16.mxu0 0
  %402 = vmatpush1.bf16.msra.mxu0 %v48
  %403 = vmatprep.subr.bf16.mxu0 0
  %404 = vmatpush1.bf16.msra.mxu0 0
  %405 = vmatprep.subr.bf16.mxu0 0
  %406 = vmatpush1.bf16.msra.mxu0 0
  %407 = vmatprep.subr.bf16.mxu0 0
  %408 = vmatpush1.bf16.msra.mxu0 0
  %409 = vmatprep.subr.bf16.mxu0 0
  %410 = vmatpush1.bf16.msra.mxu0 0
  %411 = vmatprep.subr.bf16.mxu0 0
  %412 = vmatpush1.bf16.msra.mxu0 0
  %413 = vmatprep.subr.bf16.mxu0 0
  %414 = vmatpush1.bf16.msra.mxu0 0
  %415 = vmatprep.subr.bf16.mxu0 0
  %416 = vmatpush1.bf16.msra.mxu0 0
  %417 = vmatprep.subr.bf16.mxu0 0
  %418 = vmatpush1.bf16.msra.mxu0 0
  %419 = vmatprep.subr.bf16.mxu0 0
  %420 = vmatpush1.bf16.msra.mxu0 0
  %421 = vmatprep.subr.bf16.mxu0 0
  %422 = vmatpush1.bf16.msra.mxu0 0
  %423 = vmatprep.subr.bf16.mxu0 0
  %424 = vmatpush1.bf16.msra.mxu0 0
  %425 = vmatprep.subr.bf16.mxu0 0
  %426 = vmatpush1.bf16.msra.mxu0 0
  %427 = vmatprep.subr.bf16.mxu0 0
  %428 = vmatpush1.bf16.msra.mxu0 0
  %429 = vmatprep.subr.bf16.mxu0 0
  %430 = vmatpush1.bf16.msra.mxu0 0
  %431 = vmatprep.mubr.bf16.mxu0 0
  %432 = vmatmul.mubr.bf16.gmra.mrb[0].mxu0 %v397
  %v433 = vpop.f32.mrb[0].mxu0
  %v434 = vadd.f32 0.0, %v433
  %v435 = vpop.f32.mrb[0].mxu0
  %v436 = vpop.f32.mrb[0].mxu0
  %v437 = vpop.f32.mrb[0].mxu0
  %438 = vdwg.mxu0
  %v439 = vadd.f32 %v391, %v434
  %v440 = vxor.u32 %v439, 2147483648
  %v441 = vmul.f32 %v440, 1.442695
  %v442 = vpow.pop %v441
  %v443 = vadd.f32 %v442, 1.0
  %v444 = vrcp.pop %v443
  %v445 = vmul.f32 1.0, %v444
  %v446 = vtanh.pop %v439
  %v447 = vmul.f32 %v445, %v371
  %449 = vrot.lane.b32.xlu0 %v446, 32
  %v450 = vpop.permute.xlu0 %449
  %v452 = vmul.f32 %v445, %v450
  %454 = vrot.lane.b32.xlu0 %v452, 32
  %v455 = vpop.permute.xlu0 %454
  %v457 = vadd.f32 %v447, %v455
  %v458 = vtanh.pop %v457
  %460 = vrot.lane.b32.xlu0 %v458, 32
  %v461 = vpop.permute.xlu0 %460
  %v463 = vmul.f32 %v445, %v461
  %465 = vrot.lane.b32.xlu0 %v463, 64
  %v466 = vpop.permute.xlu0 %465
  %s468 = scalar_lea.vmem [#allocation2], 32
  %469 = vst.msk [vmem:[%s468] sm:$0xff] %vm124, %v466
  %470 = vrot.lane.b32.xlu0 %v463, 48
  %v471 = vpop.permute.xlu0 %470
  %s473 = scalar_lea.vmem [#allocation3], 24
  %474 = vst.msk [vmem:[%s473] sm:$0xff] %vm124, %v471
  %s475 = scalar_lea.vmem %s0, 20
  %v476 = vld [vmem:[%s475] sm:$0xf]
  %v477 = vunpack.c.l.bf16 %v476
  %v478 = vpack.c.bf16 %v463, %v463
  %480 = vrot.lane.b32.xlu0 %v478, 64
  %v481 = vpop.permute.xlu0 %480
  %v483 = vsel %vm51, %v481, 0
  %485 = vmatprep.subr.bf16.mxu0 0
  %486 = vmatpush1.bf16.msra.mxu0 %v47
  %487 = vmatprep.subr.bf16.mxu0 0
  %488 = vmatpush1.bf16.msra.mxu0 %v48
  %489 = vmatprep.subr.bf16.mxu0 0
  %490 = vmatpush1.bf16.msra.mxu0 0
  %491 = vmatprep.subr.bf16.mxu0 0
  %492 = vmatpush1.bf16.msra.mxu0 0
  %493 = vmatprep.subr.bf16.mxu0 0
  %494 = vmatpush1.bf16.msra.mxu0 0
  %495 = vmatprep.subr.bf16.mxu0 0
  %496 = vmatpush1.bf16.msra.mxu0 0
  %497 = vmatprep.subr.bf16.mxu0 0
  %498 = vmatpush1.bf16.msra.mxu0 0
  %499 = vmatprep.subr.bf16.mxu0 0
  %500 = vmatpush1.bf16.msra.mxu0 0
  %501 = vmatprep.subr.bf16.mxu0 0
  %502 = vmatpush1.bf16.msra.mxu0 0
  %503 = vmatprep.subr.bf16.mxu0 0
  %504 = vmatpush1.bf16.msra.mxu0 0
  %505 = vmatprep.subr.bf16.mxu0 0
  %506 = vmatpush1.bf16.msra.mxu0 0
  %507 = vmatprep.subr.bf16.mxu0 0
  %508 = vmatpush1.bf16.msra.mxu0 0
  %509 = vmatprep.subr.bf16.mxu0 0
  %510 = vmatpush1.bf16.msra.mxu0 0
  %511 = vmatprep.subr.bf16.mxu0 0
  %512 = vmatpush1.bf16.msra.mxu0 0
  %513 = vmatprep.subr.bf16.mxu0 0
  %514 = vmatpush1.bf16.msra.mxu0 0
  %515 = vmatprep.subr.bf16.mxu0 0
  %516 = vmatpush1.bf16.msra.mxu0 0
  %517 = vmatprep.mubr.bf16.mxu0 0
  %518 = vmatmul.mubr.bf16.gmra.mrb[0].mxu0 %v483
  %v519 = vpop.f32.mrb[0].mxu0
  %v520 = vadd.f32 0.0, %v519
  %v521 = vpop.f32.mrb[0].mxu0
  %v522 = vpop.f32.mrb[0].mxu0
  %v523 = vpop.f32.mrb[0].mxu0
  %524 = vdwg.mxu0
  %v525 = vadd.f32 %v477, %v520
  %v526 = vxor.u32 %v525, 2147483648
  %v527 = vmul.f32 %v526, 1.442695
  %v528 = vpow.pop %v527
  %v529 = vadd.f32 %v528, 1.0
  %v530 = vrcp.pop %v529
  %v531 = vmul.f32 1.0, %v530
  %v532 = vtanh.pop %v525
  %v533 = vmul.f32 %v531, %v457
  %535 = vrot.lane.b32.xlu0 %v532, 32
  %v536 = vpop.permute.xlu0 %535
  %v538 = vmul.f32 %v531, %v536
  %540 = vrot.lane.b32.xlu0 %v538, 32
  %v541 = vpop.permute.xlu0 %540
  %v543 = vadd.f32 %v533, %v541
  %v544 = vtanh.pop %v543
  %546 = vrot.lane.b32.xlu0 %v544, 32
  %v547 = vpop.permute.xlu0 %546
  %v549 = vmul.f32 %v531, %v547
  %551 = vrot.lane.b32.xlu0 %v549, 64
  %v552 = vpop.permute.xlu0 %551
  %s554 = scalar_lea.vmem [#allocation2], 40
  %555 = vst.msk [vmem:[%s554] sm:$0xff] %vm124, %v552
  %556 = vrot.lane.b32.xlu0 %v549, 48
  %v557 = vpop.permute.xlu0 %556
  %s559 = scalar_lea.vmem [#allocation3], 16
  %560 = vst.msk [vmem:[%s559] sm:$0xff] %vm124, %v557
  %s561 = scalar_lea.vmem %s0, 24
  %v562 = vld [vmem:[%s561] sm:$0xf]
  %v563 = vunpack.c.l.bf16 %v562
  %v564 = vpack.c.bf16 %v549, %v549
  %566 = vrot.lane.b32.xlu0 %v564, 64
  %v567 = vpop.permute.xlu0 %566
  %v569 = vsel %vm51, %v567, 0
  %571 = vmatprep.subr.bf16.mxu0 0
  %572 = vmatpush1.bf16.msra.mxu0 %v47
  %573 = vmatprep.subr.bf16.mxu0 0
  %574 = vmatpush1.bf16.msra.mxu0 %v48
  %575 = vmatprep.subr.bf16.mxu0 0
  %576 = vmatpush1.bf16.msra.mxu0 0
  %577 = vmatprep.subr.bf16.mxu0 0
  %578 = vmatpush1.bf16.msra.mxu0 0
  %579 = vmatprep.subr.bf16.mxu0 0
  %580 = vmatpush1.bf16.msra.mxu0 0
  %581 = vmatprep.subr.bf16.mxu0 0
  %582 = vmatpush1.bf16.msra.mxu0 0
  %583 = vmatprep.subr.bf16.mxu0 0
  %584 = vmatpush1.bf16.msra.mxu0 0
  %585 = vmatprep.subr.bf16.mxu0 0
  %586 = vmatpush1.bf16.msra.mxu0 0
  %587 = vmatprep.subr.bf16.mxu0 0
  %588 = vmatpush1.bf16.msra.mxu0 0
  %589 = vmatprep.subr.bf16.mxu0 0
  %590 = vmatpush1.bf16.msra.mxu0 0
  %591 = vmatprep.subr.bf16.mxu0 0
  %592 = vmatpush1.bf16.msra.mxu0 0
  %593 = vmatprep.subr.bf16.mxu0 0
  %594 = vmatpush1.bf16.msra.mxu0 0
  %595 = vmatprep.subr.bf16.mxu0 0
  %596 = vmatpush1.bf16.msra.mxu0 0
  %597 = vmatprep.subr.bf16.mxu0 0
  %598 = vmatpush1.bf16.msra.mxu0 0
  %599 = vmatprep.subr.bf16.mxu0 0
  %600 = vmatpush1.bf16.msra.mxu0 0
  %601 = vmatprep.subr.bf16.mxu0 0
  %602 = vmatpush1.bf16.msra.mxu0 0
  %603 = vmatprep.mubr.bf16.mxu0 0
  %604 = vmatmul.mubr.bf16.gmra.mrb[0].mxu0 %v569
  %v605 = vpop.f32.mrb[0].mxu0
  %v606 = vadd.f32 0.0, %v605
  %v607 = vpop.f32.mrb[0].mxu0
  %v608 = vpop.f32.mrb[0].mxu0
  %v609 = vpop.f32.mrb[0].mxu0
  %610 = vdwg.mxu0
  %v611 = vadd.f32 %v563, %v606
  %v612 = vxor.u32 %v611, 2147483648
  %v613 = vmul.f32 %v612, 1.442695
  %v614 = vpow.pop %v613
  %v615 = vadd.f32 %v614, 1.0
  %v616 = vrcp.pop %v615
  %v617 = vmul.f32 1.0, %v616
  %v618 = vtanh.pop %v611
  %v619 = vmul.f32 %v617, %v543
  %621 = vrot.lane.b32.xlu0 %v618, 32
  %v622 = vpop.permute.xlu0 %621
  %v624 = vmul.f32 %v617, %v622
  %626 = vrot.lane.b32.xlu0 %v624, 32
  %v627 = vpop.permute.xlu0 %626
  %v629 = vadd.f32 %v619, %v627
  %v630 = vtanh.pop %v629
  %632 = vrot.lane.b32.xlu0 %v630, 32
  %v633 = vpop.permute.xlu0 %632
  %v635 = vmul.f32 %v617, %v633
  %637 = vrot.lane.b32.xlu0 %v635, 64
  %v638 = vpop.permute.xlu0 %637
  %s640 = scalar_lea.vmem [#allocation2], 48
  %641 = vst.msk [vmem:[%s640] sm:$0xff] %vm124, %v638
  %642 = vrot.lane.b32.xlu0 %v635, 48
  %v643 = vpop.permute.xlu0 %642
  %s645 = scalar_lea.vmem [#allocation3], 8
  %646 = vst.msk [vmem:[%s645] sm:$0xff] %vm124, %v643
  %s647 = scalar_lea.vmem %s0, 28
  %v648 = vld [vmem:[%s647] sm:$0xf]
  %v649 = vunpack.c.l.bf16 %v648
  %v650 = vpack.c.bf16 %v635, %v635
  %652 = vrot.lane.b32.xlu0 %v650, 64
  %v653 = vpop.permute.xlu0 %652
  %v655 = vsel %vm51, %v653, 0
  %657 = vmatprep.subr.bf16.mxu0 0
  %658 = vmatpush1.bf16.msra.mxu0 %v47
  %659 = vmatprep.subr.bf16.mxu0 0
  %660 = vmatpush1.bf16.msra.mxu0 %v48
  %661 = vmatprep.subr.bf16.mxu0 0
  %662 = vmatpush1.bf16.msra.mxu0 0
  %663 = vmatprep.subr.bf16.mxu0 0
  %664 = vmatpush1.bf16.msra.mxu0 0
  %665 = vmatprep.subr.bf16.mxu0 0
  %666 = vmatpush1.bf16.msra.mxu0 0
  %667 = vmatprep.subr.bf16.mxu0 0
  %668 = vmatpush1.bf16.msra.mxu0 0
  %669 = vmatprep.subr.bf16.mxu0 0
  %670 = vmatpush1.bf16.msra.mxu0 0
  %671 = vmatprep.subr.bf16.mxu0 0
  %672 = vmatpush1.bf16.msra.mxu0 0
  %673 = vmatprep.subr.bf16.mxu0 0
  %674 = vmatpush1.bf16.msra.mxu0 0
  %675 = vmatprep.subr.bf16.mxu0 0
  %676 = vmatpush1.bf16.msra.mxu0 0
  %677 = vmatprep.subr.bf16.mxu0 0
  %678 = vmatpush1.bf16.msra.mxu0 0
  %679 = vmatprep.subr.bf16.mxu0 0
  %680 = vmatpush1.bf16.msra.mxu0 0
  %681 = vmatprep.subr.bf16.mxu0 0
  %682 = vmatpush1.bf16.msra.mxu0 0
  %683 = vmatprep.subr.bf16.mxu0 0
  %684 = vmatpush1.bf16.msra.mxu0 0
  %685 = vmatprep.subr.bf16.mxu0 0
  %686 = vmatpush1.bf16.msra.mxu0 0
  %687 = vmatprep.subr.bf16.mxu0 0
  %688 = vmatpush1.bf16.msra.mxu0 0
  %689 = vmatprep.mubr.bf16.mxu0 0
  %690 = vmatmul.mubr.bf16.gmra.mrb[0].mxu0 %v655
  %v691 = vpop.f32.mrb[0].mxu0
  %v692 = vadd.f32 0.0, %v691
  %v693 = vpop.f32.mrb[0].mxu0
  %v694 = vpop.f32.mrb[0].mxu0
  %v695 = vpop.f32.mrb[0].mxu0
  %696 = vdwg.mxu0
  %v697 = vadd.f32 %v649, %v692
  %v698 = vxor.u32 %v697, 2147483648
  %v699 = vmul.f32 %v698, 1.442695
  %v700 = vpow.pop %v699
  %v701 = vadd.f32 %v700, 1.0
  %v702 = vrcp.pop %v701
  %v703 = vmul.f32 1.0, %v702
  %v704 = vtanh.pop %v697
  %v705 = vmul.f32 %v703, %v629
  %707 = vrot.lane.b32.xlu0 %v704, 32
  %v708 = vpop.permute.xlu0 %707
  %v710 = vmul.f32 %v703, %v708
  %712 = vrot.lane.b32.xlu0 %v710, 32
  %v713 = vpop.permute.xlu0 %712
  %v715 = vadd.f32 %v705, %v713
  %v716 = vtanh.pop %v715
  %718 = vrot.lane.b32.xlu0 %v716, 32
  %v719 = vpop.permute.xlu0 %718
  %v721 = vmul.f32 %v703, %v719
  %723 = vrot.lane.b32.xlu0 %v721, 64
  %v724 = vpop.permute.xlu0 %723
  %s726 = scalar_lea.vmem [#allocation2], 56
  %727 = vst.msk [vmem:[%s726] sm:$0xff] %vm124, %v724
  %728 = vrot.lane.b32.xlu0 %v721, 48
  %v729 = vpop.permute.xlu0 %728
  %731 = vst.msk [vmem:[#allocation3] sm:$0xff] %vm124, %v729
  %v732 = vld [vmem:[#allocation2] sm:$0xff]
  %v733 = vld [vmem:[#allocation2 + $0x8] sm:$0xff]
  %v734 = vld [vmem:[#allocation2 + $0x10] sm:$0xff]
  %v735 = vld [vmem:[#allocation2 + $0x18] sm:$0xff]
  %v736 = vld [vmem:[#allocation2 + $0x20] sm:$0xff]
  %v737 = vld [vmem:[#allocation2 + $0x28] sm:$0xff]
  %v738 = vld [vmem:[#allocation2 + $0x30] sm:$0xff]
  %v739 = vld [vmem:[#allocation2 + $0x38] sm:$0xff]
  %v740 = vpack.c.bf16 %v733, %v732
  %v741 = vpack.c.bf16 %v735, %v734
  %v742 = vpack.c.bf16 %v737, %v736
  %v743 = vpack.c.bf16 %v739, %v738
  %v744 = vld [vmem:[%s3] sm:$0xf]
  %v745 = vld [vmem:[%s3 + $0x4] sm:$0xf]
  %v746 = vld [vmem:[#allocation3] sm:$0xff]
  %v747 = vld [vmem:[#allocation3 + $0x8] sm:$0xff]
  %v748 = vld [vmem:[#allocation3 + $0x10] sm:$0xff]
  %v749 = vld [vmem:[#allocation3 + $0x18] sm:$0xff]
  %v750 = vld [vmem:[#allocation3 + $0x20] sm:$0xff]
  %v751 = vld [vmem:[#allocation3 + $0x28] sm:$0xff]
  %v752 = vld [vmem:[#allocation3 + $0x30] sm:$0xff]
  %v753 = vld [vmem:[#allocation3 + $0x38] sm:$0xff]
  %v754 = vpack.c.bf16 %v747, %v746
  %v755 = vpack.c.bf16 %v749, %v748
  %v756 = vpack.c.bf16 %v751, %v750
  %v757 = vpack.c.bf16 %v753, %v752
  %v758 = vld [vmem:[%s4] sm:$0xf]
  %v759 = vld [vmem:[%s4 + $0x4] sm:$0xf]
  %v762 = vunpack.c.l.b16 %v758
  %v763 = vunpack.c.l.b16 %v759
  %v764 = vpack.c.b16 %v763, %v762
  %v767 = vsel %vm124, %v754, 0
  %v770 = vsel %vm124, %v755, 0
  %v773 = vsel %vm124, %v756, 0
  %v776 = vsel %vm124, %v757, 0
  %778 = vmatprep.subr.bf16.mxu0 0
  %779 = vmatpush1.bf16.msra.mxu0 %v764
  %780 = vmatprep.subr.bf16.mxu0 0
  %781 = vmatpush1.bf16.msra.mxu0 0
  %782 = vmatprep.subr.bf16.mxu0 0
  %783 = vmatpush1.bf16.msra.mxu0 0
  %784 = vmatprep.subr.bf16.mxu0 0
  %785 = vmatpush1.bf16.msra.mxu0 0
  %786 = vmatprep.subr.bf16.mxu0 0
  %787 = vmatpush1.bf16.msra.mxu0 0
  %788 = vmatprep.subr.bf16.mxu0 0
  %789 = vmatpush1.bf16.msra.mxu0 0
  %790 = vmatprep.subr.bf16.mxu0 0
  %791 = vmatpush1.bf16.msra.mxu0 0
  %792 = vmatprep.subr.bf16.mxu0 0
  %793 = vmatpush1.bf16.msra.mxu0 0
  %794 = vmatprep.subr.bf16.mxu0 0
  %795 = vmatpush1.bf16.msra.mxu0 0
  %796 = vmatprep.subr.bf16.mxu0 0
  %797 = vmatpush1.bf16.msra.mxu0 0
  %798 = vmatprep.subr.bf16.mxu0 0
  %799 = vmatpush1.bf16.msra.mxu0 0
  %800 = vmatprep.subr.bf16.mxu0 0
  %801 = vmatpush1.bf16.msra.mxu0 0
  %802 = vmatprep.subr.bf16.mxu0 0
  %803 = vmatpush1.bf16.msra.mxu0 0
  %804 = vmatprep.subr.bf16.mxu0 0
  %805 = vmatpush1.bf16.msra.mxu0 0
  %806 = vmatprep.subr.bf16.mxu0 0
  %807 = vmatpush1.bf16.msra.mxu0 0
  %808 = vmatprep.subr.bf16.mxu0 0
  %809 = vmatpush1.bf16.msra.mxu0 0
  %810 = vmatprep.mubr.bf16.mxu0 0
  %811 = vmatmul.mubr.bf16.gmra.mrb[0].mxu0 %v767
  %v812 = vpop.f32.mrb[0].mxu0
  %v813 = vadd.f32 0.0, %v812
  %v814 = vpop.f32.mrb[0].mxu0
  %v815 = vpop.f32.mrb[0].mxu0
  %v816 = vadd.f32 0.0, %v815
  %v817 = vpop.f32.mrb[0].mxu0
  %818 = vmatprep.mubr.bf16.mxu0 0
  %819 = vmatmul.mubr.bf16.gmra.mrb[0].mxu0 %v770
  %v820 = vpop.f32.mrb[0].mxu0
  %v821 = vadd.f32 0.0, %v820
  %v822 = vpop.f32.mrb[0].mxu0
  %v823 = vpop.f32.mrb[0].mxu0
  %v824 = vadd.f32 0.0, %v823
  %v825 = vpop.f32.mrb[0].mxu0
  %826 = vmatprep.mubr.bf16.mxu0 0
  %827 = vmatmul.mubr.bf16.gmra.mrb[0].mxu0 %v773
  %v828 = vpop.f32.mrb[0].mxu0
  %v829 = vadd.f32 0.0, %v828
  %v830 = vpop.f32.mrb[0].mxu0
  %v831 = vpop.f32.mrb[0].mxu0
  %v832 = vadd.f32 0.0, %v831
  %v833 = vpop.f32.mrb[0].mxu0
  %834 = vmatprep.mubr.bf16.mxu0 0
  %835 = vmatmul.mubr.bf16.gmra.mrb[0].mxu0 %v776
  %v836 = vpop.f32.mrb[0].mxu0
  %v837 = vadd.f32 0.0, %v836
  %v838 = vpop.f32.mrb[0].mxu0
  %v839 = vpop.f32.mrb[0].mxu0
  %v840 = vadd.f32 0.0, %v839
  %v841 = vpop.f32.mrb[0].mxu0
  %842 = vdwg.mxu0
  %v845 = vunpack.c.l.b16 %v744
  %v846 = vunpack.c.l.b16 %v745
  %v847 = vpack.c.b16 %v846, %v845
  %v850 = vsel %vm124, %v740, 0
  %v853 = vsel %vm124, %v741, 0
  %v856 = vsel %vm124, %v742, 0
  %v859 = vsel %vm124, %v743, 0
  %861 = vmatprep.subr.bf16.mxu0 0
  %862 = vmatpush1.bf16.msra.mxu0 %v847
  %863 = vmatprep.subr.bf16.mxu0 0
  %864 = vmatpush1.bf16.msra.mxu0 0
  %865 = vmatprep.subr.bf16.mxu0 0
  %866 = vmatpush1.bf16.msra.mxu0 0
  %867 = vmatprep.subr.bf16.mxu0 0
  %868 = vmatpush1.bf16.msra.mxu0 0
  %869 = vmatprep.subr.bf16.mxu0 0
  %870 = vmatpush1.bf16.msra.mxu0 0
  %871 = vmatprep.subr.bf16.mxu0 0
  %872 = vmatpush1.bf16.msra.mxu0 0
  %873 = vmatprep.subr.bf16.mxu0 0
  %874 = vmatpush1.bf16.msra.mxu0 0
  %875 = vmatprep.subr.bf16.mxu0 0
  %876 = vmatpush1.bf16.msra.mxu0 0
  %877 = vmatprep.subr.bf16.mxu0 0
  %878 = vmatpush1.bf16.msra.mxu0 0
  %879 = vmatprep.subr.bf16.mxu0 0
  %880 = vmatpush1.bf16.msra.mxu0 0
  %881 = vmatprep.subr.bf16.mxu0 0
  %882 = vmatpush1.bf16.msra.mxu0 0
  %883 = vmatprep.subr.bf16.mxu0 0
  %884 = vmatpush1.bf16.msra.mxu0 0
  %885 = vmatprep.subr.bf16.mxu0 0
  %886 = vmatpush1.bf16.msra.mxu0 0
  %887 = vmatprep.subr.bf16.mxu0 0
  %888 = vmatpush1.bf16.msra.mxu0 0
  %889 = vmatprep.subr.bf16.mxu0 0
  %890 = vmatpush1.bf16.msra.mxu0 0
  %891 = vmatprep.subr.bf16.mxu0 0
  %892 = vmatpush1.bf16.msra.mxu0 0
  %893 = vmatprep.mubr.bf16.mxu0 0
  %894 = vmatmul.mubr.bf16.gmra.mrb[0].mxu0 %v850
  %v895 = vpop.f32.mrb[0].mxu0
  %v896 = vadd.f32 %v813, %v895
  %v897 = vpop.f32.mrb[0].mxu0
  %v898 = vpop.f32.mrb[0].mxu0
  %v899 = vadd.f32 %v816, %v898
  %v900 = vpop.f32.mrb[0].mxu0
  %901 = vmatprep.mubr.bf16.mxu0 0
  %902 = vmatmul.mubr.bf16.gmra.mrb[0].mxu0 %v853
  %v903 = vpop.f32.mrb[0].mxu0
  %v904 = vadd.f32 %v821, %v903
  %v905 = vpop.f32.mrb[0].mxu0
  %v906 = vpop.f32.mrb[0].mxu0
  %v907 = vadd.f32 %v824, %v906
  %v908 = vpop.f32.mrb[0].mxu0
  %909 = vmatprep.mubr.bf16.mxu0 0
  %910 = vmatmul.mubr.bf16.gmra.mrb[0].mxu0 %v856
  %v911 = vpop.f32.mrb[0].mxu0
  %v912 = vadd.f32 %v829, %v911
  %v913 = vpop.f32.mrb[0].mxu0
  %v914 = vpop.f32.mrb[0].mxu0
  %v915 = vadd.f32 %v832, %v914
  %v916 = vpop.f32.mrb[0].mxu0
  %917 = vmatprep.mubr.bf16.mxu0 0
  %918 = vmatmul.mubr.bf16.gmra.mrb[0].mxu0 %v859
  %v919 = vpop.f32.mrb[0].mxu0
  %v920 = vadd.f32 %v837, %v919
  %v921 = vpop.f32.mrb[0].mxu0
  %v922 = vpop.f32.mrb[0].mxu0
  %v923 = vadd.f32 %v840, %v922
  %v924 = vpop.f32.mrb[0].mxu0
  %925 = vdwg.mxu0
  %v926 = vld [vmem:[%s5] sm:$0x1]
  %v928 = vlaneseq
  %v929 = vshrl.u32 %v928, 7
  %v930 = vsub.s32 0, %v929
  %v931 = vrot.slane %v926, %v930
  %v933 = vadd.f32 %v896, %v931
  %v934 = vadd.f32 %v899, %v931
  %v935 = vadd.f32 %v904, %v931
  %v936 = vadd.f32 %v907, %v931
  %v937 = vadd.f32 %v912, %v931
  %v938 = vadd.f32 %v915, %v931
  %v939 = vadd.f32 %v920, %v931
  %v940 = vadd.f32 %v923, %v931
  %vm941 = vcmask 39936
  %942 = vst.msk [vmem:[#allocation4] sm:$0xff] %vm941, %v933
  %943 = vst.msk [vmem:[#allocation4 + $0x8] sm:$0xff] %vm941, %v934
  %944 = vst.msk [vmem:[#allocation4 + $0x10] sm:$0xff] %vm941, %v935
  %945 = vst.msk [vmem:[#allocation4 + $0x18] sm:$0xff] %vm941, %v936
  %946 = vst.msk [vmem:[#allocation4 + $0x20] sm:$0xff] %vm941, %v937
  %947 = vst.msk [vmem:[#allocation4 + $0x28] sm:$0xff] %vm941, %v938
  %948 = vst.msk [vmem:[#allocation4 + $0x30] sm:$0xff] %vm941, %v939
  %949 = vst.msk [vmem:[#allocation4 + $0x38] sm:$0xff] %vm941, %v940
  %v950 = vld [vmem:[%s8] sm:$0x1f]
  %v951 = vlaneseq
  %v952 = vshrl.u32 %v951, 7
  %v953 = vlaneseq
  %v954 = vand.u32 %v953, 127
  %v955 = vld [vmem:[%s6] sm:$0x1]
  %v956 = vld [vmem:[#allocation4] sm:$0xff]
  %v957 = vld [vmem:[%s1] sm:$0xff]
  %959 = vset.pattern.permute.xlu0 0
  %960 = vperm.xlu0 %959, %v957
  %v961 = vpop.permute.xlu0 %960
  %v963 = vmul.f32 %v956, %v961
  %v965 = vlaneseq
  %v966 = vshrl.u32 %v965, 7
  %v967 = vsub.s32 0, %v966
  %v968 = vrot.slane %v955, %v967
  %v970 = vadd.f32 %v968, %v963
  %s971 = scalar_lea.vmem [#allocation4], 8
  %v972 = vld [vmem:[%s971] sm:$0xff]
  %s973 = scalar_lea.vmem %s1, 8
  %v974 = vld [vmem:[%s973] sm:$0xff]
  %vm975 = vcmp.gt.f32.partialorder %v974, 0.5
  %v976 = vlaneseq
  %v977 = vshrl.u32 %v976, 7
  %v978 = vsub.s32 0, %v977
  %v979 = vrot.slane %v970, %v978
  %981 = vbcast.lane.b32.xlu0 %v979, 256
  %v982 = vpop.permute.xlu0 %981
  %v983 = vlaneseq
  %v984 = vshrl.u32 %v983, 7
  %v985 = vsub.s32 1, %v984
  %v986 = vrot.slane %v970, %v985
  %988 = vbcast.lane.b32.xlu0 %v986, 256
  %v989 = vpop.permute.xlu0 %988
  %v990 = vlaneseq
  %v991 = vshrl.u32 %v990, 7
  %v992 = vsub.s32 2, %v991
  %v993 = vrot.slane %v970, %v992
  %995 = vbcast.lane.b32.xlu0 %v993, 256
  %v996 = vpop.permute.xlu0 %995
  %v997 = vlaneseq
  %v998 = vshrl.u32 %v997, 7
  %v999 = vsub.s32 3, %v998
  %v1000 = vrot.slane %v970, %v999
  %1002 = vbcast.lane.b32.xlu0 %v1000, 256
  %v1003 = vpop.permute.xlu0 %1002
  %v1004 = vlaneseq
  %v1005 = vshrl.u32 %v1004, 7
  %v1006 = vsub.s32 4, %v1005
  %v1007 = vrot.slane %v970, %v1006
  %1009 = vbcast.lane.b32.xlu0 %v1007, 256
  %v1010 = vpop.permute.xlu0 %1009
  %v1011 = vlaneseq
  %v1012 = vshrl.u32 %v1011, 7
  %v1013 = vsub.s32 5, %v1012
  %v1014 = vrot.slane %v970, %v1013
  %1016 = vbcast.lane.b32.xlu0 %v1014, 256
  %v1017 = vpop.permute.xlu0 %1016
  %v1018 = vlaneseq
  %v1019 = vshrl.u32 %v1018, 7
  %v1020 = vsub.s32 6, %v1019
  %v1021 = vrot.slane %v970, %v1020
  %1023 = vbcast.lane.b32.xlu0 %v1021, 256
  %v1024 = vpop.permute.xlu0 %1023
  %v1025 = vlaneseq
  %v1026 = vshrl.u32 %v1025, 7
  %v1027 = vsub.s32 7, %v1026
  %v1028 = vrot.slane %v970, %v1027
  %1030 = vbcast.lane.b32.xlu0 %v1028, 256
  %v1031 = vpop.permute.xlu0 %1030
  %v1032 = vadd.f32 %v982, %v950
  %v1033 = vadd.f32 %v989, %v950
  %v1034 = vadd.f32 %v996, %v950
  %v1035 = vadd.f32 %v1003, %v950
  %v1036 = vadd.f32 %v1010, %v950
  %v1037 = vadd.f32 %v1017, %v950
  %v1038 = vadd.f32 %v1024, %v950
  %v1039 = vadd.f32 %v1031, %v950
  %vm1040 = vcmask 36864
  %v1041 = vsel %vm1040, %v1032, -inf
  %v1042 = vrot.slane %v1041, 4
  %v1043 = vmax.f32 %v1041, %v1042
  %v1044 = vrot.slane %v1043, 2
  %v1045 = vmax.f32 %v1043, %v1044
  %v1046 = vrot.slane %v1045, 1
  %v1047 = vmax.f32 %v1045, %v1046
  %v1048 = vsel %vm1040, %v1033, -inf
  %v1049 = vrot.slane %v1048, 4
  %v1050 = vmax.f32 %v1048, %v1049
  %v1051 = vrot.slane %v1050, 2
  %v1052 = vmax.f32 %v1050, %v1051
  %v1053 = vrot.slane %v1052, 1
  %v1054 = vmax.f32 %v1052, %v1053
  %v1055 = vsel %vm1040, %v1034, -inf
  %v1056 = vrot.slane %v1055, 4
  %v1057 = vmax.f32 %v1055, %v1056
  %v1058 = vrot.slane %v1057, 2
  %v1059 = vmax.f32 %v1057, %v1058
  %v1060 = vrot.slane %v1059, 1
  %v1061 = vmax.f32 %v1059, %v1060
  %v1062 = vsel %vm1040, %v1035, -inf
  %v1063 = vrot.slane %v1062, 4
  %v1064 = vmax.f32 %v1062, %v1063
  %v1065 = vrot.slane %v1064, 2
  %v1066 = vmax.f32 %v1064, %v1065
  %v1067 = vrot.slane %v1066, 1
  %v1068 = vmax.f32 %v1066, %v1067
  %v1069 = vsel %vm1040, %v1036, -inf
  %v1070 = vrot.slane %v1069, 4
  %v1071 = vmax.f32 %v1069, %v1070
  %v1072 = vrot.slane %v1071, 2
  %v1073 = vmax.f32 %v1071, %v1072
  %v1074 = vrot.slane %v1073, 1
  %v1075 = vmax.f32 %v1073, %v1074
  %v1076 = vsel %vm1040, %v1037, -inf
  %v1077 = vrot.slane %v1076, 4
  %v1078 = vmax.f32 %v1076, %v1077
  %v1079 = vrot.slane %v1078, 2
  %v1080 = vmax.f32 %v1078, %v1079
  %v1081 = vrot.slane %v1080, 1
  %v1082 = vmax.f32 %v1080, %v1081
  %v1083 = vsel %vm1040, %v1038, -inf
  %v1084 = vrot.slane %v1083, 4
  %v1085 = vmax.f32 %v1083, %v1084
  %v1086 = vrot.slane %v1085, 2
  %v1087 = vmax.f32 %v1085, %v1086
  %v1088 = vrot.slane %v1087, 1
  %v1089 = vmax.f32 %v1087, %v1088
  %v1090 = vsel %vm1040, %v1039, -inf
  %v1091 = vrot.slane %v1090, 4
  %v1092 = vmax.f32 %v1090, %v1091
  %v1093 = vrot.slane %v1092, 2
  %v1094 = vmax.f32 %v1092, %v1093
  %v1095 = vrot.slane %v1094, 1
  %v1096 = vmax.f32 %v1094, %v1095
  %vm1097 = vcmp.eq.f32.partialorder %v1032, %v1047
  %vm1098 = vcmp.eq.f32.partialorder %v1033, %v1054
  %vm1099 = vcmp.eq.f32.partialorder %v1034, %v1061
  %vm1100 = vcmp.eq.f32.partialorder %v1035, %v1068
  %vm1101 = vcmp.eq.f32.partialorder %v1036, %v1075
  %vm1102 = vcmp.eq.f32.partialorder %v1037, %v1082
  %vm1103 = vcmp.eq.f32.partialorder %v1038, %v1089
  %vm1104 = vcmp.eq.f32.partialorder %v1039, %v1096
  %v1105 = vsel %vm1097, %v952, 5
  %v1106 = vsel %vm1098, %v952, 5
  %v1107 = vsel %vm1099, %v952, 5
  %v1108 = vsel %vm1100, %v952, 5
  %v1109 = vsel %vm1101, %v952, 5
  %v1110 = vsel %vm1102, %v952, 5
  %v1111 = vsel %vm1103, %v952, 5
  %v1112 = vsel %vm1104, %v952, 5
  %v1113 = vsel %vm1040, %v1105, 2147483647
  %v1114 = vrot.slane %v1113, 4
  %vm1115 = vcmp.lt.s32.totalorder %v1113, %v1114
  %v1116 = vsel %vm1115, %v1113, %v1114
  %v1117 = vrot.slane %v1116, 2
  %vm1118 = vcmp.lt.s32.totalorder %v1116, %v1117
  %v1119 = vsel %vm1118, %v1116, %v1117
  %v1120 = vrot.slane %v1119, 1
  %vm1121 = vcmp.lt.s32.totalorder %v1119, %v1120
  %v1122 = vsel %vm1121, %v1119, %v1120
  %v1123 = vsel %vm1040, %v1106, 2147483647
  %v1124 = vrot.slane %v1123, 4
  %vm1125 = vcmp.lt.s32.totalorder %v1123, %v1124
  %v1126 = vsel %vm1125, %v1123, %v1124
  %v1127 = vrot.slane %v1126, 2
  %vm1128 = vcmp.lt.s32.totalorder %v1126, %v1127
  %v1129 = vsel %vm1128, %v1126, %v1127
  %v1130 = vrot.slane %v1129, 1
  %vm1131 = vcmp.lt.s32.totalorder %v1129, %v1130
  %v1132 = vsel %vm1131, %v1129, %v1130
  %v1133 = vsel %vm1040, %v1107, 2147483647
  %v1134 = vrot.slane %v1133, 4
  %vm1135 = vcmp.lt.s32.totalorder %v1133, %v1134
  %v1136 = vsel %vm1135, %v1133, %v1134
  %v1137 = vrot.slane %v1136, 2
  %vm1138 = vcmp.lt.s32.totalorder %v1136, %v1137
  %v1139 = vsel %vm1138, %v1136, %v1137
  %v1140 = vrot.slane %v1139, 1
  %vm1141 = vcmp.lt.s32.totalorder %v1139, %v1140
  %v1142 = vsel %vm1141, %v1139, %v1140
  %v1143 = vsel %vm1040, %v1108, 2147483647
  %v1144 = vrot.slane %v1143, 4
  %vm1145 = vcmp.lt.s32.totalorder %v1143, %v1144
  %v1146 = vsel %vm1145, %v1143, %v1144
  %v1147 = vrot.slane %v1146, 2
  %vm1148 = vcmp.lt.s32.totalorder %v1146, %v1147
  %v1149 = vsel %vm1148, %v1146, %v1147
  %v1150 = vrot.slane %v1149, 1
  %vm1151 = vcmp.lt.s32.totalorder %v1149, %v1150
  %v1152 = vsel %vm1151, %v1149, %v1150
  %v1153 = vsel %vm1040, %v1109, 2147483647
  %v1154 = vrot.slane %v1153, 4
  %vm1155 = vcmp.lt.s32.totalorder %v1153, %v1154
  %v1156 = vsel %vm1155, %v1153, %v1154
  %v1157 = vrot.slane %v1156, 2
  %vm1158 = vcmp.lt.s32.totalorder %v1156, %v1157
  %v1159 = vsel %vm1158, %v1156, %v1157
  %v1160 = vrot.slane %v1159, 1
  %vm1161 = vcmp.lt.s32.totalorder %v1159, %v1160
  %v1162 = vsel %vm1161, %v1159, %v1160
  %v1163 = vsel %vm1040, %v1110, 2147483647
  %v1164 = vrot.slane %v1163, 4
  %vm1165 = vcmp.lt.s32.totalorder %v1163, %v1164
  %v1166 = vsel %vm1165, %v1163, %v1164
  %v1167 = vrot.slane %v1166, 2
  %vm1168 = vcmp.lt.s32.totalorder %v1166, %v1167
  %v1169 = vsel %vm1168, %v1166, %v1167
  %v1170 = vrot.slane %v1169, 1
  %vm1171 = vcmp.lt.s32.totalorder %v1169, %v1170
  %v1172 = vsel %vm1171, %v1169, %v1170
  %v1173 = vsel %vm1040, %v1111, 2147483647
  %v1174 = vrot.slane %v1173, 4
  %vm1175 = vcmp.lt.s32.totalorder %v1173, %v1174
  %v1176 = vsel %vm1175, %v1173, %v1174
  %v1177 = vrot.slane %v1176, 2
  %vm1178 = vcmp.lt.s32.totalorder %v1176, %v1177
  %v1179 = vsel %vm1178, %v1176, %v1177
  %v1180 = vrot.slane %v1179, 1
  %vm1181 = vcmp.lt.s32.totalorder %v1179, %v1180
  %v1182 = vsel %vm1181, %v1179, %v1180
  %v1183 = vsel %vm1040, %v1112, 2147483647
  %v1184 = vrot.slane %v1183, 4
  %vm1185 = vcmp.lt.s32.totalorder %v1183, %v1184
  %v1186 = vsel %vm1185, %v1183, %v1184
  %v1187 = vrot.slane %v1186, 2
  %vm1188 = vcmp.lt.s32.totalorder %v1186, %v1187
  %v1189 = vsel %vm1188, %v1186, %v1187
  %v1190 = vrot.slane %v1189, 1
  %vm1191 = vcmp.lt.s32.totalorder %v1189, %v1190
  %v1192 = vsel %vm1191, %v1189, %v1190
  %v1193 = vsel %vm975, 1, 0
  %1194 = vset.pattern.permute.xlu0 0
  %1195 = vperm.xlu0 %1194, %v1193
  %v1196 = vpop.permute.xlu0 %1195
  %vm1197 = vcmp.eq.s32.totalorder %v1196, 1
  %vm1198 = vcmask 1041409
  %v1199 = vsel %vm1198, %v1132, %v1122
  %vm1200 = vcmask 1042434
  %v1201 = vsel %vm1200, %v1142, %v1199
  %vm1202 = vcmask 1043459
  %v1203 = vsel %vm1202, %v1152, %v1201
  %vm1204 = vcmask 1044484
  %v1205 = vsel %vm1204, %v1162, %v1203
  %vm1206 = vcmask 1045509
  %v1207 = vsel %vm1206, %v1172, %v1205
  %vm1208 = vcmask 1046534
  %v1209 = vsel %vm1208, %v1182, %v1207
  %vm1210 = vcmask 1047559
  %v1211 = vsel %vm1210, %v1192, %v1209
  %v1212 = vsel %vm1197, %v1211, %v954
  %s1213 = scalar_lea.vmem [#allocation5], 8
  %1214 = vst.msk [vmem:[%s1213] sm:$0xff] %vm941, %v1212
  %v1216 = vrot.slane %v972, 1
  %v1217 = vrot.slane %v972, 2
  %v1218 = vrot.slane %v972, 3
  %v1219 = vrot.slane %v972, 4
  %v1220 = vrot.slane %v972, 5
  %v1221 = vrot.slane %v972, 6
  %v1222 = vrot.slane %v972, 7
  %v1231 = vadd.f32 %v1047, %v972
  %v1232 = vadd.f32 %v1054, %v1216
  %v1233 = vadd.f32 %v1061, %v1217
  %v1234 = vadd.f32 %v1068, %v1218
  %v1235 = vadd.f32 %v1075, %v1219
  %v1236 = vadd.f32 %v1082, %v1220
  %v1237 = vadd.f32 %v1089, %v1221
  %v1238 = vadd.f32 %v1096, %v1222
  %v1247 = vrot.slane %v1232, 7
  %v1248 = vsel %vm1198, %v1247, %v1231
  %v1249 = vrot.slane %v1233, 6
  %v1250 = vsel %vm1200, %v1249, %v1248
  %v1251 = vrot.slane %v1234, 5
  %v1252 = vsel %vm1202, %v1251, %v1250
  %v1253 = vrot.slane %v1235, 4
  %v1254 = vsel %vm1204, %v1253, %v1252
  %v1255 = vrot.slane %v1236, 3
  %v1256 = vsel %vm1206, %v1255, %v1254
  %v1257 = vrot.slane %v1237, 2
  %v1258 = vsel %vm1208, %v1257, %v1256
  %v1259 = vrot.slane %v1238, 1
  %v1260 = vsel %vm1210, %v1259, %v1258
  %v1262 = vsel %vm1197, %v1260, %v970
  %s1263 = scalar_lea.vmem [#allocation4], 16
  %v1264 = vld [vmem:[%s1263] sm:$0xff]
  %s1265 = scalar_lea.vmem %s1, 16
  %v1266 = vld [vmem:[%s1265] sm:$0xff]
  %vm1267 = vcmp.gt.f32.partialorder %v1266, 0.5
  %v1268 = vlaneseq
  %v1269 = vshrl.u32 %v1268, 7
  %v1270 = vsub.s32 0, %v1269
  %v1271 = vrot.slane %v1262, %v1270
  %1273 = vbcast.lane.b32.xlu0 %v1271, 256
  %v1274 = vpop.permute.xlu0 %1273
  %v1275 = vlaneseq
  %v1276 = vshrl.u32 %v1275, 7
  %v1277 = vsub.s32 1, %v1276
  %v1278 = vrot.slane %v1262, %v1277
  %1280 = vbcast.lane.b32.xlu0 %v1278, 256
  %v1281 = vpop.permute.xlu0 %1280
  %v1282 = vlaneseq
  %v1283 = vshrl.u32 %v1282, 7
  %v1284 = vsub.s32 2, %v1283
  %v1285 = vrot.slane %v1262, %v1284
  %1287 = vbcast.lane.b32.xlu0 %v1285, 256
  %v1288 = vpop.permute.xlu0 %1287
  %v1289 = vlaneseq
  %v1290 = vshrl.u32 %v1289, 7
  %v1291 = vsub.s32 3, %v1290
  %v1292 = vrot.slane %v1262, %v1291
  %1294 = vbcast.lane.b32.xlu0 %v1292, 256
  %v1295 = vpop.permute.xlu0 %1294
  %v1296 = vlaneseq
  %v1297 = vshrl.u32 %v1296, 7
  %v1298 = vsub.s32 4, %v1297
  %v1299 = vrot.slane %v1262, %v1298
  %1301 = vbcast.lane.b32.xlu0 %v1299, 256
  %v1302 = vpop.permute.xlu0 %1301
  %v1303 = vlaneseq
  %v1304 = vshrl.u32 %v1303, 7
  %v1305 = vsub.s32 5, %v1304
  %v1306 = vrot.slane %v1262, %v1305
  %1308 = vbcast.lane.b32.xlu0 %v1306, 256
  %v1309 = vpop.permute.xlu0 %1308
  %v1310 = vlaneseq
  %v1311 = vshrl.u32 %v1310, 7
  %v1312 = vsub.s32 6, %v1311
  %v1313 = vrot.slane %v1262, %v1312
  %1315 = vbcast.lane.b32.xlu0 %v1313, 256
  %v1316 = vpop.permute.xlu0 %1315
  %v1317 = vlaneseq
  %v1318 = vshrl.u32 %v1317, 7
  %v1319 = vsub.s32 7, %v1318
  %v1320 = vrot.slane %v1262, %v1319
  %1322 = vbcast.lane.b32.xlu0 %v1320, 256
  %v1323 = vpop.permute.xlu0 %1322
  %v1324 = vadd.f32 %v1274, %v950
  %v1325 = vadd.f32 %v1281, %v950
  %v1326 = vadd.f32 %v1288, %v950
  %v1327 = vadd.f32 %v1295, %v950
  %v1328 = vadd.f32 %v1302, %v950
  %v1329 = vadd.f32 %v1309, %v950
  %v1330 = vadd.f32 %v1316, %v950
  %v1331 = vadd.f32 %v1323, %v950
  %v1332 = vsel %vm1040, %v1324, -inf
  %v1333 = vrot.slane %v1332, 4
  %v1334 = vmax.f32 %v1332, %v1333
  %v1335 = vrot.slane %v1334, 2
  %v1336 = vmax.f32 %v1334, %v1335
  %v1337 = vrot.slane %v1336, 1
  %v1338 = vmax.f32 %v1336, %v1337
  %v1339 = vsel %vm1040, %v1325, -inf
  %v1340 = vrot.slane %v1339, 4
  %v1341 = vmax.f32 %v1339, %v1340
  %v1342 = vrot.slane %v1341, 2
  %v1343 = vmax.f32 %v1341, %v1342
  %v1344 = vrot.slane %v1343, 1
  %v1345 = vmax.f32 %v1343, %v1344
  %v1346 = vsel %vm1040, %v1326, -inf
  %v1347 = vrot.slane %v1346, 4
  %v1348 = vmax.f32 %v1346, %v1347
  %v1349 = vrot.slane %v1348, 2
  %v1350 = vmax.f32 %v1348, %v1349
  %v1351 = vrot.slane %v1350, 1
  %v1352 = vmax.f32 %v1350, %v1351
  %v1353 = vsel %vm1040, %v1327, -inf
  %v1354 = vrot.slane %v1353, 4
  %v1355 = vmax.f32 %v1353, %v1354
  %v1356 = vrot.slane %v1355, 2
  %v1357 = vmax.f32 %v1355, %v1356
  %v1358 = vrot.slane %v1357, 1
  %v1359 = vmax.f32 %v1357, %v1358
  %v1360 = vsel %vm1040, %v1328, -inf
  %v1361 = vrot.slane %v1360, 4
  %v1362 = vmax.f32 %v1360, %v1361
  %v1363 = vrot.slane %v1362, 2
  %v1364 = vmax.f32 %v1362, %v1363
  %v1365 = vrot.slane %v1364, 1
  %v1366 = vmax.f32 %v1364, %v1365
  %v1367 = vsel %vm1040, %v1329, -inf
  %v1368 = vrot.slane %v1367, 4
  %v1369 = vmax.f32 %v1367, %v1368
  %v1370 = vrot.slane %v1369, 2
  %v1371 = vmax.f32 %v1369, %v1370
  %v1372 = vrot.slane %v1371, 1
  %v1373 = vmax.f32 %v1371, %v1372
  %v1374 = vsel %vm1040, %v1330, -inf
  %v1375 = vrot.slane %v1374, 4
  %v1376 = vmax.f32 %v1374, %v1375
  %v1377 = vrot.slane %v1376, 2
  %v1378 = vmax.f32 %v1376, %v1377
  %v1379 = vrot.slane %v1378, 1
  %v1380 = vmax.f32 %v1378, %v1379
  %v1381 = vsel %vm1040, %v1331, -inf
  %v1382 = vrot.slane %v1381, 4
  %v1383 = vmax.f32 %v1381, %v1382
  %v1384 = vrot.slane %v1383, 2
  %v1385 = vmax.f32 %v1383, %v1384
  %v1386 = vrot.slane %v1385, 1
  %v1387 = vmax.f32 %v1385, %v1386
  %vm1388 = vcmp.eq.f32.partialorder %v1324, %v1338
  %vm1389 = vcmp.eq.f32.partialorder %v1325, %v1345
  %vm1390 = vcmp.eq.f32.partialorder %v1326, %v1352
  %vm1391 = vcmp.eq.f32.partialorder %v1327, %v1359
  %vm1392 = vcmp.eq.f32.partialorder %v1328, %v1366
  %vm1393 = vcmp.eq.f32.partialorder %v1329, %v1373
  %vm1394 = vcmp.eq.f32.partialorder %v1330, %v1380
  %vm1395 = vcmp.eq.f32.partialorder %v1331, %v1387
  %v1396 = vsel %vm1388, %v952, 5
  %v1397 = vsel %vm1389, %v952, 5
  %v1398 = vsel %vm1390, %v952, 5
  %v1399 = vsel %vm1391, %v952, 5
  %v1400 = vsel %vm1392, %v952, 5
  %v1401 = vsel %vm1393, %v952, 5
  %v1402 = vsel %vm1394, %v952, 5
  %v1403 = vsel %vm1395, %v952, 5
  %v1404 = vsel %vm1040, %v1396, 2147483647
  %v1405 = vrot.slane %v1404, 4
  %vm1406 = vcmp.lt.s32.totalorder %v1404, %v1405
  %v1407 = vsel %vm1406, %v1404, %v1405
  %v1408 = vrot.slane %v1407, 2
  %vm1409 = vcmp.lt.s32.totalorder %v1407, %v1408
  %v1410 = vsel %vm1409, %v1407, %v1408
  %v1411 = vrot.slane %v1410, 1
  %vm1412 = vcmp.lt.s32.totalorder %v1410, %v1411
  %v1413 = vsel %vm1412, %v1410, %v1411
  %v1414 = vsel %vm1040, %v1397, 2147483647
  %v1415 = vrot.slane %v1414, 4
  %vm1416 = vcmp.lt.s32.totalorder %v1414, %v1415
  %v1417 = vsel %vm1416, %v1414, %v1415
  %v1418 = vrot.slane %v1417, 2
  %vm1419 = vcmp.lt.s32.totalorder %v1417, %v1418
  %v1420 = vsel %vm1419, %v1417, %v1418
  %v1421 = vrot.slane %v1420, 1
  %vm1422 = vcmp.lt.s32.totalorder %v1420, %v1421
  %v1423 = vsel %vm1422, %v1420, %v1421
  %v1424 = vsel %vm1040, %v1398, 2147483647
  %v1425 = vrot.slane %v1424, 4
  %vm1426 = vcmp.lt.s32.totalorder %v1424, %v1425
  %v1427 = vsel %vm1426, %v1424, %v1425
  %v1428 = vrot.slane %v1427, 2
  %vm1429 = vcmp.lt.s32.totalorder %v1427, %v1428
  %v1430 = vsel %vm1429, %v1427, %v1428
  %v1431 = vrot.slane %v1430, 1
  %vm1432 = vcmp.lt.s32.totalorder %v1430, %v1431
  %v1433 = vsel %vm1432, %v1430, %v1431
  %v1434 = vsel %vm1040, %v1399, 2147483647
  %v1435 = vrot.slane %v1434, 4
  %vm1436 = vcmp.lt.s32.totalorder %v1434, %v1435
  %v1437 = vsel %vm1436, %v1434, %v1435
  %v1438 = vrot.slane %v1437, 2
  %vm1439 = vcmp.lt.s32.totalorder %v1437, %v1438
  %v1440 = vsel %vm1439, %v1437, %v1438
  %v1441 = vrot.slane %v1440, 1
  %vm1442 = vcmp.lt.s32.totalorder %v1440, %v1441
  %v1443 = vsel %vm1442, %v1440, %v1441
  %v1444 = vsel %vm1040, %v1400, 2147483647
  %v1445 = vrot.slane %v1444, 4
  %vm1446 = vcmp.lt.s32.totalorder %v1444, %v1445
  %v1447 = vsel %vm1446, %v1444, %v1445
  %v1448 = vrot.slane %v1447, 2
  %vm1449 = vcmp.lt.s32.totalorder %v1447, %v1448
  %v1450 = vsel %vm1449, %v1447, %v1448
  %v1451 = vrot.slane %v1450, 1
  %vm1452 = vcmp.lt.s32.totalorder %v1450, %v1451
  %v1453 = vsel %vm1452, %v1450, %v1451
  %v1454 = vsel %vm1040, %v1401, 2147483647
  %v1455 = vrot.slane %v1454, 4
  %vm1456 = vcmp.lt.s32.totalorder %v1454, %v1455
  %v1457 = vsel %vm1456, %v1454, %v1455
  %v1458 = vrot.slane %v1457, 2
  %vm1459 = vcmp.lt.s32.totalorder %v1457, %v1458
  %v1460 = vsel %vm1459, %v1457, %v1458
  %v1461 = vrot.slane %v1460, 1
  %vm1462 = vcmp.lt.s32.totalorder %v1460, %v1461
  %v1463 = vsel %vm1462, %v1460, %v1461
  %v1464 = vsel %vm1040, %v1402, 2147483647
  %v1465 = vrot.slane %v1464, 4
  %vm1466 = vcmp.lt.s32.totalorder %v1464, %v1465
  %v1467 = vsel %vm1466, %v1464, %v1465
  %v1468 = vrot.slane %v1467, 2
  %vm1469 = vcmp.lt.s32.totalorder %v1467, %v1468
  %v1470 = vsel %vm1469, %v1467, %v1468
  %v1471 = vrot.slane %v1470, 1
  %vm1472 = vcmp.lt.s32.totalorder %v1470, %v1471
  %v1473 = vsel %vm1472, %v1470, %v1471
  %v1474 = vsel %vm1040, %v1403, 2147483647
  %v1475 = vrot.slane %v1474, 4
  %vm1476 = vcmp.lt.s32.totalorder %v1474, %v1475
  %v1477 = vsel %vm1476, %v1474, %v1475
  %v1478 = vrot.slane %v1477, 2
  %vm1479 = vcmp.lt.s32.totalorder %v1477, %v1478
  %v1480 = vsel %vm1479, %v1477, %v1478
  %v1481 = vrot.slane %v1480, 1
  %vm1482 = vcmp.lt.s32.totalorder %v1480, %v1481
  %v1483 = vsel %vm1482, %v1480, %v1481
  %v1484 = vsel %vm1267, 1, 0
  %1485 = vset.pattern.permute.xlu0 0
  %1486 = vperm.xlu0 %1485, %v1484
  %v1487 = vpop.permute.xlu0 %1486
  %vm1488 = vcmp.eq.s32.totalorder %v1487, 1
  %v1489 = vsel %vm1198, %v1423, %v1413
  %v1490 = vsel %vm1200, %v1433, %v1489
  %v1491 = vsel %vm1202, %v1443, %v1490
  %v1492 = vsel %vm1204, %v1453, %v1491
  %v1493 = vsel %vm1206, %v1463, %v1492
  %v1494 = vsel %vm1208, %v1473, %v1493
  %v1495 = vsel %vm1210, %v1483, %v1494
  %v1496 = vsel %vm1488, %v1495, %v954
  %s1497 = scalar_lea.vmem [#allocation5], 16
  %1498 = vst.msk [vmem:[%s1497] sm:$0xff] %vm941, %v1496
  %v1500 = vrot.slane %v1264, 1
  %v1501 = vrot.slane %v1264, 2
  %v1502 = vrot.slane %v1264, 3
  %v1503 = vrot.slane %v1264, 4
  %v1504 = vrot.slane %v1264, 5
  %v1505 = vrot.slane %v1264, 6
  %v1506 = vrot.slane %v1264, 7
  %v1515 = vadd.f32 %v1338, %v1264
  %v1516 = vadd.f32 %v1345, %v1500
  %v1517 = vadd.f32 %v1352, %v1501
  %v1518 = vadd.f32 %v1359, %v1502
  %v1519 = vadd.f32 %v1366, %v1503
  %v1520 = vadd.f32 %v1373, %v1504
  %v1521 = vadd.f32 %v1380, %v1505
  %v1522 = vadd.f32 %v1387, %v1506
  %v1531 = vrot.slane %v1516, 7
  %v1532 = vsel %vm1198, %v1531, %v1515
  %v1533 = vrot.slane %v1517, 6
  %v1534 = vsel %vm1200, %v1533, %v1532
  %v1535 = vrot.slane %v1518, 5
  %v1536 = vsel %vm1202, %v1535, %v1534
  %v1537 = vrot.slane %v1519, 4
  %v1538 = vsel %vm1204, %v1537, %v1536
  %v1539 = vrot.slane %v1520, 3
  %v1540 = vsel %vm1206, %v1539, %v1538
  %v1541 = vrot.slane %v1521, 2
  %v1542 = vsel %vm1208, %v1541, %v1540
  %v1543 = vrot.slane %v1522, 1
  %v1544 = vsel %vm1210, %v1543, %v1542
  %v1546 = vsel %vm1488, %v1544, %v1262
  %s1547 = scalar_lea.vmem [#allocation4], 24
  %v1548 = vld [vmem:[%s1547] sm:$0xff]
  %s1549 = scalar_lea.vmem %s1, 24
  %v1550 = vld [vmem:[%s1549] sm:$0xff]
  %vm1551 = vcmp.gt.f32.partialorder %v1550, 0.5
  %v1552 = vlaneseq
  %v1553 = vshrl.u32 %v1552, 7
  %v1554 = vsub.s32 0, %v1553
  %v1555 = vrot.slane %v1546, %v1554
  %1557 = vbcast.lane.b32.xlu0 %v1555, 256
  %v1558 = vpop.permute.xlu0 %1557
  %v1559 = vlaneseq
  %v1560 = vshrl.u32 %v1559, 7
  %v1561 = vsub.s32 1, %v1560
  %v1562 = vrot.slane %v1546, %v1561
  %1564 = vbcast.lane.b32.xlu0 %v1562, 256
  %v1565 = vpop.permute.xlu0 %1564
  %v1566 = vlaneseq
  %v1567 = vshrl.u32 %v1566, 7
  %v1568 = vsub.s32 2, %v1567
  %v1569 = vrot.slane %v1546, %v1568
  %1571 = vbcast.lane.b32.xlu0 %v1569, 256
  %v1572 = vpop.permute.xlu0 %1571
  %v1573 = vlaneseq
  %v1574 = vshrl.u32 %v1573, 7
  %v1575 = vsub.s32 3, %v1574
  %v1576 = vrot.slane %v1546, %v1575
  %1578 = vbcast.lane.b32.xlu0 %v1576, 256
  %v1579 = vpop.permute.xlu0 %1578
  %v1580 = vlaneseq
  %v1581 = vshrl.u32 %v1580, 7
  %v1582 = vsub.s32 4, %v1581
  %v1583 = vrot.slane %v1546, %v1582
  %1585 = vbcast.lane.b32.xlu0 %v1583, 256
  %v1586 = vpop.permute.xlu0 %1585
  %v1587 = vlaneseq
  %v1588 = vshrl.u32 %v1587, 7
  %v1589 = vsub.s32 5, %v1588
  %v1590 = vrot.slane %v1546, %v1589
  %1592 = vbcast.lane.b32.xlu0 %v1590, 256
  %v1593 = vpop.permute.xlu0 %1592
  %v1594 = vlaneseq
  %v1595 = vshrl.u32 %v1594, 7
  %v1596 = vsub.s32 6, %v1595
  %v1597 = vrot.slane %v1546, %v1596
  %1599 = vbcast.lane.b32.xlu0 %v1597, 256
  %v1600 = vpop.permute.xlu0 %1599
  %v1601 = vlaneseq
  %v1602 = vshrl.u32 %v1601, 7
  %v1603 = vsub.s32 7, %v1602
  %v1604 = vrot.slane %v1546, %v1603
  %1606 = vbcast.lane.b32.xlu0 %v1604, 256
  %v1607 = vpop.permute.xlu0 %1606
  %v1608 = vadd.f32 %v1558, %v950
  %v1609 = vadd.f32 %v1565, %v950
  %v1610 = vadd.f32 %v1572, %v950
  %v1611 = vadd.f32 %v1579, %v950
  %v1612 = vadd.f32 %v1586, %v950
  %v1613 = vadd.f32 %v1593, %v950
  %v1614 = vadd.f32 %v1600, %v950
  %v1615 = vadd.f32 %v1607, %v950
  %v1616 = vsel %vm1040, %v1608, -inf
  %v1617 = vrot.slane %v1616, 4
  %v1618 = vmax.f32 %v1616, %v1617
  %v1619 = vrot.slane %v1618, 2
  %v1620 = vmax.f32 %v1618, %v1619
  %v1621 = vrot.slane %v1620, 1
  %v1622 = vmax.f32 %v1620, %v1621
  %v1623 = vsel %vm1040, %v1609, -inf
  %v1624 = vrot.slane %v1623, 4
  %v1625 = vmax.f32 %v1623, %v1624
  %v1626 = vrot.slane %v1625, 2
  %v1627 = vmax.f32 %v1625, %v1626
  %v1628 = vrot.slane %v1627, 1
  %v1629 = vmax.f32 %v1627, %v1628
  %v1630 = vsel %vm1040, %v1610, -inf
  %v1631 = vrot.slane %v1630, 4
  %v1632 = vmax.f32 %v1630, %v1631
  %v1633 = vrot.slane %v1632, 2
  %v1634 = vmax.f32 %v1632, %v1633
  %v1635 = vrot.slane %v1634, 1
  %v1636 = vmax.f32 %v1634, %v1635
  %v1637 = vsel %vm1040, %v1611, -inf
  %v1638 = vrot.slane %v1637, 4
  %v1639 = vmax.f32 %v1637, %v1638
  %v1640 = vrot.slane %v1639, 2
  %v1641 = vmax.f32 %v1639, %v1640
  %v1642 = vrot.slane %v1641, 1
  %v1643 = vmax.f32 %v1641, %v1642
  %v1644 = vsel %vm1040, %v1612, -inf
  %v1645 = vrot.slane %v1644, 4
  %v1646 = vmax.f32 %v1644, %v1645
  %v1647 = vrot.slane %v1646, 2
  %v1648 = vmax.f32 %v1646, %v1647
  %v1649 = vrot.slane %v1648, 1
  %v1650 = vmax.f32 %v1648, %v1649
  %v1651 = vsel %vm1040, %v1613, -inf
  %v1652 = vrot.slane %v1651, 4
  %v1653 = vmax.f32 %v1651, %v1652
  %v1654 = vrot.slane %v1653, 2
  %v1655 = vmax.f32 %v1653, %v1654
  %v1656 = vrot.slane %v1655, 1
  %v1657 = vmax.f32 %v1655, %v1656
  %v1658 = vsel %vm1040, %v1614, -inf
  %v1659 = vrot.slane %v1658, 4
  %v1660 = vmax.f32 %v1658, %v1659
  %v1661 = vrot.slane %v1660, 2
  %v1662 = vmax.f32 %v1660, %v1661
  %v1663 = vrot.slane %v1662, 1
  %v1664 = vmax.f32 %v1662, %v1663
  %v1665 = vsel %vm1040, %v1615, -inf
  %v1666 = vrot.slane %v1665, 4
  %v1667 = vmax.f32 %v1665, %v1666
  %v1668 = vrot.slane %v1667, 2
  %v1669 = vmax.f32 %v1667, %v1668
  %v1670 = vrot.slane %v1669, 1
  %v1671 = vmax.f32 %v1669, %v1670
  %vm1672 = vcmp.eq.f32.partialorder %v1608, %v1622
  %vm1673 = vcmp.eq.f32.partialorder %v1609, %v1629
  %vm1674 = vcmp.eq.f32.partialorder %v1610, %v1636
  %vm1675 = vcmp.eq.f32.partialorder %v1611, %v1643
  %vm1676 = vcmp.eq.f32.partialorder %v1612, %v1650
  %vm1677 = vcmp.eq.f32.partialorder %v1613, %v1657
  %vm1678 = vcmp.eq.f32.partialorder %v1614, %v1664
  %vm1679 = vcmp.eq.f32.partialorder %v1615, %v1671
  %v1680 = vsel %vm1672, %v952, 5
  %v1681 = vsel %vm1673, %v952, 5
  %v1682 = vsel %vm1674, %v952, 5
  %v1683 = vsel %vm1675, %v952, 5
  %v1684 = vsel %vm1676, %v952, 5
  %v1685 = vsel %vm1677, %v952, 5
  %v1686 = vsel %vm1678, %v952, 5
  %v1687 = vsel %vm1679, %v952, 5
  %v1688 = vsel %vm1040, %v1680, 2147483647
  %v1689 = vrot.slane %v1688, 4
  %vm1690 = vcmp.lt.s32.totalorder %v1688, %v1689
  %v1691 = vsel %vm1690, %v1688, %v1689
  %v1692 = vrot.slane %v1691, 2
  %vm1693 = vcmp.lt.s32.totalorder %v1691, %v1692
  %v1694 = vsel %vm1693, %v1691, %v1692
  %v1695 = vrot.slane %v1694, 1
  %vm1696 = vcmp.lt.s32.totalorder %v1694, %v1695
  %v1697 = vsel %vm1696, %v1694, %v1695
  %v1698 = vsel %vm1040, %v1681, 2147483647
  %v1699 = vrot.slane %v1698, 4
  %vm1700 = vcmp.lt.s32.totalorder %v1698, %v1699
  %v1701 = vsel %vm1700, %v1698, %v1699
  %v1702 = vrot.slane %v1701, 2
  %vm1703 = vcmp.lt.s32.totalorder %v1701, %v1702
  %v1704 = vsel %vm1703, %v1701, %v1702
  %v1705 = vrot.slane %v1704, 1
  %vm1706 = vcmp.lt.s32.totalorder %v1704, %v1705
  %v1707 = vsel %vm1706, %v1704, %v1705
  %v1708 = vsel %vm1040, %v1682, 2147483647
  %v1709 = vrot.slane %v1708, 4
  %vm1710 = vcmp.lt.s32.totalorder %v1708, %v1709
  %v1711 = vsel %vm1710, %v1708, %v1709
  %v1712 = vrot.slane %v1711, 2
  %vm1713 = vcmp.lt.s32.totalorder %v1711, %v1712
  %v1714 = vsel %vm1713, %v1711, %v1712
  %v1715 = vrot.slane %v1714, 1
  %vm1716 = vcmp.lt.s32.totalorder %v1714, %v1715
  %v1717 = vsel %vm1716, %v1714, %v1715
  %v1718 = vsel %vm1040, %v1683, 2147483647
  %v1719 = vrot.slane %v1718, 4
  %vm1720 = vcmp.lt.s32.totalorder %v1718, %v1719
  %v1721 = vsel %vm1720, %v1718, %v1719
  %v1722 = vrot.slane %v1721, 2
  %vm1723 = vcmp.lt.s32.totalorder %v1721, %v1722
  %v1724 = vsel %vm1723, %v1721, %v1722
  %v1725 = vrot.slane %v1724, 1
  %vm1726 = vcmp.lt.s32.totalorder %v1724, %v1725
  %v1727 = vsel %vm1726, %v1724, %v1725
  %v1728 = vsel %vm1040, %v1684, 2147483647
  %v1729 = vrot.slane %v1728, 4
  %vm1730 = vcmp.lt.s32.totalorder %v1728, %v1729
  %v1731 = vsel %vm1730, %v1728, %v1729
  %v1732 = vrot.slane %v1731, 2
  %vm1733 = vcmp.lt.s32.totalorder %v1731, %v1732
  %v1734 = vsel %vm1733, %v1731, %v1732
  %v1735 = vrot.slane %v1734, 1
  %vm1736 = vcmp.lt.s32.totalorder %v1734, %v1735
  %v1737 = vsel %vm1736, %v1734, %v1735
  %v1738 = vsel %vm1040, %v1685, 2147483647
  %v1739 = vrot.slane %v1738, 4
  %vm1740 = vcmp.lt.s32.totalorder %v1738, %v1739
  %v1741 = vsel %vm1740, %v1738, %v1739
  %v1742 = vrot.slane %v1741, 2
  %vm1743 = vcmp.lt.s32.totalorder %v1741, %v1742
  %v1744 = vsel %vm1743, %v1741, %v1742
  %v1745 = vrot.slane %v1744, 1
  %vm1746 = vcmp.lt.s32.totalorder %v1744, %v1745
  %v1747 = vsel %vm1746, %v1744, %v1745
  %v1748 = vsel %vm1040, %v1686, 2147483647
  %v1749 = vrot.slane %v1748, 4
  %vm1750 = vcmp.lt.s32.totalorder %v1748, %v1749
  %v1751 = vsel %vm1750, %v1748, %v1749
  %v1752 = vrot.slane %v1751, 2
  %vm1753 = vcmp.lt.s32.totalorder %v1751, %v1752
  %v1754 = vsel %vm1753, %v1751, %v1752
  %v1755 = vrot.slane %v1754, 1
  %vm1756 = vcmp.lt.s32.totalorder %v1754, %v1755
  %v1757 = vsel %vm1756, %v1754, %v1755
  %v1758 = vsel %vm1040, %v1687, 2147483647
  %v1759 = vrot.slane %v1758, 4
  %vm1760 = vcmp.lt.s32.totalorder %v1758, %v1759
  %v1761 = vsel %vm1760, %v1758, %v1759
  %v1762 = vrot.slane %v1761, 2
  %vm1763 = vcmp.lt.s32.totalorder %v1761, %v1762
  %v1764 = vsel %vm1763, %v1761, %v1762
  %v1765 = vrot.slane %v1764, 1
  %vm1766 = vcmp.lt.s32.totalorder %v1764, %v1765
  %v1767 = vsel %vm1766, %v1764, %v1765
  %v1768 = vsel %vm1551, 1, 0
  %1769 = vset.pattern.permute.xlu0 0
  %1770 = vperm.xlu0 %1769, %v1768
  %v1771 = vpop.permute.xlu0 %1770
  %vm1772 = vcmp.eq.s32.totalorder %v1771, 1
  %v1773 = vsel %vm1198, %v1707, %v1697
  %v1774 = vsel %vm1200, %v1717, %v1773
  %v1775 = vsel %vm1202, %v1727, %v1774
  %v1776 = vsel %vm1204, %v1737, %v1775
  %v1777 = vsel %vm1206, %v1747, %v1776
  %v1778 = vsel %vm1208, %v1757, %v1777
  %v1779 = vsel %vm1210, %v1767, %v1778
  %v1780 = vsel %vm1772, %v1779, %v954
  %s1781 = scalar_lea.vmem [#allocation5], 24
  %1782 = vst.msk [vmem:[%s1781] sm:$0xff] %vm941, %v1780
  %v1784 = vrot.slane %v1548, 1
  %v1785 = vrot.slane %v1548, 2
  %v1786 = vrot.slane %v1548, 3
  %v1787 = vrot.slane %v1548, 4
  %v1788 = vrot.slane %v1548, 5
  %v1789 = vrot.slane %v1548, 6
  %v1790 = vrot.slane %v1548, 7
  %v1799 = vadd.f32 %v1622, %v1548
  %v1800 = vadd.f32 %v1629, %v1784
  %v1801 = vadd.f32 %v1636, %v1785
  %v1802 = vadd.f32 %v1643, %v1786
  %v1803 = vadd.f32 %v1650, %v1787
  %v1804 = vadd.f32 %v1657, %v1788
  %v1805 = vadd.f32 %v1664, %v1789
  %v1806 = vadd.f32 %v1671, %v1790
  %v1815 = vrot.slane %v1800, 7
  %v1816 = vsel %vm1198, %v1815, %v1799
  %v1817 = vrot.slane %v1801, 6
  %v1818 = vsel %vm1200, %v1817, %v1816
  %v1819 = vrot.slane %v1802, 5
  %v1820 = vsel %vm1202, %v1819, %v1818
  %v1821 = vrot.slane %v1803, 4
  %v1822 = vsel %vm1204, %v1821, %v1820
  %v1823 = vrot.slane %v1804, 3
  %v1824 = vsel %vm1206, %v1823, %v1822
  %v1825 = vrot.slane %v1805, 2
  %v1826 = vsel %vm1208, %v1825, %v1824
  %v1827 = vrot.slane %v1806, 1
  %v1828 = vsel %vm1210, %v1827, %v1826
  %v1830 = vsel %vm1772, %v1828, %v1546
  %s1831 = scalar_lea.vmem [#allocation4], 32
  %v1832 = vld [vmem:[%s1831] sm:$0xff]
  %s1833 = scalar_lea.vmem %s1, 32
  %v1834 = vld [vmem:[%s1833] sm:$0xff]
  %vm1835 = vcmp.gt.f32.partialorder %v1834, 0.5
  %v1836 = vlaneseq
  %v1837 = vshrl.u32 %v1836, 7
  %v1838 = vsub.s32 0, %v1837
  %v1839 = vrot.slane %v1830, %v1838
  %1841 = vbcast.lane.b32.xlu0 %v1839, 256
  %v1842 = vpop.permute.xlu0 %1841
  %v1843 = vlaneseq
  %v1844 = vshrl.u32 %v1843, 7
  %v1845 = vsub.s32 1, %v1844
  %v1846 = vrot.slane %v1830, %v1845
  %1848 = vbcast.lane.b32.xlu0 %v1846, 256
  %v1849 = vpop.permute.xlu0 %1848
  %v1850 = vlaneseq
  %v1851 = vshrl.u32 %v1850, 7
  %v1852 = vsub.s32 2, %v1851
  %v1853 = vrot.slane %v1830, %v1852
  %1855 = vbcast.lane.b32.xlu0 %v1853, 256
  %v1856 = vpop.permute.xlu0 %1855
  %v1857 = vlaneseq
  %v1858 = vshrl.u32 %v1857, 7
  %v1859 = vsub.s32 3, %v1858
  %v1860 = vrot.slane %v1830, %v1859
  %1862 = vbcast.lane.b32.xlu0 %v1860, 256
  %v1863 = vpop.permute.xlu0 %1862
  %v1864 = vlaneseq
  %v1865 = vshrl.u32 %v1864, 7
  %v1866 = vsub.s32 4, %v1865
  %v1867 = vrot.slane %v1830, %v1866
  %1869 = vbcast.lane.b32.xlu0 %v1867, 256
  %v1870 = vpop.permute.xlu0 %1869
  %v1871 = vlaneseq
  %v1872 = vshrl.u32 %v1871, 7
  %v1873 = vsub.s32 5, %v1872
  %v1874 = vrot.slane %v1830, %v1873
  %1876 = vbcast.lane.b32.xlu0 %v1874, 256
  %v1877 = vpop.permute.xlu0 %1876
  %v1878 = vlaneseq
  %v1879 = vshrl.u32 %v1878, 7
  %v1880 = vsub.s32 6, %v1879
  %v1881 = vrot.slane %v1830, %v1880
  %1883 = vbcast.lane.b32.xlu0 %v1881, 256
  %v1884 = vpop.permute.xlu0 %1883
  %v1885 = vlaneseq
  %v1886 = vshrl.u32 %v1885, 7
  %v1887 = vsub.s32 7, %v1886
  %v1888 = vrot.slane %v1830, %v1887
  %1890 = vbcast.lane.b32.xlu0 %v1888, 256
  %v1891 = vpop.permute.xlu0 %1890
  %v1892 = vadd.f32 %v1842, %v950
  %v1893 = vadd.f32 %v1849, %v950
  %v1894 = vadd.f32 %v1856, %v950
  %v1895 = vadd.f32 %v1863, %v950
  %v1896 = vadd.f32 %v1870, %v950
  %v1897 = vadd.f32 %v1877, %v950
  %v1898 = vadd.f32 %v1884, %v950
  %v1899 = vadd.f32 %v1891, %v950
  %v1900 = vsel %vm1040, %v1892, -inf
  %v1901 = vrot.slane %v1900, 4
  %v1902 = vmax.f32 %v1900, %v1901
  %v1903 = vrot.slane %v1902, 2
  %v1904 = vmax.f32 %v1902, %v1903
  %v1905 = vrot.slane %v1904, 1
  %v1906 = vmax.f32 %v1904, %v1905
  %v1907 = vsel %vm1040, %v1893, -inf
  %v1908 = vrot.slane %v1907, 4
  %v1909 = vmax.f32 %v1907, %v1908
  %v1910 = vrot.slane %v1909, 2
  %v1911 = vmax.f32 %v1909, %v1910
  %v1912 = vrot.slane %v1911, 1
  %v1913 = vmax.f32 %v1911, %v1912
  %v1914 = vsel %vm1040, %v1894, -inf
  %v1915 = vrot.slane %v1914, 4
  %v1916 = vmax.f32 %v1914, %v1915
  %v1917 = vrot.slane %v1916, 2
  %v1918 = vmax.f32 %v1916, %v1917
  %v1919 = vrot.slane %v1918, 1
  %v1920 = vmax.f32 %v1918, %v1919
  %v1921 = vsel %vm1040, %v1895, -inf
  %v1922 = vrot.slane %v1921, 4
  %v1923 = vmax.f32 %v1921, %v1922
  %v1924 = vrot.slane %v1923, 2
  %v1925 = vmax.f32 %v1923, %v1924
  %v1926 = vrot.slane %v1925, 1
  %v1927 = vmax.f32 %v1925, %v1926
  %v1928 = vsel %vm1040, %v1896, -inf
  %v1929 = vrot.slane %v1928, 4
  %v1930 = vmax.f32 %v1928, %v1929
  %v1931 = vrot.slane %v1930, 2
  %v1932 = vmax.f32 %v1930, %v1931
  %v1933 = vrot.slane %v1932, 1
  %v1934 = vmax.f32 %v1932, %v1933
  %v1935 = vsel %vm1040, %v1897, -inf
  %v1936 = vrot.slane %v1935, 4
  %v1937 = vmax.f32 %v1935, %v1936
  %v1938 = vrot.slane %v1937, 2
  %v1939 = vmax.f32 %v1937, %v1938
  %v1940 = vrot.slane %v1939, 1
  %v1941 = vmax.f32 %v1939, %v1940
  %v1942 = vsel %vm1040, %v1898, -inf
  %v1943 = vrot.slane %v1942, 4
  %v1944 = vmax.f32 %v1942, %v1943
  %v1945 = vrot.slane %v1944, 2
  %v1946 = vmax.f32 %v1944, %v1945
  %v1947 = vrot.slane %v1946, 1
  %v1948 = vmax.f32 %v1946, %v1947
  %v1949 = vsel %vm1040, %v1899, -inf
  %v1950 = vrot.slane %v1949, 4
  %v1951 = vmax.f32 %v1949, %v1950
  %v1952 = vrot.slane %v1951, 2
  %v1953 = vmax.f32 %v1951, %v1952
  %v1954 = vrot.slane %v1953, 1
  %v1955 = vmax.f32 %v1953, %v1954
  %vm1956 = vcmp.eq.f32.partialorder %v1892, %v1906
  %vm1957 = vcmp.eq.f32.partialorder %v1893, %v1913
  %vm1958 = vcmp.eq.f32.partialorder %v1894, %v1920
  %vm1959 = vcmp.eq.f32.partialorder %v1895, %v1927
  %vm1960 = vcmp.eq.f32.partialorder %v1896, %v1934
  %vm1961 = vcmp.eq.f32.partialorder %v1897, %v1941
  %vm1962 = vcmp.eq.f32.partialorder %v1898, %v1948
  %vm1963 = vcmp.eq.f32.partialorder %v1899, %v1955
  %v1964 = vsel %vm1956, %v952, 5
  %v1965 = vsel %vm1957, %v952, 5
  %v1966 = vsel %vm1958, %v952, 5
  %v1967 = vsel %vm1959, %v952, 5
  %v1968 = vsel %vm1960, %v952, 5
  %v1969 = vsel %vm1961, %v952, 5
  %v1970 = vsel %vm1962, %v952, 5
  %v1971 = vsel %vm1963, %v952, 5
  %v1972 = vsel %vm1040, %v1964, 2147483647
  %v1973 = vrot.slane %v1972, 4
  %vm1974 = vcmp.lt.s32.totalorder %v1972, %v1973
  %v1975 = vsel %vm1974, %v1972, %v1973
  %v1976 = vrot.slane %v1975, 2
  %vm1977 = vcmp.lt.s32.totalorder %v1975, %v1976
  %v1978 = vsel %vm1977, %v1975, %v1976
  %v1979 = vrot.slane %v1978, 1
  %vm1980 = vcmp.lt.s32.totalorder %v1978, %v1979
  %v1981 = vsel %vm1980, %v1978, %v1979
  %v1982 = vsel %vm1040, %v1965, 2147483647
  %v1983 = vrot.slane %v1982, 4
  %vm1984 = vcmp.lt.s32.totalorder %v1982, %v1983
  %v1985 = vsel %vm1984, %v1982, %v1983
  %v1986 = vrot.slane %v1985, 2
  %vm1987 = vcmp.lt.s32.totalorder %v1985, %v1986
  %v1988 = vsel %vm1987, %v1985, %v1986
  %v1989 = vrot.slane %v1988, 1
  %vm1990 = vcmp.lt.s32.totalorder %v1988, %v1989
  %v1991 = vsel %vm1990, %v1988, %v1989
  %v1992 = vsel %vm1040, %v1966, 2147483647
  %v1993 = vrot.slane %v1992, 4
  %vm1994 = vcmp.lt.s32.totalorder %v1992, %v1993
  %v1995 = vsel %vm1994, %v1992, %v1993
  %v1996 = vrot.slane %v1995, 2
  %vm1997 = vcmp.lt.s32.totalorder %v1995, %v1996
  %v1998 = vsel %vm1997, %v1995, %v1996
  %v1999 = vrot.slane %v1998, 1
  %vm2000 = vcmp.lt.s32.totalorder %v1998, %v1999
  %v2001 = vsel %vm2000, %v1998, %v1999
  %v2002 = vsel %vm1040, %v1967, 2147483647
  %v2003 = vrot.slane %v2002, 4
  %vm2004 = vcmp.lt.s32.totalorder %v2002, %v2003
  %v2005 = vsel %vm2004, %v2002, %v2003
  %v2006 = vrot.slane %v2005, 2
  %vm2007 = vcmp.lt.s32.totalorder %v2005, %v2006
  %v2008 = vsel %vm2007, %v2005, %v2006
  %v2009 = vrot.slane %v2008, 1
  %vm2010 = vcmp.lt.s32.totalorder %v2008, %v2009
  %v2011 = vsel %vm2010, %v2008, %v2009
  %v2012 = vsel %vm1040, %v1968, 2147483647
  %v2013 = vrot.slane %v2012, 4
  %vm2014 = vcmp.lt.s32.totalorder %v2012, %v2013
  %v2015 = vsel %vm2014, %v2012, %v2013
  %v2016 = vrot.slane %v2015, 2
  %vm2017 = vcmp.lt.s32.totalorder %v2015, %v2016
  %v2018 = vsel %vm2017, %v2015, %v2016
  %v2019 = vrot.slane %v2018, 1
  %vm2020 = vcmp.lt.s32.totalorder %v2018, %v2019
  %v2021 = vsel %vm2020, %v2018, %v2019
  %v2022 = vsel %vm1040, %v1969, 2147483647
  %v2023 = vrot.slane %v2022, 4
  %vm2024 = vcmp.lt.s32.totalorder %v2022, %v2023
  %v2025 = vsel %vm2024, %v2022, %v2023
  %v2026 = vrot.slane %v2025, 2
  %vm2027 = vcmp.lt.s32.totalorder %v2025, %v2026
  %v2028 = vsel %vm2027, %v2025, %v2026
  %v2029 = vrot.slane %v2028, 1
  %vm2030 = vcmp.lt.s32.totalorder %v2028, %v2029
  %v2031 = vsel %vm2030, %v2028, %v2029
  %v2032 = vsel %vm1040, %v1970, 2147483647
  %v2033 = vrot.slane %v2032, 4
  %vm2034 = vcmp.lt.s32.totalorder %v2032, %v2033
  %v2035 = vsel %vm2034, %v2032, %v2033
  %v2036 = vrot.slane %v2035, 2
  %vm2037 = vcmp.lt.s32.totalorder %v2035, %v2036
  %v2038 = vsel %vm2037, %v2035, %v2036
  %v2039 = vrot.slane %v2038, 1
  %vm2040 = vcmp.lt.s32.totalorder %v2038, %v2039
  %v2041 = vsel %vm2040, %v2038, %v2039
  %v2042 = vsel %vm1040, %v1971, 2147483647
  %v2043 = vrot.slane %v2042, 4
  %vm2044 = vcmp.lt.s32.totalorder %v2042, %v2043
  %v2045 = vsel %vm2044, %v2042, %v2043
  %v2046 = vrot.slane %v2045, 2
  %vm2047 = vcmp.lt.s32.totalorder %v2045, %v2046
  %v2048 = vsel %vm2047, %v2045, %v2046
  %v2049 = vrot.slane %v2048, 1
  %vm2050 = vcmp.lt.s32.totalorder %v2048, %v2049
  %v2051 = vsel %vm2050, %v2048, %v2049
  %v2052 = vsel %vm1835, 1, 0
  %2053 = vset.pattern.permute.xlu0 0
  %2054 = vperm.xlu0 %2053, %v2052
  %v2055 = vpop.permute.xlu0 %2054
  %vm2056 = vcmp.eq.s32.totalorder %v2055, 1
  %v2057 = vsel %vm1198, %v1991, %v1981
  %v2058 = vsel %vm1200, %v2001, %v2057
  %v2059 = vsel %vm1202, %v2011, %v2058
  %v2060 = vsel %vm1204, %v2021, %v2059
  %v2061 = vsel %vm1206, %v2031, %v2060
  %v2062 = vsel %vm1208, %v2041, %v2061
  %v2063 = vsel %vm1210, %v2051, %v2062
  %v2064 = vsel %vm2056, %v2063, %v954
  %s2065 = scalar_lea.vmem [#allocation5], 32
  %2066 = vst.msk [vmem:[%s2065] sm:$0xff] %vm941, %v2064
  %v2068 = vrot.slane %v1832, 1
  %v2069 = vrot.slane %v1832, 2
  %v2070 = vrot.slane %v1832, 3
  %v2071 = vrot.slane %v1832, 4
  %v2072 = vrot.slane %v1832, 5
  %v2073 = vrot.slane %v1832, 6
  %v2074 = vrot.slane %v1832, 7
  %v2083 = vadd.f32 %v1906, %v1832
  %v2084 = vadd.f32 %v1913, %v2068
  %v2085 = vadd.f32 %v1920, %v2069
  %v2086 = vadd.f32 %v1927, %v2070
  %v2087 = vadd.f32 %v1934, %v2071
  %v2088 = vadd.f32 %v1941, %v2072
  %v2089 = vadd.f32 %v1948, %v2073
  %v2090 = vadd.f32 %v1955, %v2074
  %v2099 = vrot.slane %v2084, 7
  %v2100 = vsel %vm1198, %v2099, %v2083
  %v2101 = vrot.slane %v2085, 6
  %v2102 = vsel %vm1200, %v2101, %v2100
  %v2103 = vrot.slane %v2086, 5
  %v2104 = vsel %vm1202, %v2103, %v2102
  %v2105 = vrot.slane %v2087, 4
  %v2106 = vsel %vm1204, %v2105, %v2104
  %v2107 = vrot.slane %v2088, 3
  %v2108 = vsel %vm1206, %v2107, %v2106
  %v2109 = vrot.slane %v2089, 2
  %v2110 = vsel %vm1208, %v2109, %v2108
  %v2111 = vrot.slane %v2090, 1
  %v2112 = vsel %vm1210, %v2111, %v2110
  %v2114 = vsel %vm2056, %v2112, %v1830
  %s2115 = scalar_lea.vmem [#allocation4], 40
  %v2116 = vld [vmem:[%s2115] sm:$0xff]
  %s2117 = scalar_lea.vmem %s1, 40
  %v2118 = vld [vmem:[%s2117] sm:$0xff]
  %vm2119 = vcmp.gt.f32.partialorder %v2118, 0.5
  %v2120 = vlaneseq
  %v2121 = vshrl.u32 %v2120, 7
  %v2122 = vsub.s32 0, %v2121
  %v2123 = vrot.slane %v2114, %v2122
  %2125 = vbcast.lane.b32.xlu0 %v2123, 256
  %v2126 = vpop.permute.xlu0 %2125
  %v2127 = vlaneseq
  %v2128 = vshrl.u32 %v2127, 7
  %v2129 = vsub.s32 1, %v2128
  %v2130 = vrot.slane %v2114, %v2129
  %2132 = vbcast.lane.b32.xlu0 %v2130, 256
  %v2133 = vpop.permute.xlu0 %2132
  %v2134 = vlaneseq
  %v2135 = vshrl.u32 %v2134, 7
  %v2136 = vsub.s32 2, %v2135
  %v2137 = vrot.slane %v2114, %v2136
  %2139 = vbcast.lane.b32.xlu0 %v2137, 256
  %v2140 = vpop.permute.xlu0 %2139
  %v2141 = vlaneseq
  %v2142 = vshrl.u32 %v2141, 7
  %v2143 = vsub.s32 3, %v2142
  %v2144 = vrot.slane %v2114, %v2143
  %2146 = vbcast.lane.b32.xlu0 %v2144, 256
  %v2147 = vpop.permute.xlu0 %2146
  %v2148 = vlaneseq
  %v2149 = vshrl.u32 %v2148, 7
  %v2150 = vsub.s32 4, %v2149
  %v2151 = vrot.slane %v2114, %v2150
  %2153 = vbcast.lane.b32.xlu0 %v2151, 256
  %v2154 = vpop.permute.xlu0 %2153
  %v2155 = vlaneseq
  %v2156 = vshrl.u32 %v2155, 7
  %v2157 = vsub.s32 5, %v2156
  %v2158 = vrot.slane %v2114, %v2157
  %2160 = vbcast.lane.b32.xlu0 %v2158, 256
  %v2161 = vpop.permute.xlu0 %2160
  %v2162 = vlaneseq
  %v2163 = vshrl.u32 %v2162, 7
  %v2164 = vsub.s32 6, %v2163
  %v2165 = vrot.slane %v2114, %v2164
  %2167 = vbcast.lane.b32.xlu0 %v2165, 256
  %v2168 = vpop.permute.xlu0 %2167
  %v2169 = vlaneseq
  %v2170 = vshrl.u32 %v2169, 7
  %v2171 = vsub.s32 7, %v2170
  %v2172 = vrot.slane %v2114, %v2171
  %2174 = vbcast.lane.b32.xlu0 %v2172, 256
  %v2175 = vpop.permute.xlu0 %2174
  %v2176 = vadd.f32 %v2126, %v950
  %v2177 = vadd.f32 %v2133, %v950
  %v2178 = vadd.f32 %v2140, %v950
  %v2179 = vadd.f32 %v2147, %v950
  %v2180 = vadd.f32 %v2154, %v950
  %v2181 = vadd.f32 %v2161, %v950
  %v2182 = vadd.f32 %v2168, %v950
  %v2183 = vadd.f32 %v2175, %v950
  %v2184 = vsel %vm1040, %v2176, -inf
  %v2185 = vrot.slane %v2184, 4
  %v2186 = vmax.f32 %v2184, %v2185
  %v2187 = vrot.slane %v2186, 2
  %v2188 = vmax.f32 %v2186, %v2187
  %v2189 = vrot.slane %v2188, 1
  %v2190 = vmax.f32 %v2188, %v2189
  %v2191 = vsel %vm1040, %v2177, -inf
  %v2192 = vrot.slane %v2191, 4
  %v2193 = vmax.f32 %v2191, %v2192
  %v2194 = vrot.slane %v2193, 2
  %v2195 = vmax.f32 %v2193, %v2194
  %v2196 = vrot.slane %v2195, 1
  %v2197 = vmax.f32 %v2195, %v2196
  %v2198 = vsel %vm1040, %v2178, -inf
  %v2199 = vrot.slane %v2198, 4
  %v2200 = vmax.f32 %v2198, %v2199
  %v2201 = vrot.slane %v2200, 2
  %v2202 = vmax.f32 %v2200, %v2201
  %v2203 = vrot.slane %v2202, 1
  %v2204 = vmax.f32 %v2202, %v2203
  %v2205 = vsel %vm1040, %v2179, -inf
  %v2206 = vrot.slane %v2205, 4
  %v2207 = vmax.f32 %v2205, %v2206
  %v2208 = vrot.slane %v2207, 2
  %v2209 = vmax.f32 %v2207, %v2208
  %v2210 = vrot.slane %v2209, 1
  %v2211 = vmax.f32 %v2209, %v2210
  %v2212 = vsel %vm1040, %v2180, -inf
  %v2213 = vrot.slane %v2212, 4
  %v2214 = vmax.f32 %v2212, %v2213
  %v2215 = vrot.slane %v2214, 2
  %v2216 = vmax.f32 %v2214, %v2215
  %v2217 = vrot.slane %v2216, 1
  %v2218 = vmax.f32 %v2216, %v2217
  %v2219 = vsel %vm1040, %v2181, -inf
  %v2220 = vrot.slane %v2219, 4
  %v2221 = vmax.f32 %v2219, %v2220
  %v2222 = vrot.slane %v2221, 2
  %v2223 = vmax.f32 %v2221, %v2222
  %v2224 = vrot.slane %v2223, 1
  %v2225 = vmax.f32 %v2223, %v2224
  %v2226 = vsel %vm1040, %v2182, -inf
  %v2227 = vrot.slane %v2226, 4
  %v2228 = vmax.f32 %v2226, %v2227
  %v2229 = vrot.slane %v2228, 2
  %v2230 = vmax.f32 %v2228, %v2229
  %v2231 = vrot.slane %v2230, 1
  %v2232 = vmax.f32 %v2230, %v2231
  %v2233 = vsel %vm1040, %v2183, -inf
  %v2234 = vrot.slane %v2233, 4
  %v2235 = vmax.f32 %v2233, %v2234
  %v2236 = vrot.slane %v2235, 2
  %v2237 = vmax.f32 %v2235, %v2236
  %v2238 = vrot.slane %v2237, 1
  %v2239 = vmax.f32 %v2237, %v2238
  %vm2240 = vcmp.eq.f32.partialorder %v2176, %v2190
  %vm2241 = vcmp.eq.f32.partialorder %v2177, %v2197
  %vm2242 = vcmp.eq.f32.partialorder %v2178, %v2204
  %vm2243 = vcmp.eq.f32.partialorder %v2179, %v2211
  %vm2244 = vcmp.eq.f32.partialorder %v2180, %v2218
  %vm2245 = vcmp.eq.f32.partialorder %v2181, %v2225
  %vm2246 = vcmp.eq.f32.partialorder %v2182, %v2232
  %vm2247 = vcmp.eq.f32.partialorder %v2183, %v2239
  %v2248 = vsel %vm2240, %v952, 5
  %v2249 = vsel %vm2241, %v952, 5
  %v2250 = vsel %vm2242, %v952, 5
  %v2251 = vsel %vm2243, %v952, 5
  %v2252 = vsel %vm2244, %v952, 5
  %v2253 = vsel %vm2245, %v952, 5
  %v2254 = vsel %vm2246, %v952, 5
  %v2255 = vsel %vm2247, %v952, 5
  %v2256 = vsel %vm1040, %v2248, 2147483647
  %v2257 = vrot.slane %v2256, 4
  %vm2258 = vcmp.lt.s32.totalorder %v2256, %v2257
  %v2259 = vsel %vm2258, %v2256, %v2257
  %v2260 = vrot.slane %v2259, 2
  %vm2261 = vcmp.lt.s32.totalorder %v2259, %v2260
  %v2262 = vsel %vm2261, %v2259, %v2260
  %v2263 = vrot.slane %v2262, 1
  %vm2264 = vcmp.lt.s32.totalorder %v2262, %v2263
  %v2265 = vsel %vm2264, %v2262, %v2263
  %v2266 = vsel %vm1040, %v2249, 2147483647
  %v2267 = vrot.slane %v2266, 4
  %vm2268 = vcmp.lt.s32.totalorder %v2266, %v2267
  %v2269 = vsel %vm2268, %v2266, %v2267
  %v2270 = vrot.slane %v2269, 2
  %vm2271 = vcmp.lt.s32.totalorder %v2269, %v2270
  %v2272 = vsel %vm2271, %v2269, %v2270
  %v2273 = vrot.slane %v2272, 1
  %vm2274 = vcmp.lt.s32.totalorder %v2272, %v2273
  %v2275 = vsel %vm2274, %v2272, %v2273
  %v2276 = vsel %vm1040, %v2250, 2147483647
  %v2277 = vrot.slane %v2276, 4
  %vm2278 = vcmp.lt.s32.totalorder %v2276, %v2277
  %v2279 = vsel %vm2278, %v2276, %v2277
  %v2280 = vrot.slane %v2279, 2
  %vm2281 = vcmp.lt.s32.totalorder %v2279, %v2280
  %v2282 = vsel %vm2281, %v2279, %v2280
  %v2283 = vrot.slane %v2282, 1
  %vm2284 = vcmp.lt.s32.totalorder %v2282, %v2283
  %v2285 = vsel %vm2284, %v2282, %v2283
  %v2286 = vsel %vm1040, %v2251, 2147483647
  %v2287 = vrot.slane %v2286, 4
  %vm2288 = vcmp.lt.s32.totalorder %v2286, %v2287
  %v2289 = vsel %vm2288, %v2286, %v2287
  %v2290 = vrot.slane %v2289, 2
  %vm2291 = vcmp.lt.s32.totalorder %v2289, %v2290
  %v2292 = vsel %vm2291, %v2289, %v2290
  %v2293 = vrot.slane %v2292, 1
  %vm2294 = vcmp.lt.s32.totalorder %v2292, %v2293
  %v2295 = vsel %vm2294, %v2292, %v2293
  %v2296 = vsel %vm1040, %v2252, 2147483647
  %v2297 = vrot.slane %v2296, 4
  %vm2298 = vcmp.lt.s32.totalorder %v2296, %v2297
  %v2299 = vsel %vm2298, %v2296, %v2297
  %v2300 = vrot.slane %v2299, 2
  %vm2301 = vcmp.lt.s32.totalorder %v2299, %v2300
  %v2302 = vsel %vm2301, %v2299, %v2300
  %v2303 = vrot.slane %v2302, 1
  %vm2304 = vcmp.lt.s32.totalorder %v2302, %v2303
  %v2305 = vsel %vm2304, %v2302, %v2303
  %v2306 = vsel %vm1040, %v2253, 2147483647
  %v2307 = vrot.slane %v2306, 4
  %vm2308 = vcmp.lt.s32.totalorder %v2306, %v2307
  %v2309 = vsel %vm2308, %v2306, %v2307
  %v2310 = vrot.slane %v2309, 2
  %vm2311 = vcmp.lt.s32.totalorder %v2309, %v2310
  %v2312 = vsel %vm2311, %v2309, %v2310
  %v2313 = vrot.slane %v2312, 1
  %vm2314 = vcmp.lt.s32.totalorder %v2312, %v2313
  %v2315 = vsel %vm2314, %v2312, %v2313
  %v2316 = vsel %vm1040, %v2254, 2147483647
  %v2317 = vrot.slane %v2316, 4
  %vm2318 = vcmp.lt.s32.totalorder %v2316, %v2317
  %v2319 = vsel %vm2318, %v2316, %v2317
  %v2320 = vrot.slane %v2319, 2
  %vm2321 = vcmp.lt.s32.totalorder %v2319, %v2320
  %v2322 = vsel %vm2321, %v2319, %v2320
  %v2323 = vrot.slane %v2322, 1
  %vm2324 = vcmp.lt.s32.totalorder %v2322, %v2323
  %v2325 = vsel %vm2324, %v2322, %v2323
  %v2326 = vsel %vm1040, %v2255, 2147483647
  %v2327 = vrot.slane %v2326, 4
  %vm2328 = vcmp.lt.s32.totalorder %v2326, %v2327
  %v2329 = vsel %vm2328, %v2326, %v2327
  %v2330 = vrot.slane %v2329, 2
  %vm2331 = vcmp.lt.s32.totalorder %v2329, %v2330
  %v2332 = vsel %vm2331, %v2329, %v2330
  %v2333 = vrot.slane %v2332, 1
  %vm2334 = vcmp.lt.s32.totalorder %v2332, %v2333
  %v2335 = vsel %vm2334, %v2332, %v2333
  %v2336 = vsel %vm2119, 1, 0
  %2337 = vset.pattern.permute.xlu0 0
  %2338 = vperm.xlu0 %2337, %v2336
  %v2339 = vpop.permute.xlu0 %2338
  %vm2340 = vcmp.eq.s32.totalorder %v2339, 1
  %v2341 = vsel %vm1198, %v2275, %v2265
  %v2342 = vsel %vm1200, %v2285, %v2341
  %v2343 = vsel %vm1202, %v2295, %v2342
  %v2344 = vsel %vm1204, %v2305, %v2343
  %v2345 = vsel %vm1206, %v2315, %v2344
  %v2346 = vsel %vm1208, %v2325, %v2345
  %v2347 = vsel %vm1210, %v2335, %v2346
  %v2348 = vsel %vm2340, %v2347, %v954
  %s2349 = scalar_lea.vmem [#allocation5], 40
  %2350 = vst.msk [vmem:[%s2349] sm:$0xff] %vm941, %v2348
  %v2352 = vrot.slane %v2116, 1
  %v2353 = vrot.slane %v2116, 2
  %v2354 = vrot.slane %v2116, 3
  %v2355 = vrot.slane %v2116, 4
  %v2356 = vrot.slane %v2116, 5
  %v2357 = vrot.slane %v2116, 6
  %v2358 = vrot.slane %v2116, 7
  %v2367 = vadd.f32 %v2190, %v2116
  %v2368 = vadd.f32 %v2197, %v2352
  %v2369 = vadd.f32 %v2204, %v2353
  %v2370 = vadd.f32 %v2211, %v2354
  %v2371 = vadd.f32 %v2218, %v2355
  %v2372 = vadd.f32 %v2225, %v2356
  %v2373 = vadd.f32 %v2232, %v2357
  %v2374 = vadd.f32 %v2239, %v2358
  %v2383 = vrot.slane %v2368, 7
  %v2384 = vsel %vm1198, %v2383, %v2367
  %v2385 = vrot.slane %v2369, 6
  %v2386 = vsel %vm1200, %v2385, %v2384
  %v2387 = vrot.slane %v2370, 5
  %v2388 = vsel %vm1202, %v2387, %v2386
  %v2389 = vrot.slane %v2371, 4
  %v2390 = vsel %vm1204, %v2389, %v2388
  %v2391 = vrot.slane %v2372, 3
  %v2392 = vsel %vm1206, %v2391, %v2390
  %v2393 = vrot.slane %v2373, 2
  %v2394 = vsel %vm1208, %v2393, %v2392
  %v2395 = vrot.slane %v2374, 1
  %v2396 = vsel %vm1210, %v2395, %v2394
  %v2398 = vsel %vm2340, %v2396, %v2114
  %s2399 = scalar_lea.vmem [#allocation4], 48
  %v2400 = vld [vmem:[%s2399] sm:$0xff]
  %s2401 = scalar_lea.vmem %s1, 48
  %v2402 = vld [vmem:[%s2401] sm:$0xff]
  %vm2403 = vcmp.gt.f32.partialorder %v2402, 0.5
  %v2404 = vlaneseq
  %v2405 = vshrl.u32 %v2404, 7
  %v2406 = vsub.s32 0, %v2405
  %v2407 = vrot.slane %v2398, %v2406
  %2409 = vbcast.lane.b32.xlu0 %v2407, 256
  %v2410 = vpop.permute.xlu0 %2409
  %v2411 = vlaneseq
  %v2412 = vshrl.u32 %v2411, 7
  %v2413 = vsub.s32 1, %v2412
  %v2414 = vrot.slane %v2398, %v2413
  %2416 = vbcast.lane.b32.xlu0 %v2414, 256
  %v2417 = vpop.permute.xlu0 %2416
  %v2418 = vlaneseq
  %v2419 = vshrl.u32 %v2418, 7
  %v2420 = vsub.s32 2, %v2419
  %v2421 = vrot.slane %v2398, %v2420
  %2423 = vbcast.lane.b32.xlu0 %v2421, 256
  %v2424 = vpop.permute.xlu0 %2423
  %v2425 = vlaneseq
  %v2426 = vshrl.u32 %v2425, 7
  %v2427 = vsub.s32 3, %v2426
  %v2428 = vrot.slane %v2398, %v2427
  %2430 = vbcast.lane.b32.xlu0 %v2428, 256
  %v2431 = vpop.permute.xlu0 %2430
  %v2432 = vlaneseq
  %v2433 = vshrl.u32 %v2432, 7
  %v2434 = vsub.s32 4, %v2433
  %v2435 = vrot.slane %v2398, %v2434
  %2437 = vbcast.lane.b32.xlu0 %v2435, 256
  %v2438 = vpop.permute.xlu0 %2437
  %v2439 = vlaneseq
  %v2440 = vshrl.u32 %v2439, 7
  %v2441 = vsub.s32 5, %v2440
  %v2442 = vrot.slane %v2398, %v2441
  %2444 = vbcast.lane.b32.xlu0 %v2442, 256
  %v2445 = vpop.permute.xlu0 %2444
  %v2446 = vlaneseq
  %v2447 = vshrl.u32 %v2446, 7
  %v2448 = vsub.s32 6, %v2447
  %v2449 = vrot.slane %v2398, %v2448
  %2451 = vbcast.lane.b32.xlu0 %v2449, 256
  %v2452 = vpop.permute.xlu0 %2451
  %v2453 = vlaneseq
  %v2454 = vshrl.u32 %v2453, 7
  %v2455 = vsub.s32 7, %v2454
  %v2456 = vrot.slane %v2398, %v2455
  %2458 = vbcast.lane.b32.xlu0 %v2456, 256
  %v2459 = vpop.permute.xlu0 %2458
  %v2460 = vadd.f32 %v2410, %v950
  %v2461 = vadd.f32 %v2417, %v950
  %v2462 = vadd.f32 %v2424, %v950
  %v2463 = vadd.f32 %v2431, %v950
  %v2464 = vadd.f32 %v2438, %v950
  %v2465 = vadd.f32 %v2445, %v950
  %v2466 = vadd.f32 %v2452, %v950
  %v2467 = vadd.f32 %v2459, %v950
  %v2468 = vsel %vm1040, %v2460, -inf
  %v2469 = vrot.slane %v2468, 4
  %v2470 = vmax.f32 %v2468, %v2469
  %v2471 = vrot.slane %v2470, 2
  %v2472 = vmax.f32 %v2470, %v2471
  %v2473 = vrot.slane %v2472, 1
  %v2474 = vmax.f32 %v2472, %v2473
  %v2475 = vsel %vm1040, %v2461, -inf
  %v2476 = vrot.slane %v2475, 4
  %v2477 = vmax.f32 %v2475, %v2476
  %v2478 = vrot.slane %v2477, 2
  %v2479 = vmax.f32 %v2477, %v2478
  %v2480 = vrot.slane %v2479, 1
  %v2481 = vmax.f32 %v2479, %v2480
  %v2482 = vsel %vm1040, %v2462, -inf
  %v2483 = vrot.slane %v2482, 4
  %v2484 = vmax.f32 %v2482, %v2483
  %v2485 = vrot.slane %v2484, 2
  %v2486 = vmax.f32 %v2484, %v2485
  %v2487 = vrot.slane %v2486, 1
  %v2488 = vmax.f32 %v2486, %v2487
  %v2489 = vsel %vm1040, %v2463, -inf
  %v2490 = vrot.slane %v2489, 4
  %v2491 = vmax.f32 %v2489, %v2490
  %v2492 = vrot.slane %v2491, 2
  %v2493 = vmax.f32 %v2491, %v2492
  %v2494 = vrot.slane %v2493, 1
  %v2495 = vmax.f32 %v2493, %v2494
  %v2496 = vsel %vm1040, %v2464, -inf
  %v2497 = vrot.slane %v2496, 4
  %v2498 = vmax.f32 %v2496, %v2497
  %v2499 = vrot.slane %v2498, 2
  %v2500 = vmax.f32 %v2498, %v2499
  %v2501 = vrot.slane %v2500, 1
  %v2502 = vmax.f32 %v2500, %v2501
  %v2503 = vsel %vm1040, %v2465, -inf
  %v2504 = vrot.slane %v2503, 4
  %v2505 = vmax.f32 %v2503, %v2504
  %v2506 = vrot.slane %v2505, 2
  %v2507 = vmax.f32 %v2505, %v2506
  %v2508 = vrot.slane %v2507, 1
  %v2509 = vmax.f32 %v2507, %v2508
  %v2510 = vsel %vm1040, %v2466, -inf
  %v2511 = vrot.slane %v2510, 4
  %v2512 = vmax.f32 %v2510, %v2511
  %v2513 = vrot.slane %v2512, 2
  %v2514 = vmax.f32 %v2512, %v2513
  %v2515 = vrot.slane %v2514, 1
  %v2516 = vmax.f32 %v2514, %v2515
  %v2517 = vsel %vm1040, %v2467, -inf
  %v2518 = vrot.slane %v2517, 4
  %v2519 = vmax.f32 %v2517, %v2518
  %v2520 = vrot.slane %v2519, 2
  %v2521 = vmax.f32 %v2519, %v2520
  %v2522 = vrot.slane %v2521, 1
  %v2523 = vmax.f32 %v2521, %v2522
  %vm2524 = vcmp.eq.f32.partialorder %v2460, %v2474
  %vm2525 = vcmp.eq.f32.partialorder %v2461, %v2481
  %vm2526 = vcmp.eq.f32.partialorder %v2462, %v2488
  %vm2527 = vcmp.eq.f32.partialorder %v2463, %v2495
  %vm2528 = vcmp.eq.f32.partialorder %v2464, %v2502
  %vm2529 = vcmp.eq.f32.partialorder %v2465, %v2509
  %vm2530 = vcmp.eq.f32.partialorder %v2466, %v2516
  %vm2531 = vcmp.eq.f32.partialorder %v2467, %v2523
  %v2532 = vsel %vm2524, %v952, 5
  %v2533 = vsel %vm2525, %v952, 5
  %v2534 = vsel %vm2526, %v952, 5
  %v2535 = vsel %vm2527, %v952, 5
  %v2536 = vsel %vm2528, %v952, 5
  %v2537 = vsel %vm2529, %v952, 5
  %v2538 = vsel %vm2530, %v952, 5
  %v2539 = vsel %vm2531, %v952, 5
  %v2540 = vsel %vm1040, %v2532, 2147483647
  %v2541 = vrot.slane %v2540, 4
  %vm2542 = vcmp.lt.s32.totalorder %v2540, %v2541
  %v2543 = vsel %vm2542, %v2540, %v2541
  %v2544 = vrot.slane %v2543, 2
  %vm2545 = vcmp.lt.s32.totalorder %v2543, %v2544
  %v2546 = vsel %vm2545, %v2543, %v2544
  %v2547 = vrot.slane %v2546, 1
  %vm2548 = vcmp.lt.s32.totalorder %v2546, %v2547
  %v2549 = vsel %vm2548, %v2546, %v2547
  %v2550 = vsel %vm1040, %v2533, 2147483647
  %v2551 = vrot.slane %v2550, 4
  %vm2552 = vcmp.lt.s32.totalorder %v2550, %v2551
  %v2553 = vsel %vm2552, %v2550, %v2551
  %v2554 = vrot.slane %v2553, 2
  %vm2555 = vcmp.lt.s32.totalorder %v2553, %v2554
  %v2556 = vsel %vm2555, %v2553, %v2554
  %v2557 = vrot.slane %v2556, 1
  %vm2558 = vcmp.lt.s32.totalorder %v2556, %v2557
  %v2559 = vsel %vm2558, %v2556, %v2557
  %v2560 = vsel %vm1040, %v2534, 2147483647
  %v2561 = vrot.slane %v2560, 4
  %vm2562 = vcmp.lt.s32.totalorder %v2560, %v2561
  %v2563 = vsel %vm2562, %v2560, %v2561
  %v2564 = vrot.slane %v2563, 2
  %vm2565 = vcmp.lt.s32.totalorder %v2563, %v2564
  %v2566 = vsel %vm2565, %v2563, %v2564
  %v2567 = vrot.slane %v2566, 1
  %vm2568 = vcmp.lt.s32.totalorder %v2566, %v2567
  %v2569 = vsel %vm2568, %v2566, %v2567
  %v2570 = vsel %vm1040, %v2535, 2147483647
  %v2571 = vrot.slane %v2570, 4
  %vm2572 = vcmp.lt.s32.totalorder %v2570, %v2571
  %v2573 = vsel %vm2572, %v2570, %v2571
  %v2574 = vrot.slane %v2573, 2
  %vm2575 = vcmp.lt.s32.totalorder %v2573, %v2574
  %v2576 = vsel %vm2575, %v2573, %v2574
  %v2577 = vrot.slane %v2576, 1
  %vm2578 = vcmp.lt.s32.totalorder %v2576, %v2577
  %v2579 = vsel %vm2578, %v2576, %v2577
  %v2580 = vsel %vm1040, %v2536, 2147483647
  %v2581 = vrot.slane %v2580, 4
  %vm2582 = vcmp.lt.s32.totalorder %v2580, %v2581
  %v2583 = vsel %vm2582, %v2580, %v2581
  %v2584 = vrot.slane %v2583, 2
  %vm2585 = vcmp.lt.s32.totalorder %v2583, %v2584
  %v2586 = vsel %vm2585, %v2583, %v2584
  %v2587 = vrot.slane %v2586, 1
  %vm2588 = vcmp.lt.s32.totalorder %v2586, %v2587
  %v2589 = vsel %vm2588, %v2586, %v2587
  %v2590 = vsel %vm1040, %v2537, 2147483647
  %v2591 = vrot.slane %v2590, 4
  %vm2592 = vcmp.lt.s32.totalorder %v2590, %v2591
  %v2593 = vsel %vm2592, %v2590, %v2591
  %v2594 = vrot.slane %v2593, 2
  %vm2595 = vcmp.lt.s32.totalorder %v2593, %v2594
  %v2596 = vsel %vm2595, %v2593, %v2594
  %v2597 = vrot.slane %v2596, 1
  %vm2598 = vcmp.lt.s32.totalorder %v2596, %v2597
  %v2599 = vsel %vm2598, %v2596, %v2597
  %v2600 = vsel %vm1040, %v2538, 2147483647
  %v2601 = vrot.slane %v2600, 4
  %vm2602 = vcmp.lt.s32.totalorder %v2600, %v2601
  %v2603 = vsel %vm2602, %v2600, %v2601
  %v2604 = vrot.slane %v2603, 2
  %vm2605 = vcmp.lt.s32.totalorder %v2603, %v2604
  %v2606 = vsel %vm2605, %v2603, %v2604
  %v2607 = vrot.slane %v2606, 1
  %vm2608 = vcmp.lt.s32.totalorder %v2606, %v2607
  %v2609 = vsel %vm2608, %v2606, %v2607
  %v2610 = vsel %vm1040, %v2539, 2147483647
  %v2611 = vrot.slane %v2610, 4
  %vm2612 = vcmp.lt.s32.totalorder %v2610, %v2611
  %v2613 = vsel %vm2612, %v2610, %v2611
  %v2614 = vrot.slane %v2613, 2
  %vm2615 = vcmp.lt.s32.totalorder %v2613, %v2614
  %v2616 = vsel %vm2615, %v2613, %v2614
  %v2617 = vrot.slane %v2616, 1
  %vm2618 = vcmp.lt.s32.totalorder %v2616, %v2617
  %v2619 = vsel %vm2618, %v2616, %v2617
  %v2620 = vsel %vm2403, 1, 0
  %2621 = vset.pattern.permute.xlu0 0
  %2622 = vperm.xlu0 %2621, %v2620
  %v2623 = vpop.permute.xlu0 %2622
  %vm2624 = vcmp.eq.s32.totalorder %v2623, 1
  %v2625 = vsel %vm1198, %v2559, %v2549
  %v2626 = vsel %vm1200, %v2569, %v2625
  %v2627 = vsel %vm1202, %v2579, %v2626
  %v2628 = vsel %vm1204, %v2589, %v2627
  %v2629 = vsel %vm1206, %v2599, %v2628
  %v2630 = vsel %vm1208, %v2609, %v2629
  %v2631 = vsel %vm1210, %v2619, %v2630
  %v2632 = vsel %vm2624, %v2631, %v954
  %s2633 = scalar_lea.vmem [#allocation5], 48
  %2634 = vst.msk [vmem:[%s2633] sm:$0xff] %vm941, %v2632
  %v2636 = vrot.slane %v2400, 1
  %v2637 = vrot.slane %v2400, 2
  %v2638 = vrot.slane %v2400, 3
  %v2639 = vrot.slane %v2400, 4
  %v2640 = vrot.slane %v2400, 5
  %v2641 = vrot.slane %v2400, 6
  %v2642 = vrot.slane %v2400, 7
  %v2651 = vadd.f32 %v2474, %v2400
  %v2652 = vadd.f32 %v2481, %v2636
  %v2653 = vadd.f32 %v2488, %v2637
  %v2654 = vadd.f32 %v2495, %v2638
  %v2655 = vadd.f32 %v2502, %v2639
  %v2656 = vadd.f32 %v2509, %v2640
  %v2657 = vadd.f32 %v2516, %v2641
  %v2658 = vadd.f32 %v2523, %v2642
  %v2667 = vrot.slane %v2652, 7
  %v2668 = vsel %vm1198, %v2667, %v2651
  %v2669 = vrot.slane %v2653, 6
  %v2670 = vsel %vm1200, %v2669, %v2668
  %v2671 = vrot.slane %v2654, 5
  %v2672 = vsel %vm1202, %v2671, %v2670
  %v2673 = vrot.slane %v2655, 4
  %v2674 = vsel %vm1204, %v2673, %v2672
  %v2675 = vrot.slane %v2656, 3
  %v2676 = vsel %vm1206, %v2675, %v2674
  %v2677 = vrot.slane %v2657, 2
  %v2678 = vsel %vm1208, %v2677, %v2676
  %v2679 = vrot.slane %v2658, 1
  %v2680 = vsel %vm1210, %v2679, %v2678
  %v2682 = vsel %vm2624, %v2680, %v2398
  %s2683 = scalar_lea.vmem [#allocation4], 56
  %v2684 = vld [vmem:[%s2683] sm:$0xff]
  %s2685 = scalar_lea.vmem %s1, 56
  %v2686 = vld [vmem:[%s2685] sm:$0xff]
  %vm2687 = vcmp.gt.f32.partialorder %v2686, 0.5
  %v2688 = vlaneseq
  %v2689 = vshrl.u32 %v2688, 7
  %v2690 = vsub.s32 0, %v2689
  %v2691 = vrot.slane %v2682, %v2690
  %2693 = vbcast.lane.b32.xlu0 %v2691, 256
  %v2694 = vpop.permute.xlu0 %2693
  %v2695 = vlaneseq
  %v2696 = vshrl.u32 %v2695, 7
  %v2697 = vsub.s32 1, %v2696
  %v2698 = vrot.slane %v2682, %v2697
  %2700 = vbcast.lane.b32.xlu0 %v2698, 256
  %v2701 = vpop.permute.xlu0 %2700
  %v2702 = vlaneseq
  %v2703 = vshrl.u32 %v2702, 7
  %v2704 = vsub.s32 2, %v2703
  %v2705 = vrot.slane %v2682, %v2704
  %2707 = vbcast.lane.b32.xlu0 %v2705, 256
  %v2708 = vpop.permute.xlu0 %2707
  %v2709 = vlaneseq
  %v2710 = vshrl.u32 %v2709, 7
  %v2711 = vsub.s32 3, %v2710
  %v2712 = vrot.slane %v2682, %v2711
  %2714 = vbcast.lane.b32.xlu0 %v2712, 256
  %v2715 = vpop.permute.xlu0 %2714
  %v2716 = vlaneseq
  %v2717 = vshrl.u32 %v2716, 7
  %v2718 = vsub.s32 4, %v2717
  %v2719 = vrot.slane %v2682, %v2718
  %2721 = vbcast.lane.b32.xlu0 %v2719, 256
  %v2722 = vpop.permute.xlu0 %2721
  %v2723 = vlaneseq
  %v2724 = vshrl.u32 %v2723, 7
  %v2725 = vsub.s32 5, %v2724
  %v2726 = vrot.slane %v2682, %v2725
  %2728 = vbcast.lane.b32.xlu0 %v2726, 256
  %v2729 = vpop.permute.xlu0 %2728
  %v2730 = vlaneseq
  %v2731 = vshrl.u32 %v2730, 7
  %v2732 = vsub.s32 6, %v2731
  %v2733 = vrot.slane %v2682, %v2732
  %2735 = vbcast.lane.b32.xlu0 %v2733, 256
  %v2736 = vpop.permute.xlu0 %2735
  %v2737 = vlaneseq
  %v2738 = vshrl.u32 %v2737, 7
  %v2739 = vsub.s32 7, %v2738
  %v2740 = vrot.slane %v2682, %v2739
  %2742 = vbcast.lane.b32.xlu0 %v2740, 256
  %v2743 = vpop.permute.xlu0 %2742
  %v2744 = vadd.f32 %v2694, %v950
  %v2745 = vadd.f32 %v2701, %v950
  %v2746 = vadd.f32 %v2708, %v950
  %v2747 = vadd.f32 %v2715, %v950
  %v2748 = vadd.f32 %v2722, %v950
  %v2749 = vadd.f32 %v2729, %v950
  %v2750 = vadd.f32 %v2736, %v950
  %v2751 = vadd.f32 %v2743, %v950
  %v2752 = vsel %vm1040, %v2744, -inf
  %v2753 = vrot.slane %v2752, 4
  %v2754 = vmax.f32 %v2752, %v2753
  %v2755 = vrot.slane %v2754, 2
  %v2756 = vmax.f32 %v2754, %v2755
  %v2757 = vrot.slane %v2756, 1
  %v2758 = vmax.f32 %v2756, %v2757
  %v2759 = vsel %vm1040, %v2745, -inf
  %v2760 = vrot.slane %v2759, 4
  %v2761 = vmax.f32 %v2759, %v2760
  %v2762 = vrot.slane %v2761, 2
  %v2763 = vmax.f32 %v2761, %v2762
  %v2764 = vrot.slane %v2763, 1
  %v2765 = vmax.f32 %v2763, %v2764
  %v2766 = vsel %vm1040, %v2746, -inf
  %v2767 = vrot.slane %v2766, 4
  %v2768 = vmax.f32 %v2766, %v2767
  %v2769 = vrot.slane %v2768, 2
  %v2770 = vmax.f32 %v2768, %v2769
  %v2771 = vrot.slane %v2770, 1
  %v2772 = vmax.f32 %v2770, %v2771
  %v2773 = vsel %vm1040, %v2747, -inf
  %v2774 = vrot.slane %v2773, 4
  %v2775 = vmax.f32 %v2773, %v2774
  %v2776 = vrot.slane %v2775, 2
  %v2777 = vmax.f32 %v2775, %v2776
  %v2778 = vrot.slane %v2777, 1
  %v2779 = vmax.f32 %v2777, %v2778
  %v2780 = vsel %vm1040, %v2748, -inf
  %v2781 = vrot.slane %v2780, 4
  %v2782 = vmax.f32 %v2780, %v2781
  %v2783 = vrot.slane %v2782, 2
  %v2784 = vmax.f32 %v2782, %v2783
  %v2785 = vrot.slane %v2784, 1
  %v2786 = vmax.f32 %v2784, %v2785
  %v2787 = vsel %vm1040, %v2749, -inf
  %v2788 = vrot.slane %v2787, 4
  %v2789 = vmax.f32 %v2787, %v2788
  %v2790 = vrot.slane %v2789, 2
  %v2791 = vmax.f32 %v2789, %v2790
  %v2792 = vrot.slane %v2791, 1
  %v2793 = vmax.f32 %v2791, %v2792
  %v2794 = vsel %vm1040, %v2750, -inf
  %v2795 = vrot.slane %v2794, 4
  %v2796 = vmax.f32 %v2794, %v2795
  %v2797 = vrot.slane %v2796, 2
  %v2798 = vmax.f32 %v2796, %v2797
  %v2799 = vrot.slane %v2798, 1
  %v2800 = vmax.f32 %v2798, %v2799
  %v2801 = vsel %vm1040, %v2751, -inf
  %v2802 = vrot.slane %v2801, 4
  %v2803 = vmax.f32 %v2801, %v2802
  %v2804 = vrot.slane %v2803, 2
  %v2805 = vmax.f32 %v2803, %v2804
  %v2806 = vrot.slane %v2805, 1
  %v2807 = vmax.f32 %v2805, %v2806
  %vm2808 = vcmp.eq.f32.partialorder %v2744, %v2758
  %vm2809 = vcmp.eq.f32.partialorder %v2745, %v2765
  %vm2810 = vcmp.eq.f32.partialorder %v2746, %v2772
  %vm2811 = vcmp.eq.f32.partialorder %v2747, %v2779
  %vm2812 = vcmp.eq.f32.partialorder %v2748, %v2786
  %vm2813 = vcmp.eq.f32.partialorder %v2749, %v2793
  %vm2814 = vcmp.eq.f32.partialorder %v2750, %v2800
  %vm2815 = vcmp.eq.f32.partialorder %v2751, %v2807
  %v2816 = vsel %vm2808, %v952, 5
  %v2817 = vsel %vm2809, %v952, 5
  %v2818 = vsel %vm2810, %v952, 5
  %v2819 = vsel %vm2811, %v952, 5
  %v2820 = vsel %vm2812, %v952, 5
  %v2821 = vsel %vm2813, %v952, 5
  %v2822 = vsel %vm2814, %v952, 5
  %v2823 = vsel %vm2815, %v952, 5
  %v2824 = vsel %vm1040, %v2816, 2147483647
  %v2825 = vrot.slane %v2824, 4
  %vm2826 = vcmp.lt.s32.totalorder %v2824, %v2825
  %v2827 = vsel %vm2826, %v2824, %v2825
  %v2828 = vrot.slane %v2827, 2
  %vm2829 = vcmp.lt.s32.totalorder %v2827, %v2828
  %v2830 = vsel %vm2829, %v2827, %v2828
  %v2831 = vrot.slane %v2830, 1
  %vm2832 = vcmp.lt.s32.totalorder %v2830, %v2831
  %v2833 = vsel %vm2832, %v2830, %v2831
  %v2834 = vsel %vm1040, %v2817, 2147483647
  %v2835 = vrot.slane %v2834, 4
  %vm2836 = vcmp.lt.s32.totalorder %v2834, %v2835
  %v2837 = vsel %vm2836, %v2834, %v2835
  %v2838 = vrot.slane %v2837, 2
  %vm2839 = vcmp.lt.s32.totalorder %v2837, %v2838
  %v2840 = vsel %vm2839, %v2837, %v2838
  %v2841 = vrot.slane %v2840, 1
  %vm2842 = vcmp.lt.s32.totalorder %v2840, %v2841
  %v2843 = vsel %vm2842, %v2840, %v2841
  %v2844 = vsel %vm1040, %v2818, 2147483647
  %v2845 = vrot.slane %v2844, 4
  %vm2846 = vcmp.lt.s32.totalorder %v2844, %v2845
  %v2847 = vsel %vm2846, %v2844, %v2845
  %v2848 = vrot.slane %v2847, 2
  %vm2849 = vcmp.lt.s32.totalorder %v2847, %v2848
  %v2850 = vsel %vm2849, %v2847, %v2848
  %v2851 = vrot.slane %v2850, 1
  %vm2852 = vcmp.lt.s32.totalorder %v2850, %v2851
  %v2853 = vsel %vm2852, %v2850, %v2851
  %v2854 = vsel %vm1040, %v2819, 2147483647
  %v2855 = vrot.slane %v2854, 4
  %vm2856 = vcmp.lt.s32.totalorder %v2854, %v2855
  %v2857 = vsel %vm2856, %v2854, %v2855
  %v2858 = vrot.slane %v2857, 2
  %vm2859 = vcmp.lt.s32.totalorder %v2857, %v2858
  %v2860 = vsel %vm2859, %v2857, %v2858
  %v2861 = vrot.slane %v2860, 1
  %vm2862 = vcmp.lt.s32.totalorder %v2860, %v2861
  %v2863 = vsel %vm2862, %v2860, %v2861
  %v2864 = vsel %vm1040, %v2820, 2147483647
  %v2865 = vrot.slane %v2864, 4
  %vm2866 = vcmp.lt.s32.totalorder %v2864, %v2865
  %v2867 = vsel %vm2866, %v2864, %v2865
  %v2868 = vrot.slane %v2867, 2
  %vm2869 = vcmp.lt.s32.totalorder %v2867, %v2868
  %v2870 = vsel %vm2869, %v2867, %v2868
  %v2871 = vrot.slane %v2870, 1
  %vm2872 = vcmp.lt.s32.totalorder %v2870, %v2871
  %v2873 = vsel %vm2872, %v2870, %v2871
  %v2874 = vsel %vm1040, %v2821, 2147483647
  %v2875 = vrot.slane %v2874, 4
  %vm2876 = vcmp.lt.s32.totalorder %v2874, %v2875
  %v2877 = vsel %vm2876, %v2874, %v2875
  %v2878 = vrot.slane %v2877, 2
  %vm2879 = vcmp.lt.s32.totalorder %v2877, %v2878
  %v2880 = vsel %vm2879, %v2877, %v2878
  %v2881 = vrot.slane %v2880, 1
  %vm2882 = vcmp.lt.s32.totalorder %v2880, %v2881
  %v2883 = vsel %vm2882, %v2880, %v2881
  %v2884 = vsel %vm1040, %v2822, 2147483647
  %v2885 = vrot.slane %v2884, 4
  %vm2886 = vcmp.lt.s32.totalorder %v2884, %v2885
  %v2887 = vsel %vm2886, %v2884, %v2885
  %v2888 = vrot.slane %v2887, 2
  %vm2889 = vcmp.lt.s32.totalorder %v2887, %v2888
  %v2890 = vsel %vm2889, %v2887, %v2888
  %v2891 = vrot.slane %v2890, 1
  %vm2892 = vcmp.lt.s32.totalorder %v2890, %v2891
  %v2893 = vsel %vm2892, %v2890, %v2891
  %v2894 = vsel %vm1040, %v2823, 2147483647
  %v2895 = vrot.slane %v2894, 4
  %vm2896 = vcmp.lt.s32.totalorder %v2894, %v2895
  %v2897 = vsel %vm2896, %v2894, %v2895
  %v2898 = vrot.slane %v2897, 2
  %vm2899 = vcmp.lt.s32.totalorder %v2897, %v2898
  %v2900 = vsel %vm2899, %v2897, %v2898
  %v2901 = vrot.slane %v2900, 1
  %vm2902 = vcmp.lt.s32.totalorder %v2900, %v2901
  %v2903 = vsel %vm2902, %v2900, %v2901
  %v2904 = vsel %vm2687, 1, 0
  %2905 = vset.pattern.permute.xlu0 0
  %2906 = vperm.xlu0 %2905, %v2904
  %v2907 = vpop.permute.xlu0 %2906
  %vm2908 = vcmp.eq.s32.totalorder %v2907, 1
  %v2909 = vsel %vm1198, %v2843, %v2833
  %v2910 = vsel %vm1200, %v2853, %v2909
  %v2911 = vsel %vm1202, %v2863, %v2910
  %v2912 = vsel %vm1204, %v2873, %v2911
  %v2913 = vsel %vm1206, %v2883, %v2912
  %v2914 = vsel %vm1208, %v2893, %v2913
  %v2915 = vsel %vm1210, %v2903, %v2914
  %v2916 = vsel %vm2908, %v2915, %v954
  %s2917 = scalar_lea.vmem [#allocation5], 56
  %2918 = vst.msk [vmem:[%s2917] sm:$0xff] %vm941, %v2916
  %v2920 = vrot.slane %v2684, 1
  %v2921 = vrot.slane %v2684, 2
  %v2922 = vrot.slane %v2684, 3
  %v2923 = vrot.slane %v2684, 4
  %v2924 = vrot.slane %v2684, 5
  %v2925 = vrot.slane %v2684, 6
  %v2926 = vrot.slane %v2684, 7
  %v2935 = vadd.f32 %v2758, %v2684
  %v2936 = vadd.f32 %v2765, %v2920
  %v2937 = vadd.f32 %v2772, %v2921
  %v2938 = vadd.f32 %v2779, %v2922
  %v2939 = vadd.f32 %v2786, %v2923
  %v2940 = vadd.f32 %v2793, %v2924
  %v2941 = vadd.f32 %v2800, %v2925
  %v2942 = vadd.f32 %v2807, %v2926
  %v2951 = vrot.slane %v2936, 7
  %v2952 = vsel %vm1198, %v2951, %v2935
  %v2953 = vrot.slane %v2937, 6
  %v2954 = vsel %vm1200, %v2953, %v2952
  %v2955 = vrot.slane %v2938, 5
  %v2956 = vsel %vm1202, %v2955, %v2954
  %v2957 = vrot.slane %v2939, 4
  %v2958 = vsel %vm1204, %v2957, %v2956
  %v2959 = vrot.slane %v2940, 3
  %v2960 = vsel %vm1206, %v2959, %v2958
  %v2961 = vrot.slane %v2941, 2
  %v2962 = vsel %vm1208, %v2961, %v2960
  %v2963 = vrot.slane %v2942, 1
  %v2964 = vsel %vm1210, %v2963, %v2962
  %v2966 = vsel %vm2908, %v2964, %v2682
  %v2967 = vld [vmem:[%s7] sm:$0x1]
  %v2969 = vlaneseq
  %v2970 = vshrl.u32 %v2969, 7
  %v2971 = vsub.s32 0, %v2970
  %v2972 = vrot.slane %v2967, %v2971
  %v2974 = vadd.f32 %v2966, %v2972
  %v2975 = vsel %vm941, %v2974, -inf
  %2976 = vmax.xlane.f32.xlu0 %v2975
  %v2977 = vpop.xlane.xlu0 %2976
  %vm2978 = vcmp.eq.f32.partialorder %v2974, %v2977
  %v2979 = vsel %vm2978, %v954, 5
  %v2980 = vsel %vm941, %v2979, 2147483647
  %v2981 = vand.u32 %v2980, 65535
  %v2982 = vshra.s32 %v2980, 16
  %v2983 = vcvt.s32.f32 %v2981
  %v2984 = vcvt.s32.f32 %v2982
  %2985 = vmin.xlane.f32.xlu0 %v2984
  %v2986 = vpop.xlane.xlu0 %2985
  %vm2987 = vcmp.eq.f32.partialorder %v2984, %v2986
  %v2988 = vsel %vm2987, %v2983, inf
  %2989 = vmin.xlane.f32.xlu0 %v2988
  %v2990 = vpop.xlane.xlu0 %2989
  %v2991 = vcvt.f32.s32 %v2990
  %v2992 = vcvt.f32.s32 %v2986
  %v2993 = vshll.u32 %v2992, 16
  %v2994 = vadd.s32 %v2993, %v2991
  %vm2995 = vcmp.eq.s32.totalorder %v954, 7
  %v2996 = vsel %vm2995, %v2994, 0
  %v2997 = vld [vmem:[%s2917] sm:$0xff]
  %vm2998 = vcmp.eq.s32.totalorder %v954, %v2994
  %v2999 = vsel %vm2998, %v2997, 0
  %v3000 = vsel %vm941, %v2999, 0
  %v3001 = vand.u32 %v3000, 65535
  %v3002 = vshrl.u32 %v3000, 16
  %v3003 = vcvt.s32.f32 %v3001
  %v3004 = vcvt.s32.f32 %v3002
  %3005 = vadd.xlane.f32.xlu0 %v3003
  %v3006 = vpop.xlane.xlu0 %3005
  %3007 = vadd.xlane.f32.xlu0 %v3004
  %v3008 = vpop.xlane.xlu0 %3007
  %v3009 = vcvt.f32.s32 %v3006
  %v3010 = vcvt.f32.s32 %v3008
  %v3011 = vshll.u32 %v3010, 16
  %v3012 = vadd.s32 %v3011, %v3009
  %vm3013 = vcmp.eq.s32.totalorder %v954, 6
  %v3014 = vsel %vm3013, %v3012, %v2996
  %v3015 = vld [vmem:[%s2633] sm:$0xff]
  %vm3016 = vcmp.eq.s32.totalorder %v954, %v3012
  %v3017 = vsel %vm3016, %v3015, 0
  %v3018 = vsel %vm941, %v3017, 0
  %v3019 = vand.u32 %v3018, 65535
  %v3020 = vshrl.u32 %v3018, 16
  %v3021 = vcvt.s32.f32 %v3019
  %v3022 = vcvt.s32.f32 %v3020
  %3023 = vadd.xlane.f32.xlu0 %v3021
  %v3024 = vpop.xlane.xlu0 %3023
  %3025 = vadd.xlane.f32.xlu0 %v3022
  %v3026 = vpop.xlane.xlu0 %3025
  %v3027 = vcvt.f32.s32 %v3024
  %v3028 = vcvt.f32.s32 %v3026
  %v3029 = vshll.u32 %v3028, 16
  %v3030 = vadd.s32 %v3029, %v3027
  %vm3031 = vcmp.eq.s32.totalorder %v954, 5
  %v3032 = vsel %vm3031, %v3030, %v3014
  %v3033 = vld [vmem:[%s2349] sm:$0xff]
  %vm3034 = vcmp.eq.s32.totalorder %v954, %v3030
  %v3035 = vsel %vm3034, %v3033, 0
  %v3036 = vsel %vm941, %v3035, 0
  %v3037 = vand.u32 %v3036, 65535
  %v3038 = vshrl.u32 %v3036, 16
  %v3039 = vcvt.s32.f32 %v3037
  %v3040 = vcvt.s32.f32 %v3038
  %3041 = vadd.xlane.f32.xlu0 %v3039
  %v3042 = vpop.xlane.xlu0 %3041
  %3043 = vadd.xlane.f32.xlu0 %v3040
  %v3044 = vpop.xlane.xlu0 %3043
  %v3045 = vcvt.f32.s32 %v3042
  %v3046 = vcvt.f32.s32 %v3044
  %v3047 = vshll.u32 %v3046, 16
  %v3048 = vadd.s32 %v3047, %v3045
  %vm3049 = vcmp.eq.s32.totalorder %v954, 4
  %v3050 = vsel %vm3049, %v3048, %v3032
  %v3051 = vld [vmem:[%s2065] sm:$0xff]
  %vm3052 = vcmp.eq.s32.totalorder %v954, %v3048
  %v3053 = vsel %vm3052, %v3051, 0
  %v3054 = vsel %vm941, %v3053, 0
  %v3055 = vand.u32 %v3054, 65535
  %v3056 = vshrl.u32 %v3054, 16
  %v3057 = vcvt.s32.f32 %v3055
  %v3058 = vcvt.s32.f32 %v3056
  %3059 = vadd.xlane.f32.xlu0 %v3057
  %v3060 = vpop.xlane.xlu0 %3059
  %3061 = vadd.xlane.f32.xlu0 %v3058
  %v3062 = vpop.xlane.xlu0 %3061
  %v3063 = vcvt.f32.s32 %v3060
  %v3064 = vcvt.f32.s32 %v3062
  %v3065 = vshll.u32 %v3064, 16
  %v3066 = vadd.s32 %v3065, %v3063
  %vm3067 = vcmp.eq.s32.totalorder %v954, 3
  %v3068 = vsel %vm3067, %v3066, %v3050
  %v3069 = vld [vmem:[%s1781] sm:$0xff]
  %vm3070 = vcmp.eq.s32.totalorder %v954, %v3066
  %v3071 = vsel %vm3070, %v3069, 0
  %v3072 = vsel %vm941, %v3071, 0
  %v3073 = vand.u32 %v3072, 65535
  %v3074 = vshrl.u32 %v3072, 16
  %v3075 = vcvt.s32.f32 %v3073
  %v3076 = vcvt.s32.f32 %v3074
  %3077 = vadd.xlane.f32.xlu0 %v3075
  %v3078 = vpop.xlane.xlu0 %3077
  %3079 = vadd.xlane.f32.xlu0 %v3076
  %v3080 = vpop.xlane.xlu0 %3079
  %v3081 = vcvt.f32.s32 %v3078
  %v3082 = vcvt.f32.s32 %v3080
  %v3083 = vshll.u32 %v3082, 16
  %v3084 = vadd.s32 %v3083, %v3081
  %vm3085 = vcmp.eq.s32.totalorder %v954, 2
  %v3086 = vsel %vm3085, %v3084, %v3068
  %v3087 = vld [vmem:[%s1497] sm:$0xff]
  %vm3088 = vcmp.eq.s32.totalorder %v954, %v3084
  %v3089 = vsel %vm3088, %v3087, 0
  %v3090 = vsel %vm941, %v3089, 0
  %v3091 = vand.u32 %v3090, 65535
  %v3092 = vshrl.u32 %v3090, 16
  %v3093 = vcvt.s32.f32 %v3091
  %v3094 = vcvt.s32.f32 %v3092
  %3095 = vadd.xlane.f32.xlu0 %v3093
  %v3096 = vpop.xlane.xlu0 %3095
  %3097 = vadd.xlane.f32.xlu0 %v3094
  %v3098 = vpop.xlane.xlu0 %3097
  %v3099 = vcvt.f32.s32 %v3096
  %v3100 = vcvt.f32.s32 %v3098
  %v3101 = vshll.u32 %v3100, 16
  %v3102 = vadd.s32 %v3101, %v3099
  %vm3103 = vcmp.eq.s32.totalorder %v954, 1
  %v3104 = vsel %vm3103, %v3102, %v3086
  %v3105 = vld [vmem:[%s1213] sm:$0xff]
  %vm3106 = vcmp.eq.s32.totalorder %v954, %v3102
  %v3107 = vsel %vm3106, %v3105, 0
  %v3108 = vsel %vm941, %v3107, 0
  %v3109 = vand.u32 %v3108, 65535
  %v3110 = vshrl.u32 %v3108, 16
  %v3111 = vcvt.s32.f32 %v3109
  %v3112 = vcvt.s32.f32 %v3110
  %3113 = vadd.xlane.f32.xlu0 %v3111
  %v3114 = vpop.xlane.xlu0 %3113
  %3115 = vadd.xlane.f32.xlu0 %v3112
  %v3116 = vpop.xlane.xlu0 %3115
  %v3117 = vcvt.f32.s32 %v3114
  %v3118 = vcvt.f32.s32 %v3116
  %v3119 = vshll.u32 %v3118, 16
  %v3120 = vadd.s32 %v3119, %v3117
  %vm3121 = vcmp.eq.s32.totalorder %v954, 0
  %v3122 = vsel %vm3121, %v3120, %v3104
  %vm3123 = vcmask 64512
  %3124 = vst.msk [vmem:[%s9] sm:$0xff] %vm3123, %v3122
  // Predicated region
  $region38: #{ner_bilstm_crf_forward.1} parent=0 // pred_check
    _
  $region39: #{ner_bilstm_crf_forward.1} parent=0 // pred_check_branch
    %3126 = sbr.rel (0) target = $region41
  $region40: #{ner_bilstm_crf_forward.1} parent=0 // pred_region
    _
  $region41: #{ner_bilstm_crf_forward.1} parent=0 // pred_fallthru
    _
  // Predicated region
  $region42: #{ner_bilstm_crf_forward.1} parent=0 // pred_check
    _
  $region43: #{ner_bilstm_crf_forward.1} parent=0 // pred_check_branch
    %3128 = sbr.rel (0) target = $region45
  $region44: #{ner_bilstm_crf_forward.1} parent=0 // pred_region
    _
  $region45: #{ner_bilstm_crf_forward.1} parent=0 // pred_fallthru
    _

</llo_original>
